<compile_context>
chip_gen: v6e
topology: v6e:2x2x1
jax: 0.10.0
libtpu: 0.0.40
codegen_flags: <defaults>
</compile_context>

<pallas_src>
import functools

import numpy as np
import jax
import jax.numpy as jnp
from jax import lax
from jax.experimental import pallas as pl
from jax.experimental.pallas import tpu as pltpu

BN_EPS = 1e-5
_VMEM_LIMIT = 32 * 1024 * 1024


def _round_up(x, m):
    return (x + m - 1) // m * m


def _pick_row_tile(R, L, itemsize=4, target=1 << 20):
    """Largest power-of-two multiple of 8 dividing R with TR*L*itemsize <= target."""
    if R * L * itemsize <= target or R % 8 != 0:
        return R
    best = R
    cand = 8
    while cand <= R:
        if R % cand == 0 and cand * L * itemsize <= target:
            best = cand
        cand *= 2
    return best


# ----------------------------------------------------------------------------
# Pallas kernels
# ----------------------------------------------------------------------------
def _conv_stats_kernel(p_ref, w_ref, raw_ref, sum_ref, sq_ref):
    """One K=9*C matmul per M-tile + per-channel sum/sumsq accumulation.

    p_ref:   (TM, 9C) bf16 im2col tile
    w_ref:   (9C, C)  bf16 weights (resident across the grid)
    raw_ref: (TM, C)  f32 raw conv output tile
    sum_ref: (1, C)   f32 accumulator (resident, revisited every step)
    sq_ref:  (1, C)   f32 accumulator
    """
    acc = jnp.dot(p_ref[...], w_ref[...], preferred_element_type=jnp.float32)
    raw_ref[...] = acc

    @pl.when(pl.program_id(0) == 0)
    def _():
        sum_ref[...] = jnp.zeros_like(sum_ref)
        sq_ref[...] = jnp.zeros_like(sq_ref)

    sum_ref[...] += jnp.sum(acc, axis=0, keepdims=True)
    sq_ref[...] += jnp.sum(acc * acc, axis=0, keepdims=True)


def _scale_shift_kernel(x_ref, s_ref, t_ref, o_ref):
    """Lane-dense per-channel affine (folded BatchNorm apply)."""
    o_ref[...] = x_ref[...] * s_ref[...] + t_ref[...]


def _bn_add_kernel(x_ref, s_ref, t_ref, r_ref, o_ref, *, relu):
    """Same-size upsample path: BN-apply + residual add (+ relu)."""
    v = x_ref[...] * s_ref[...] + t_ref[...] + r_ref[...]
    if relu:
        v = jnp.maximum(v, 0.0)
    o_ref[...] = v


def _lerp_bn_add_kernel(x00, x01, x10, x11, fh, fw, s, t, r_ref, o_ref, *, relu):
    """Bilinear lerp (weights rebuilt in-kernel) + BN-apply + residual (+relu).

    x00..x11: (TR, L) raw corner tiles        fh: (TR, 1)  per-row fraction
    fw, s, t: (1, L)  per-column fraction / per-channel scale & shift
    r_ref:    (TR, L) residual                o_ref: (TR, L)
    """
    fwv = fw[...]
    top = x00[...] + fwv * (x01[...] - x00[...])
    bot = x10[...] + fwv * (x11[...] - x10[...])
    up = top + fh[...] * (bot - top)
    v = up * s[...] + t[...] + r_ref[...]
    if relu:
        v = jnp.maximum(v, 0.0)
    o_ref[...] = v


# ----------------------------------------------------------------------------
# Wrappers
# ----------------------------------------------------------------------------
def conv_bn_raw(x, w, gamma, beta, *, stride, padding, dilation):
    """BasicConv, phase 1: raw conv + batch stats -> (raw NHWC, scale, shift)."""
    N, H, W, C = x.shape
    k = 3
    Ho = (H + 2 * padding - dilation * (k - 1) - 1) // stride + 1
    Wo = (W + 2 * padding - dilation * (k - 1) - 1) // stride + 1
    M = N * Ho * Wo
    K = 9 * C

    # im2col in glue, bf16, concatenated along K so the kernel does ONE matmul.
    # TODO(synk): form the 9 taps in-kernel from a halo'd input block to avoid
    # materializing the 9x im2col tensor in HBM.
    xb = jnp.pad(x.astype(jnp.bfloat16),
                 ((0, 0), (padding, padding), (padding, padding), (0, 0)))
    taps = []
    for ky in range(k):
        for kx in range(k):
            h0 = ky * dilation
            w0 = kx * dilation
            taps.append(
                xb[:, h0:h0 + (Ho - 1) * stride + 1:stride,
                   w0:w0 + (Wo - 1) * stride + 1:stride, :].reshape(M, C))
    patches = jnp.concatenate(taps, axis=1)                           # (M, 9C)
    w_mat = jnp.transpose(w, (2, 3, 1, 0)).reshape(K, C).astype(jnp.bfloat16)

    TM = _round_up(M, 16) if M <= 512 else 512
    Mp = _round_up(M, TM)
    if Mp != M:
        # zero rows contribute nothing to sum/sumsq -> stats stay exact
        patches = jnp.pad(patches, ((0, Mp - M), (0, 0)))

    raw, ssum, ssq = pl.pallas_call(
        _conv_stats_kernel,
        out_shape=(jax.ShapeDtypeStruct((Mp, C), jnp.float32),
                   jax.ShapeDtypeStruct((1, C), jnp.float32),
                   jax.ShapeDtypeStruct((1, C), jnp.float32)),
        grid=(Mp // TM,),
        in_specs=[pl.BlockSpec((TM, K), lambda i: (i, 0)),
                  pl.BlockSpec((K, C), lambda i: (0, 0))],
        out_specs=(pl.BlockSpec((TM, C), lambda i: (i, 0)),
                   pl.BlockSpec((1, C), lambda i: (0, 0)),
                   pl.BlockSpec((1, C), lambda i: (0, 0))),
        compiler_params=pltpu.CompilerParams(
            dimension_semantics=("arbitrary",),
            vmem_limit_bytes=_VMEM_LIMIT),
    )(patches, w_mat)

    # Tiny per-channel BN folding (training-mode batch stats, biased variance).
    mean = ssum[0] / float(M)
    var = jnp.maximum(ssq[0] / float(M) - mean * mean, 0.0)
    inv = lax.rsqrt(var + BN_EPS)
    scale = gamma * inv
    shift = beta - mean * scale

    raw = raw[:M].reshape(N, Ho, Wo, C)
    return raw, scale, shift


def apply_bn(raw, scale, shift):
    """BasicConv, phase 2: lane-dense per-channel affine apply."""
    N, H, W, C = raw.shape
    R, L = N * H, W * C
    x2 = raw.reshape(R, L)
    s_row = jnp.tile(scale, W).reshape(1, L)
    t_row = jnp.tile(shift, W).reshape(1, L)
    TR = _pick_row_tile(R, L)
    out = pl.pallas_call(
        _scale_shift_kernel,
        out_shape=jax.ShapeDtypeStruct((R, L), jnp.float32),
        grid=(R // TR,),
        in_specs=[pl.BlockSpec((TR, L), lambda i: (i, 0)),
                  pl.BlockSpec((1, L), lambda i: (0, 0)),
                  pl.BlockSpec((1, L), lambda i: (0, 0))],
        out_specs=pl.BlockSpec((TR, L), lambda i: (i, 0)),
        compiler_params=pltpu.CompilerParams(
            dimension_semantics=("parallel",),
            vmem_limit_bytes=_VMEM_LIMIT),
    )(x2, s_row, t_row)
    return out.reshape(N, H, W, C)


def _align_corners_grid(out_size, in_size):
    if out_size == 1:
        src = np.zeros((out_size,), np.float64)
    else:
        src = np.arange(out_size, dtype=np.float64) * (in_size - 1) / (out_size - 1)
    i0 = np.clip(np.floor(src).astype(np.int64), 0, in_size - 1)
    i1 = np.minimum(i0 + 1, in_size - 1)
    frac = (src - i0).astype(np.float32)
    return i0, i1, frac


def upsample_bn_add(raw_y, scale, shift, res, *, relu):
    """res + bilinear_align_corners(raw_y*scale+shift -> res.spatial) (+relu).

    BN is fused into the kernel (affine commutes with the convex interpolation).
    """
    N, Hi, Wi, C = raw_y.shape
    _, Ho, Wo, _ = res.shape
    R, L = N * Ho, Wo * C
    s_row = jnp.tile(scale, Wo).reshape(1, L)
    t_row = jnp.tile(shift, Wo).reshape(1, L)
    res2 = res.reshape(R, L)
    TR = _pick_row_tile(R, L)
    cp = pltpu.CompilerParams(dimension_semantics=("parallel",),
                              vmem_limit_bytes=_VMEM_LIMIT)

    if (Hi, Wi) == (Ho, Wo):
        # align_corners bilinear resize to the same size is the identity.
        raw2 = raw_y.reshape(R, L)
        out = pl.pallas_call(
            functools.partial(_bn_add_kernel, relu=relu),
            out_shape=jax.ShapeDtypeStruct((R, L), jnp.float32),
            grid=(R // TR,),
            in_specs=[pl.BlockSpec((TR, L), lambda i: (i, 0)),
                      pl.BlockSpec((1, L), lambda i: (0, 0)),
                      pl.BlockSpec((1, L), lambda i: (0, 0)),
                      pl.BlockSpec((TR, L), lambda i: (i, 0))],
            out_specs=pl.BlockSpec((TR, L), lambda i: (i, 0)),
            compiler_params=cp,
        )(raw2, s_row, t_row, res2)
        return out.reshape(res.shape)

    ih0, ih1, fh = _align_corners_grid(Ho, Hi)
    iw0, iw1, fw = _align_corners_grid(Wo, Wi)

    # Corner gathers on the RAW conv output (glue); fractions stay as tiny
    # per-row / per-column vectors -- no full-size broadcast weight tensors.
    x00 = raw_y[:, ih0][:, :, iw0].reshape(R, L)
    x01 = raw_y[:, ih0][:, :, iw1].reshape(R, L)
    x10 = raw_y[:, ih1][:, :, iw0].reshape(R, L)
    x11 = raw_y[:, ih1][:, :, iw1].reshape(R, L)
    fh_col = jnp.asarray(np.tile(fh, N).reshape(R, 1), jnp.float32)
    fw_row = jnp.asarray(np.repeat(fw, C).reshape(1, L), jnp.float32)

    big = pl.BlockSpec((TR, L), lambda i: (i, 0))
    row1 = pl.BlockSpec((1, L), lambda i: (0, 0))
    out = pl.pallas_call(
        functools.partial(_lerp_bn_add_kernel, relu=relu),
        out_shape=jax.ShapeDtypeStruct((R, L), jnp.float32),
        grid=(R // TR,),
        in_specs=[big, big, big, big,
                  pl.BlockSpec((TR, 1), lambda i: (i, 0)),
                  row1, row1, row1, big],
        out_specs=big,
        compiler_params=cp,
    )(x00, x01, x10, x11, fh_col, fw_row, s_row, t_row, res2)
    return out.reshape(res.shape)


def usrm3_forward(x_nchw, params):
    """USRM3.forward. x_nchw: (N, C, H, W) like PyTorch. Returns (N, C, H, W)."""
    x = jnp.transpose(x_nchw, (0, 2, 3, 1))  # -> NHWC

    r1, s1, t1 = conv_bn_raw(x, *params["conv1"], stride=2, padding=1, dilation=1)
    y1 = apply_bn(r1, s1, t1)
    r2, s2, t2 = conv_bn_raw(y1, *params["conv2"], stride=2, padding=1, dilation=1)
    y2 = apply_bn(r2, s2, t2)
    r3, s3, t3 = conv_bn_raw(y2, *params["conv3"], stride=1, padding=2, dilation=2)

    y2s = upsample_bn_add(r3, s3, t3, y2, relu=False)       # y2 + up(BN(conv3))
    r4, s4, t4 = conv_bn_raw(y2s, *params["conv_rev1"], stride=1, padding=1, dilation=1)

    y1s = upsample_bn_add(r4, s4, t4, y1, relu=False)       # y1 + up(BN(conv_rev1))
    r5, s5, t5 = conv_bn_raw(y1s, *params["conv_rev2"], stride=1, padding=1, dilation=1)

    xy = upsample_bn_add(r5, s5, t5, x, relu=True)          # relu(x + up(BN(conv_rev2)))
    r6, s6, t6 = conv_bn_raw(xy, *params["conv_sum"], stride=1, padding=1, dilation=1)
    out = apply_bn(r6, s6, t6)

    return jnp.transpose(out, (0, 3, 1, 2))  # back to NCHW


def init_params(key, channel):
    names = ["conv1", "conv2", "conv3", "conv_rev1", "conv_rev2", "conv_sum"]
    params = {}
    fan_in = float(channel * 3 * 3)
    for i, name in enumerate(names):
        kw, kg, kb = jax.random.split(jax.random.fold_in(key, i), 3)
        w = jax.random.normal(kw, (channel, channel, 3, 3), jnp.float32) / np.sqrt(fan_in)
        gamma = 1.0 + 0.1 * jax.random.normal(kg, (channel,), jnp.float32)
        beta = 0.1 * jax.random.normal(kb, (channel,), jnp.float32)
        params[name] = (w, gamma, beta)
    return params


if __name__ == "__main__":
    CHANNEL = 32
    N, H, W = 2, 16, 16

    key = jax.random.PRNGKey(0)
    kx, kp = jax.random.split(key)
    x = jax.random.normal(kx, (N, CHANNEL, H, W), jnp.float32)
    params = init_params(kp, CHANNEL)

    fwd = jax.jit(usrm3_forward)
    out = fwd(x, params)
    jax.block_until_ready(out)

    assert out.shape == (N, CHANNEL, H, W), out.shape
    assert jnp.all(jnp.isfinite(out))
    print("KERNEL_OK")
</pallas_src>

<mosaic_0001>
module attributes {stable_mosaic.version = 11 : i64} {
  func.func @_conv_stats_kernel(%arg0: i32, %arg1: memref<128x288xbf16, #tpu.memory_space<vmem>>, %arg2: memref<288x32xbf16, #tpu.memory_space<vmem>>, %arg3: memref<128x32xf32, #tpu.memory_space<vmem>>, %arg4: memref<1x32xf32, #tpu.memory_space<vmem>>, %arg5: memref<1x32xf32, #tpu.memory_space<vmem>>) attributes {dimension_semantics = [#tpu.dimension_semantics<arbitrary>], iteration_bounds = array<i64: 1>, scalar_prefetch = 0 : i64, scratch_operands = 0 : i64, tpu.core_type = #tpu.core_type<tc>, window_params = [{transform_indices = @transform_0, window_bounds = array<i64: 128, 288>}, {pipeline_mode = #tpu.pipeline_mode<synchronous>, transform_indices = @transform_1, window_bounds = array<i64: 288, 32>}, {transform_indices = @transform_2, window_bounds = array<i64: 128, 32>}, {pipeline_mode = #tpu.pipeline_mode<synchronous>, transform_indices = @transform_3, window_bounds = array<i64: 1, 32>}, {pipeline_mode = #tpu.pipeline_mode<synchronous>, transform_indices = @transform_4, window_bounds = array<i64: 1, 32>}]} {
    %c0 = arith.constant 0 : index
    %c0_0 = arith.constant 0 : index
    %0 = vector.load %arg1[%c0, %c0_0] : memref<128x288xbf16, #tpu.memory_space<vmem>>, vector<128x288xbf16>
    %c0_1 = arith.constant 0 : index
    %c0_2 = arith.constant 0 : index
    %1 = vector.load %arg2[%c0_1, %c0_2] : memref<288x32xbf16, #tpu.memory_space<vmem>>, vector<288x32xbf16>
    %cst = arith.constant dense<0.000000e+00> : vector<128x32xf32>
    %2 = tpu.matmul %0, %1, %cst {dimension_numbers = #tpu.dot_dimension_numbers<[1], [0], [0], [1], [0, 0, 1, 1], [], []>} : vector<128x288xbf16>, vector<288x32xbf16>, vector<128x32xf32> -> vector<128x32xf32>
    %c0_3 = arith.constant 0 : index
    %c0_4 = arith.constant 0 : index
    %3 = vector.load %arg3[%c0_3, %c0_4] : memref<128x32xf32, #tpu.memory_space<vmem>>, vector<128x32xf32>
    tpu.vector_store %arg3[%c0_3, %c0_4], %2 {strides = array<i32>} : memref<128x32xf32, #tpu.memory_space<vmem>>, vector<128x32xf32>,
    %c0_i32 = arith.constant 0 : i32
    %4 = arith.cmpi eq, %arg0, %c0_i32 : i32
    %5 = arith.extui %4 : i1 to i32
    %c0_i32_5 = arith.constant 0 : i32
    %6 = arith.cmpi ne, %5, %c0_i32_5 : i32
    scf.if %6 {
      %cst_16 = arith.constant 0.000000e+00 : f32
      %18 = vector.broadcast %cst_16 : f32 to vector<1x32xf32>
      %c0_17 = arith.constant 0 : index
      %c0_18 = arith.constant 0 : index
      %19 = vector.load %arg4[%c0_17, %c0_18] : memref<1x32xf32, #tpu.memory_space<vmem>>, vector<1x32xf32>
      tpu.vector_store %arg4[%c0_17, %c0_18], %18 {strides = array<i32>} : memref<1x32xf32, #tpu.memory_space<vmem>>, vector<1x32xf32>,
      %cst_19 = arith.constant 0.000000e+00 : f32
      %20 = vector.broadcast %cst_19 : f32 to vector<1x32xf32>
      %c0_20 = arith.constant 0 : index
      %c0_21 = arith.constant 0 : index
      %21 = vector.load %arg5[%c0_20, %c0_21] : memref<1x32xf32, #tpu.memory_space<vmem>>, vector<1x32xf32>
      tpu.vector_store %arg5[%c0_20, %c0_21], %20 {strides = array<i32>} : memref<1x32xf32, #tpu.memory_space<vmem>>, vector<1x32xf32>,
    } else {
    }
    %c0_6 = arith.constant 0 : index
    %c0_7 = arith.constant 0 : index
    %7 = vector.load %arg4[%c0_6, %c0_7] : memref<1x32xf32, #tpu.memory_space<vmem>>, vector<1x32xf32>
    %cst_8 = arith.constant dense<0.000000e+00> : vector<32xf32>
    %8 = vector.multi_reduction <add>, %2, %cst_8 [0] : vector<128x32xf32> to vector<32xf32>
    %9 = vector.shape_cast %8 : vector<32xf32> to vector<1x32xf32>
    %10 = arith.addf %7, %9 : vector<1x32xf32>
    %c0_9 = arith.constant 0 : index
    %c0_10 = arith.constant 0 : index
    %11 = vector.load %arg4[%c0_9, %c0_10] : memref<1x32xf32, #tpu.memory_space<vmem>>, vector<1x32xf32>
    tpu.vector_store %arg4[%c0_9, %c0_10], %10 {strides = array<i32>} : memref<1x32xf32, #tpu.memory_space<vmem>>, vector<1x32xf32>,
    %c0_11 = arith.constant 0 : index
    %c0_12 = arith.constant 0 : index
    %12 = vector.load %arg5[%c0_11, %c0_12] : memref<1x32xf32, #tpu.memory_space<vmem>>, vector<1x32xf32>
    %13 = arith.mulf %2, %2 : vector<128x32xf32>
    %cst_13 = arith.constant dense<0.000000e+00> : vector<32xf32>
    %14 = vector.multi_reduction <add>, %13, %cst_13 [0] : vector<128x32xf32> to vector<32xf32>
    %15 = vector.shape_cast %14 : vector<32xf32> to vector<1x32xf32>
    %16 = arith.addf %12, %15 : vector<1x32xf32>
    %c0_14 = arith.constant 0 : index
    %c0_15 = arith.constant 0 : index
    %17 = vector.load %arg5[%c0_14, %c0_15] : memref<1x32xf32, #tpu.memory_space<vmem>>, vector<1x32xf32>
    tpu.vector_store %arg5[%c0_14, %c0_15], %16 {strides = array<i32>} : memref<1x32xf32, #tpu.memory_space<vmem>>, vector<1x32xf32>,
    return
  }
  func.func @transform_0(%arg0: i32) -> (i32, i32) {
    %c0_i32 = arith.constant 0 : i32
    %c0_i32_0 = arith.constant 0 : i32
    return %arg0, %c0_i32 : i32, i32
  }
  func.func @transform_1(%arg0: i32) -> (i32, i32) {
    %c0_i32 = arith.constant 0 : i32
    %c0_i32_0 = arith.constant 0 : i32
    %c0_i32_1 = arith.constant 0 : i32
    return %c0_i32, %c0_i32_0 : i32, i32
  }
  func.func @transform_2(%arg0: i32) -> (i32, i32) {
    %c0_i32 = arith.constant 0 : i32
    %c0_i32_0 = arith.constant 0 : i32
    return %arg0, %c0_i32 : i32, i32
  }
  func.func @transform_3(%arg0: i32) -> (i32, i32) {
    %c0_i32 = arith.constant 0 : i32
    %c0_i32_0 = arith.constant 0 : i32
    %c0_i32_1 = arith.constant 0 : i32
    return %c0_i32, %c0_i32_0 : i32, i32
  }
  func.func @transform_4(%arg0: i32) -> (i32, i32) {
    %c0_i32 = arith.constant 0 : i32
    %c0_i32_0 = arith.constant 0 : i32
    %c0_i32_1 = arith.constant 0 : i32
    return %c0_i32, %c0_i32_0 : i32, i32
  }
}

module attributes {stable_mosaic.version = 11 : i64} {
  func.func @_scale_shift_kernel(%arg0: i32, %arg1: memref<16x256xf32, #tpu.memory_space<vmem>>, %arg2: memref<1x256xf32, #tpu.memory_space<vmem>>, %arg3: memref<1x256xf32, #tpu.memory_space<vmem>>, %arg4: memref<16x256xf32, #tpu.memory_space<vmem>>) attributes {dimension_semantics = [#tpu.dimension_semantics<parallel>], iteration_bounds = array<i64: 1>, scalar_prefetch = 0 : i64, scratch_operands = 0 : i64, tpu.core_type = #tpu.core_type<tc>, window_params = [{transform_indices = @transform_0, window_bounds = array<i64: 16, 256>}, {pipeline_mode = #tpu.pipeline_mode<synchronous>, transform_indices = @transform_1, window_bounds = array<i64: 1, 256>}, {pipeline_mode = #tpu.pipeline_mode<synchronous>, transform_indices = @transform_2, window_bounds = array<i64: 1, 256>}, {transform_indices = @transform_3, window_bounds = array<i64: 16, 256>}]} {
    %c0 = arith.constant 0 : index
    %c0_0 = arith.constant 0 : index
    %0 = vector.load %arg1[%c0, %c0_0] : memref<16x256xf32, #tpu.memory_space<vmem>>, vector<16x256xf32>
    %c0_1 = arith.constant 0 : index
    %c0_2 = arith.constant 0 : index
    %1 = vector.load %arg2[%c0_1, %c0_2] : memref<1x256xf32, #tpu.memory_space<vmem>>, vector<1x256xf32>
    %2 = vector.broadcast %1 : vector<1x256xf32> to vector<16x256xf32>
    %3 = arith.mulf %0, %2 : vector<16x256xf32>
    %c0_3 = arith.constant 0 : index
    %c0_4 = arith.constant 0 : index
    %4 = vector.load %arg3[%c0_3, %c0_4] : memref<1x256xf32, #tpu.memory_space<vmem>>, vector<1x256xf32>
    %5 = vector.broadcast %4 : vector<1x256xf32> to vector<16x256xf32>
    %6 = arith.addf %3, %5 : vector<16x256xf32>
    %c0_5 = arith.constant 0 : index
    %c0_6 = arith.constant 0 : index
    %7 = vector.load %arg4[%c0_5, %c0_6] : memref<16x256xf32, #tpu.memory_space<vmem>>, vector<16x256xf32>
    tpu.vector_store %arg4[%c0_5, %c0_6], %6 {strides = array<i32>} : memref<16x256xf32, #tpu.memory_space<vmem>>, vector<16x256xf32>,
    return
  }
  func.func @transform_0(%arg0: i32) -> (i32, i32) {
    %c0_i32 = arith.constant 0 : i32
    %c0_i32_0 = arith.constant 0 : i32
    return %arg0, %c0_i32 : i32, i32
  }
  func.func @transform_1(%arg0: i32) -> (i32, i32) {
    %c0_i32 = arith.constant 0 : i32
    %c0_i32_0 = arith.constant 0 : i32
    %c0_i32_1 = arith.constant 0 : i32
    return %c0_i32, %c0_i32_0 : i32, i32
  }
  func.func @transform_2(%arg0: i32) -> (i32, i32) {
    %c0_i32 = arith.constant 0 : i32
    %c0_i32_0 = arith.constant 0 : i32
    %c0_i32_1 = arith.constant 0 : i32
    return %c0_i32, %c0_i32_0 : i32, i32
  }
  func.func @transform_3(%arg0: i32) -> (i32, i32) {
    %c0_i32 = arith.constant 0 : i32
    %c0_i32_0 = arith.constant 0 : i32
    return %arg0, %c0_i32 : i32, i32
  }
}

module attributes {stable_mosaic.version = 11 : i64} {
  func.func @_conv_stats_kernel(%arg0: i32, %arg1: memref<32x288xbf16, #tpu.memory_space<vmem>>, %arg2: memref<288x32xbf16, #tpu.memory_space<vmem>>, %arg3: memref<32x32xf32, #tpu.memory_space<vmem>>, %arg4: memref<1x32xf32, #tpu.memory_space<vmem>>, %arg5: memref<1x32xf32, #tpu.memory_space<vmem>>) attributes {dimension_semantics = [#tpu.dimension_semantics<arbitrary>], iteration_bounds = array<i64: 1>, scalar_prefetch = 0 : i64, scratch_operands = 0 : i64, tpu.core_type = #tpu.core_type<tc>, window_params = [{transform_indices = @transform_0, window_bounds = array<i64: 32, 288>}, {pipeline_mode = #tpu.pipeline_mode<synchronous>, transform_indices = @transform_1, window_bounds = array<i64: 288, 32>}, {transform_indices = @transform_2, window_bounds = array<i64: 32, 32>}, {pipeline_mode = #tpu.pipeline_mode<synchronous>, transform_indices = @transform_3, window_bounds = array<i64: 1, 32>}, {pipeline_mode = #tpu.pipeline_mode<synchronous>, transform_indices = @transform_4, window_bounds = array<i64: 1, 32>}]} {
    %c0 = arith.constant 0 : index
    %c0_0 = arith.constant 0 : index
    %0 = vector.load %arg1[%c0, %c0_0] : memref<32x288xbf16, #tpu.memory_space<vmem>>, vector<32x288xbf16>
    %c0_1 = arith.constant 0 : index
    %c0_2 = arith.constant 0 : index
    %1 = vector.load %arg2[%c0_1, %c0_2] : memref<288x32xbf16, #tpu.memory_space<vmem>>, vector<288x32xbf16>
    %cst = arith.constant dense<0.000000e+00> : vector<32x32xf32>
    %2 = tpu.matmul %0, %1, %cst {dimension_numbers = #tpu.dot_dimension_numbers<[1], [0], [0], [1], [0, 0, 1, 1], [], []>} : vector<32x288xbf16>, vector<288x32xbf16>, vector<32x32xf32> -> vector<32x32xf32>
    %c0_3 = arith.constant 0 : index
    %c0_4 = arith.constant 0 : index
    %3 = vector.load %arg3[%c0_3, %c0_4] : memref<32x32xf32, #tpu.memory_space<vmem>>, vector<32x32xf32>
    tpu.vector_store %arg3[%c0_3, %c0_4], %2 {strides = array<i32>} : memref<32x32xf32, #tpu.memory_space<vmem>>, vector<32x32xf32>,
    %c0_i32 = arith.constant 0 : i32
    %4 = arith.cmpi eq, %arg0, %c0_i32 : i32
    %5 = arith.extui %4 : i1 to i32
    %c0_i32_5 = arith.constant 0 : i32
    %6 = arith.cmpi ne, %5, %c0_i32_5 : i32
    scf.if %6 {
      %cst_16 = arith.constant 0.000000e+00 : f32
      %18 = vector.broadcast %cst_16 : f32 to vector<1x32xf32>
      %c0_17 = arith.constant 0 : index
      %c0_18 = arith.constant 0 : index
      %19 = vector.load %arg4[%c0_17, %c0_18] : memref<1x32xf32, #tpu.memory_space<vmem>>, vector<1x32xf32>
      tpu.vector_store %arg4[%c0_17, %c0_18], %18 {strides = array<i32>} : memref<1x32xf32, #tpu.memory_space<vmem>>, vector<1x32xf32>,
      %cst_19 = arith.constant 0.000000e+00 : f32
      %20 = vector.broadcast %cst_19 : f32 to vector<1x32xf32>
      %c0_20 = arith.constant 0 : index
      %c0_21 = arith.constant 0 : index
      %21 = vector.load %arg5[%c0_20, %c0_21] : memref<1x32xf32, #tpu.memory_space<vmem>>, vector<1x32xf32>
      tpu.vector_store %arg5[%c0_20, %c0_21], %20 {strides = array<i32>} : memref<1x32xf32, #tpu.memory_space<vmem>>, vector<1x32xf32>,
    } else {
    }
    %c0_6 = arith.constant 0 : index
    %c0_7 = arith.constant 0 : index
    %7 = vector.load %arg4[%c0_6, %c0_7] : memref<1x32xf32, #tpu.memory_space<vmem>>, vector<1x32xf32>
    %cst_8 = arith.constant dense<0.000000e+00> : vector<32xf32>
    %8 = vector.multi_reduction <add>, %2, %cst_8 [0] : vector<32x32xf32> to vector<32xf32>
    %9 = vector.shape_cast %8 : vector<32xf32> to vector<1x32xf32>
    %10 = arith.addf %7, %9 : vector<1x32xf32>
    %c0_9 = arith.constant 0 : index
    %c0_10 = arith.constant 0 : index
    %11 = vector.load %arg4[%c0_9, %c0_10] : memref<1x32xf32, #tpu.memory_space<vmem>>, vector<1x32xf32>
    tpu.vector_store %arg4[%c0_9, %c0_10], %10 {strides = array<i32>} : memref<1x32xf32, #tpu.memory_space<vmem>>, vector<1x32xf32>,
    %c0_11 = arith.constant 0 : index
    %c0_12 = arith.constant 0 : index
    %12 = vector.load %arg5[%c0_11, %c0_12] : memref<1x32xf32, #tpu.memory_space<vmem>>, vector<1x32xf32>
    %13 = arith.mulf %2, %2 : vector<32x32xf32>
    %cst_13 = arith.constant dense<0.000000e+00> : vector<32xf32>
    %14 = vector.multi_reduction <add>, %13, %cst_13 [0] : vector<32x32xf32> to vector<32xf32>
    %15 = vector.shape_cast %14 : vector<32xf32> to vector<1x32xf32>
    %16 = arith.addf %12, %15 : vector<1x32xf32>
    %c0_14 = arith.constant 0 : index
    %c0_15 = arith.constant 0 : index
    %17 = vector.load %arg5[%c0_14, %c0_15] : memref<1x32xf32, #tpu.memory_space<vmem>>, vector<1x32xf32>
    tpu.vector_store %arg5[%c0_14, %c0_15], %16 {strides = array<i32>} : memref<1x32xf32, #tpu.memory_space<vmem>>, vector<1x32xf32>,
    return
  }
  func.func @transform_0(%arg0: i32) -> (i32, i32) {
    %c0_i32 = arith.constant 0 : i32
    %c0_i32_0 = arith.constant 0 : i32
    return %arg0, %c0_i32 : i32, i32
  }
  func.func @transform_1(%arg0: i32) -> (i32, i32) {
    %c0_i32 = arith.constant 0 : i32
    %c0_i32_0 = arith.constant 0 : i32
    %c0_i32_1 = arith.constant 0 : i32
    return %c0_i32, %c0_i32_0 : i32, i32
  }
  func.func @transform_2(%arg0: i32) -> (i32, i32) {
    %c0_i32 = arith.constant 0 : i32
    %c0_i32_0 = arith.constant 0 : i32
    return %arg0, %c0_i32 : i32, i32
  }
  func.func @transform_3(%arg0: i32) -> (i32, i32) {
    %c0_i32 = arith.constant 0 : i32
    %c0_i32_0 = arith.constant 0 : i32
    %c0_i32_1 = arith.constant 0 : i32
    return %c0_i32, %c0_i32_0 : i32, i32
  }
  func.func @transform_4(%arg0: i32) -> (i32, i32) {
    %c0_i32 = arith.constant 0 : i32
    %c0_i32_0 = arith.constant 0 : i32
    %c0_i32_1 = arith.constant 0 : i32
    return %c0_i32, %c0_i32_0 : i32, i32
  }
}

module attributes {stable_mosaic.version = 11 : i64} {
  func.func @_bn_add_kernel(%arg0: i32, %arg1: memref<8x128xf32, #tpu.memory_space<vmem>>, %arg2: memref<1x128xf32, #tpu.memory_space<vmem>>, %arg3: memref<1x128xf32, #tpu.memory_space<vmem>>, %arg4: memref<8x128xf32, #tpu.memory_space<vmem>>, %arg5: memref<8x128xf32, #tpu.memory_space<vmem>>) attributes {dimension_semantics = [#tpu.dimension_semantics<parallel>], iteration_bounds = array<i64: 1>, scalar_prefetch = 0 : i64, scratch_operands = 0 : i64, tpu.core_type = #tpu.core_type<tc>, window_params = [{transform_indices = @transform_0, window_bounds = array<i64: 8, 128>}, {pipeline_mode = #tpu.pipeline_mode<synchronous>, transform_indices = @transform_1, window_bounds = array<i64: 1, 128>}, {pipeline_mode = #tpu.pipeline_mode<synchronous>, transform_indices = @transform_2, window_bounds = array<i64: 1, 128>}, {transform_indices = @transform_3, window_bounds = array<i64: 8, 128>}, {transform_indices = @transform_4, window_bounds = array<i64: 8, 128>}]} {
    %c0 = arith.constant 0 : index
    %c0_0 = arith.constant 0 : index
    %0 = vector.load %arg1[%c0, %c0_0] : memref<8x128xf32, #tpu.memory_space<vmem>>, vector<8x128xf32>
    %c0_1 = arith.constant 0 : index
    %c0_2 = arith.constant 0 : index
    %1 = vector.load %arg2[%c0_1, %c0_2] : memref<1x128xf32, #tpu.memory_space<vmem>>, vector<1x128xf32>
    %2 = vector.broadcast %1 : vector<1x128xf32> to vector<8x128xf32>
    %3 = arith.mulf %0, %2 : vector<8x128xf32>
    %c0_3 = arith.constant 0 : index
    %c0_4 = arith.constant 0 : index
    %4 = vector.load %arg3[%c0_3, %c0_4] : memref<1x128xf32, #tpu.memory_space<vmem>>, vector<1x128xf32>
    %5 = vector.broadcast %4 : vector<1x128xf32> to vector<8x128xf32>
    %6 = arith.addf %3, %5 : vector<8x128xf32>
    %c0_5 = arith.constant 0 : index
    %c0_6 = arith.constant 0 : index
    %7 = vector.load %arg4[%c0_5, %c0_6] : memref<8x128xf32, #tpu.memory_space<vmem>>, vector<8x128xf32>
    %8 = arith.addf %6, %7 : vector<8x128xf32>
    %c0_7 = arith.constant 0 : index
    %c0_8 = arith.constant 0 : index
    %9 = vector.load %arg5[%c0_7, %c0_8] : memref<8x128xf32, #tpu.memory_space<vmem>>, vector<8x128xf32>
    tpu.vector_store %arg5[%c0_7, %c0_8], %8 {strides = array<i32>} : memref<8x128xf32, #tpu.memory_space<vmem>>, vector<8x128xf32>,
    return
  }
  func.func @transform_0(%arg0: i32) -> (i32, i32) {
    %c0_i32 = arith.constant 0 : i32
    %c0_i32_0 = arith.constant 0 : i32
    return %arg0, %c0_i32 : i32, i32
  }
  func.func @transform_1(%arg0: i32) -> (i32, i32) {
    %c0_i32 = arith.constant 0 : i32
    %c0_i32_0 = arith.constant 0 : i32
    %c0_i32_1 = arith.constant 0 : i32
    return %c0_i32, %c0_i32_0 : i32, i32
  }
  func.func @transform_2(%arg0: i32) -> (i32, i32) {
    %c0_i32 = arith.constant 0 : i32
    %c0_i32_0 = arith.constant 0 : i32
    %c0_i32_1 = arith.constant 0 : i32
    return %c0_i32, %c0_i32_0 : i32, i32
  }
  func.func @transform_3(%arg0: i32) -> (i32, i32) {
    %c0_i32 = arith.constant 0 : i32
    %c0_i32_0 = arith.constant 0 : i32
    return %arg0, %c0_i32 : i32, i32
  }
  func.func @transform_4(%arg0: i32) -> (i32, i32) {
    %c0_i32 = arith.constant 0 : i32
    %c0_i32_0 = arith.constant 0 : i32
    return %arg0, %c0_i32 : i32, i32
  }
}

module attributes {stable_mosaic.version = 11 : i64} {
  func.func @_scale_shift_kernel(%arg0: i32, %arg1: memref<8x128xf32, #tpu.memory_space<vmem>>, %arg2: memref<1x128xf32, #tpu.memory_space<vmem>>, %arg3: memref<1x128xf32, #tpu.memory_space<vmem>>, %arg4: memref<8x128xf32, #tpu.memory_space<vmem>>) attributes {dimension_semantics = [#tpu.dimension_semantics<parallel>], iteration_bounds = array<i64: 1>, scalar_prefetch = 0 : i64, scratch_operands = 0 : i64, tpu.core_type = #tpu.core_type<tc>, window_params = [{transform_indices = @transform_0, window_bounds = array<i64: 8, 128>}, {pipeline_mode = #tpu.pipeline_mode<synchronous>, transform_indices = @transform_1, window_bounds = array<i64: 1, 128>}, {pipeline_mode = #tpu.pipeline_mode<synchronous>, transform_indices = @transform_2, window_bounds = array<i64: 1, 128>}, {transform_indices = @transform_3, window_bounds = array<i64: 8, 128>}]} {
    %c0 = arith.constant 0 : index
    %c0_0 = arith.constant 0 : index
    %0 = vector.load %arg1[%c0, %c0_0] : memref<8x128xf32, #tpu.memory_space<vmem>>, vector<8x128xf32>
    %c0_1 = arith.constant 0 : index
    %c0_2 = arith.constant 0 : index
    %1 = vector.load %arg2[%c0_1, %c0_2] : memref<1x128xf32, #tpu.memory_space<vmem>>, vector<1x128xf32>
    %2 = vector.broadcast %1 : vector<1x128xf32> to vector<8x128xf32>
    %3 = arith.mulf %0, %2 : vector<8x128xf32>
    %c0_3 = arith.constant 0 : index
    %c0_4 = arith.constant 0 : index
    %4 = vector.load %arg3[%c0_3, %c0_4] : memref<1x128xf32, #tpu.memory_space<vmem>>, vector<1x128xf32>
    %5 = vector.broadcast %4 : vector<1x128xf32> to vector<8x128xf32>
    %6 = arith.addf %3, %5 : vector<8x128xf32>
    %c0_5 = arith.constant 0 : index
    %c0_6 = arith.constant 0 : index
    %7 = vector.load %arg4[%c0_5, %c0_6] : memref<8x128xf32, #tpu.memory_space<vmem>>, vector<8x128xf32>
    tpu.vector_store %arg4[%c0_5, %c0_6], %6 {strides = array<i32>} : memref<8x128xf32, #tpu.memory_space<vmem>>, vector<8x128xf32>,
    return
  }
  func.func @transform_0(%arg0: i32) -> (i32, i32) {
    %c0_i32 = arith.constant 0 : i32
    %c0_i32_0 = arith.constant 0 : i32
    return %arg0, %c0_i32 : i32, i32
  }
  func.func @transform_1(%arg0: i32) -> (i32, i32) {
    %c0_i32 = arith.constant 0 : i32
    %c0_i32_0 = arith.constant 0 : i32
    %c0_i32_1 = arith.constant 0 : i32
    return %c0_i32, %c0_i32_0 : i32, i32
  }
  func.func @transform_2(%arg0: i32) -> (i32, i32) {
    %c0_i32 = arith.constant 0 : i32
    %c0_i32_0 = arith.constant 0 : i32
    %c0_i32_1 = arith.constant 0 : i32
    return %c0_i32, %c0_i32_0 : i32, i32
  }
  func.func @transform_3(%arg0: i32) -> (i32, i32) {
    %c0_i32 = arith.constant 0 : i32
    %c0_i32_0 = arith.constant 0 : i32
    return %arg0, %c0_i32 : i32, i32
  }
}

module attributes {stable_mosaic.version = 11 : i64} {
  func.func @_lerp_bn_add_kernel(%arg0: i32, %arg1: memref<16x256xf32, #tpu.memory_space<vmem>>, %arg2: memref<16x256xf32, #tpu.memory_space<vmem>>, %arg3: memref<16x256xf32, #tpu.memory_space<vmem>>, %arg4: memref<16x256xf32, #tpu.memory_space<vmem>>, %arg5: memref<16x1xf32, #tpu.memory_space<vmem>>, %arg6: memref<1x256xf32, #tpu.memory_space<vmem>>, %arg7: memref<1x256xf32, #tpu.memory_space<vmem>>, %arg8: memref<1x256xf32, #tpu.memory_space<vmem>>, %arg9: memref<16x256xf32, #tpu.memory_space<vmem>>, %arg10: memref<16x256xf32, #tpu.memory_space<vmem>>) attributes {dimension_semantics = [#tpu.dimension_semantics<parallel>], iteration_bounds = array<i64: 1>, scalar_prefetch = 0 : i64, scratch_operands = 0 : i64, tpu.core_type = #tpu.core_type<tc>, window_params = [{transform_indices = @transform_0, window_bounds = array<i64: 16, 256>}, {transform_indices = @transform_1, window_bounds = array<i64: 16, 256>}, {transform_indices = @transform_2, window_bounds = array<i64: 16, 256>}, {transform_indices = @transform_3, window_bounds = array<i64: 16, 256>}, {transform_indices = @transform_4, window_bounds = array<i64: 16, 1>}, {pipeline_mode = #tpu.pipeline_mode<synchronous>, transform_indices = @transform_5, window_bounds = array<i64: 1, 256>}, {pipeline_mode = #tpu.pipeline_mode<synchronous>, transform_indices = @transform_6, window_bounds = array<i64: 1, 256>}, {pipeline_mode = #tpu.pipeline_mode<synchronous>, transform_indices = @transform_7, window_bounds = array<i64: 1, 256>}, {transform_indices = @transform_8, window_bounds = array<i64: 16, 256>}, {transform_indices = @transform_9, window_bounds = array<i64: 16, 256>}]} {
    %c0 = arith.constant 0 : index
    %c0_0 = arith.constant 0 : index
    %0 = vector.load %arg6[%c0, %c0_0] : memref<1x256xf32, #tpu.memory_space<vmem>>, vector<1x256xf32>
    %c0_1 = arith.constant 0 : index
    %c0_2 = arith.constant 0 : index
    %1 = vector.load %arg1[%c0_1, %c0_2] : memref<16x256xf32, #tpu.memory_space<vmem>>, vector<16x256xf32>
    %c0_3 = arith.constant 0 : index
    %c0_4 = arith.constant 0 : index
    %2 = vector.load %arg2[%c0_3, %c0_4] : memref<16x256xf32, #tpu.memory_space<vmem>>, vector<16x256xf32>
    %c0_5 = arith.constant 0 : index
    %c0_6 = arith.constant 0 : index
    %3 = vector.load %arg1[%c0_5, %c0_6] : memref<16x256xf32, #tpu.memory_space<vmem>>, vector<16x256xf32>
    %4 = arith.subf %2, %3 : vector<16x256xf32>
    %5 = vector.broadcast %0 : vector<1x256xf32> to vector<16x256xf32>
    %6 = arith.mulf %5, %4 : vector<16x256xf32>
    %7 = arith.addf %1, %6 : vector<16x256xf32>
    %c0_7 = arith.constant 0 : index
    %c0_8 = arith.constant 0 : index
    %8 = vector.load %arg3[%c0_7, %c0_8] : memref<16x256xf32, #tpu.memory_space<vmem>>, vector<16x256xf32>
    %c0_9 = arith.constant 0 : index
    %c0_10 = arith.constant 0 : index
    %9 = vector.load %arg4[%c0_9, %c0_10] : memref<16x256xf32, #tpu.memory_space<vmem>>, vector<16x256xf32>
    %c0_11 = arith.constant 0 : index
    %c0_12 = arith.constant 0 : index
    %10 = vector.load %arg3[%c0_11, %c0_12] : memref<16x256xf32, #tpu.memory_space<vmem>>, vector<16x256xf32>
    %11 = arith.subf %9, %10 : vector<16x256xf32>
    %12 = vector.broadcast %0 : vector<1x256xf32> to vector<16x256xf32>
    %13 = arith.mulf %12, %11 : vector<16x256xf32>
    %14 = arith.addf %8, %13 : vector<16x256xf32>
    %c0_13 = arith.constant 0 : index
    %c0_14 = arith.constant 0 : index
    %15 = vector.load %arg5[%c0_13, %c0_14] : memref<16x1xf32, #tpu.memory_space<vmem>>, vector<16x1xf32>
    %16 = arith.subf %14, %7 : vector<16x256xf32>
    %17 = vector.broadcast %15 : vector<16x1xf32> to vector<16x256xf32>
    %18 = arith.mulf %17, %16 : vector<16x256xf32>
    %19 = arith.addf %7, %18 : vector<16x256xf32>
    %c0_15 = arith.constant 0 : index
    %c0_16 = arith.constant 0 : index
    %20 = vector.load %arg7[%c0_15, %c0_16] : memref<1x256xf32, #tpu.memory_space<vmem>>, vector<1x256xf32>
    %21 = vector.broadcast %20 : vector<1x256xf32> to vector<16x256xf32>
    %22 = arith.mulf %19, %21 : vector<16x256xf32>
    %c0_17 = arith.constant 0 : index
    %c0_18 = arith.constant 0 : index
    %23 = vector.load %arg8[%c0_17, %c0_18] : memref<1x256xf32, #tpu.memory_space<vmem>>, vector<1x256xf32>
    %24 = vector.broadcast %23 : vector<1x256xf32> to vector<16x256xf32>
    %25 = arith.addf %22, %24 : vector<16x256xf32>
    %c0_19 = arith.constant 0 : index
    %c0_20 = arith.constant 0 : index
    %26 = vector.load %arg9[%c0_19, %c0_20] : memref<16x256xf32, #tpu.memory_space<vmem>>, vector<16x256xf32>
    %27 = arith.addf %25, %26 : vector<16x256xf32>
    %c0_21 = arith.constant 0 : index
    %c0_22 = arith.constant 0 : index
    %28 = vector.load %arg10[%c0_21, %c0_22] : memref<16x256xf32, #tpu.memory_space<vmem>>, vector<16x256xf32>
    tpu.vector_store %arg10[%c0_21, %c0_22], %27 {strides = array<i32>} : memref<16x256xf32, #tpu.memory_space<vmem>>, vector<16x256xf32>,
    return
  }
  func.func @transform_0(%arg0: i32) -> (i32, i32) {
    %c0_i32 = arith.constant 0 : i32
    %c0_i32_0 = arith.constant 0 : i32
    return %arg0, %c0_i32 : i32, i32
  }
  func.func @transform_1(%arg0: i32) -> (i32, i32) {
    %c0_i32 = arith.constant 0 : i32
    %c0_i32_0 = arith.constant 0 : i32
    return %arg0, %c0_i32 : i32, i32
  }
  func.func @transform_2(%arg0: i32) -> (i32, i32) {
    %c0_i32 = arith.constant 0 : i32
    %c0_i32_0 = arith.constant 0 : i32
    return %arg0, %c0_i32 : i32, i32
  }
  func.func @transform_3(%arg0: i32) -> (i32, i32) {
    %c0_i32 = arith.constant 0 : i32
    %c0_i32_0 = arith.constant 0 : i32
    return %arg0, %c0_i32 : i32, i32
  }
  func.func @transform_4(%arg0: i32) -> (i32, i32) {
    %c0_i32 = arith.constant 0 : i32
    %c0_i32_0 = arith.constant 0 : i32
    return %arg0, %c0_i32 : i32, i32
  }
  func.func @transform_5(%arg0: i32) -> (i32, i32) {
    %c0_i32 = arith.constant 0 : i32
    %c0_i32_0 = arith.constant 0 : i32
    %c0_i32_1 = arith.constant 0 : i32
    return %c0_i32, %c0_i32_0 : i32, i32
  }
  func.func @transform_6(%arg0: i32) -> (i32, i32) {
    %c0_i32 = arith.constant 0 : i32
    %c0_i32_0 = arith.constant 0 : i32
    %c0_i32_1 = arith.constant 0 : i32
    return %c0_i32, %c0_i32_0 : i32, i32
  }
  func.func @transform_7(%arg0: i32) -> (i32, i32) {
    %c0_i32 = arith.constant 0 : i32
    %c0_i32_0 = arith.constant 0 : i32
    %c0_i32_1 = arith.constant 0 : i32
    return %c0_i32, %c0_i32_0 : i32, i32
  }
  func.func @transform_8(%arg0: i32) -> (i32, i32) {
    %c0_i32 = arith.constant 0 : i32
    %c0_i32_0 = arith.constant 0 : i32
    return %arg0, %c0_i32 : i32, i32
  }
  func.func @transform_9(%arg0: i32) -> (i32, i32) {
    %c0_i32 = arith.constant 0 : i32
    %c0_i32_0 = arith.constant 0 : i32
    return %arg0, %c0_i32 : i32, i32
  }
}

module attributes {stable_mosaic.version = 11 : i64} {
  func.func @_lerp_bn_add_kernel(%arg0: i32, %arg1: memref<32x512xf32, #tpu.memory_space<vmem>>, %arg2: memref<32x512xf32, #tpu.memory_space<vmem>>, %arg3: memref<32x512xf32, #tpu.memory_space<vmem>>, %arg4: memref<32x512xf32, #tpu.memory_space<vmem>>, %arg5: memref<32x1xf32, #tpu.memory_space<vmem>>, %arg6: memref<1x512xf32, #tpu.memory_space<vmem>>, %arg7: memref<1x512xf32, #tpu.memory_space<vmem>>, %arg8: memref<1x512xf32, #tpu.memory_space<vmem>>, %arg9: memref<32x512xf32, #tpu.memory_space<vmem>>, %arg10: memref<32x512xf32, #tpu.memory_space<vmem>>) attributes {dimension_semantics = [#tpu.dimension_semantics<parallel>], iteration_bounds = array<i64: 1>, scalar_prefetch = 0 : i64, scratch_operands = 0 : i64, tpu.core_type = #tpu.core_type<tc>, window_params = [{transform_indices = @transform_0, window_bounds = array<i64: 32, 512>}, {transform_indices = @transform_1, window_bounds = array<i64: 32, 512>}, {transform_indices = @transform_2, window_bounds = array<i64: 32, 512>}, {transform_indices = @transform_3, window_bounds = array<i64: 32, 512>}, {transform_indices = @transform_4, window_bounds = array<i64: 32, 1>}, {pipeline_mode = #tpu.pipeline_mode<synchronous>, transform_indices = @transform_5, window_bounds = array<i64: 1, 512>}, {pipeline_mode = #tpu.pipeline_mode<synchronous>, transform_indices = @transform_6, window_bounds = array<i64: 1, 512>}, {pipeline_mode = #tpu.pipeline_mode<synchronous>, transform_indices = @transform_7, window_bounds = array<i64: 1, 512>}, {transform_indices = @transform_8, window_bounds = array<i64: 32, 512>}, {transform_indices = @transform_9, window_bounds = array<i64: 32, 512>}]} {
    %c0 = arith.constant 0 : index
    %c0_0 = arith.constant 0 : index
    %0 = vector.load %arg6[%c0, %c0_0] : memref<1x512xf32, #tpu.memory_space<vmem>>, vector<1x512xf32>
    %c0_1 = arith.constant 0 : index
    %c0_2 = arith.constant 0 : index
    %1 = vector.load %arg1[%c0_1, %c0_2] : memref<32x512xf32, #tpu.memory_space<vmem>>, vector<32x512xf32>
    %c0_3 = arith.constant 0 : index
    %c0_4 = arith.constant 0 : index
    %2 = vector.load %arg2[%c0_3, %c0_4] : memref<32x512xf32, #tpu.memory_space<vmem>>, vector<32x512xf32>
    %c0_5 = arith.constant 0 : index
    %c0_6 = arith.constant 0 : index
    %3 = vector.load %arg1[%c0_5, %c0_6] : memref<32x512xf32, #tpu.memory_space<vmem>>, vector<32x512xf32>
    %4 = arith.subf %2, %3 : vector<32x512xf32>
    %5 = vector.broadcast %0 : vector<1x512xf32> to vector<32x512xf32>
    %6 = arith.mulf %5, %4 : vector<32x512xf32>
    %7 = arith.addf %1, %6 : vector<32x512xf32>
    %c0_7 = arith.constant 0 : index
    %c0_8 = arith.constant 0 : index
    %8 = vector.load %arg3[%c0_7, %c0_8] : memref<32x512xf32, #tpu.memory_space<vmem>>, vector<32x512xf32>
    %c0_9 = arith.constant 0 : index
    %c0_10 = arith.constant 0 : index
    %9 = vector.load %arg4[%c0_9, %c0_10] : memref<32x512xf32, #tpu.memory_space<vmem>>, vector<32x512xf32>
    %c0_11 = arith.constant 0 : index
    %c0_12 = arith.constant 0 : index
    %10 = vector.load %arg3[%c0_11, %c0_12] : memref<32x512xf32, #tpu.memory_space<vmem>>, vector<32x512xf32>
    %11 = arith.subf %9, %10 : vector<32x512xf32>
    %12 = vector.broadcast %0 : vector<1x512xf32> to vector<32x512xf32>
    %13 = arith.mulf %12, %11 : vector<32x512xf32>
    %14 = arith.addf %8, %13 : vector<32x512xf32>
    %c0_13 = arith.constant 0 : index
    %c0_14 = arith.constant 0 : index
    %15 = vector.load %arg5[%c0_13, %c0_14] : memref<32x1xf32, #tpu.memory_space<vmem>>, vector<32x1xf32>
    %16 = arith.subf %14, %7 : vector<32x512xf32>
    %17 = vector.broadcast %15 : vector<32x1xf32> to vector<32x512xf32>
    %18 = arith.mulf %17, %16 : vector<32x512xf32>
    %19 = arith.addf %7, %18 : vector<32x512xf32>
    %c0_15 = arith.constant 0 : index
    %c0_16 = arith.constant 0 : index
    %20 = vector.load %arg7[%c0_15, %c0_16] : memref<1x512xf32, #tpu.memory_space<vmem>>, vector<1x512xf32>
    %21 = vector.broadcast %20 : vector<1x512xf32> to vector<32x512xf32>
    %22 = arith.mulf %19, %21 : vector<32x512xf32>
    %c0_17 = arith.constant 0 : index
    %c0_18 = arith.constant 0 : index
    %23 = vector.load %arg8[%c0_17, %c0_18] : memref<1x512xf32, #tpu.memory_space<vmem>>, vector<1x512xf32>
    %24 = vector.broadcast %23 : vector<1x512xf32> to vector<32x512xf32>
    %25 = arith.addf %22, %24 : vector<32x512xf32>
    %c0_19 = arith.constant 0 : index
    %c0_20 = arith.constant 0 : index
    %26 = vector.load %arg9[%c0_19, %c0_20] : memref<32x512xf32, #tpu.memory_space<vmem>>, vector<32x512xf32>
    %27 = arith.addf %25, %26 : vector<32x512xf32>
    %cst = arith.constant 0.000000e+00 : f32
    %28 = vector.broadcast %cst : f32 to vector<32x512xf32>
    %29 = arith.maximumf %27, %28 : vector<32x512xf32>
    %c0_21 = arith.constant 0 : index
    %c0_22 = arith.constant 0 : index
    %30 = vector.load %arg10[%c0_21, %c0_22] : memref<32x512xf32, #tpu.memory_space<vmem>>, vector<32x512xf32>
    tpu.vector_store %arg10[%c0_21, %c0_22], %29 {strides = array<i32>} : memref<32x512xf32, #tpu.memory_space<vmem>>, vector<32x512xf32>,
    return
  }
  func.func @transform_0(%arg0: i32) -> (i32, i32) {
    %c0_i32 = arith.constant 0 : i32
    %c0_i32_0 = arith.constant 0 : i32
    return %arg0, %c0_i32 : i32, i32
  }
  func.func @transform_1(%arg0: i32) -> (i32, i32) {
    %c0_i32 = arith.constant 0 : i32
    %c0_i32_0 = arith.constant 0 : i32
    return %arg0, %c0_i32 : i32, i32
  }
  func.func @transform_2(%arg0: i32) -> (i32, i32) {
    %c0_i32 = arith.constant 0 : i32
    %c0_i32_0 = arith.constant 0 : i32
    return %arg0, %c0_i32 : i32, i32
  }
  func.func @transform_3(%arg0: i32) -> (i32, i32) {
    %c0_i32 = arith.constant 0 : i32
    %c0_i32_0 = arith.constant 0 : i32
    return %arg0, %c0_i32 : i32, i32
  }
  func.func @transform_4(%arg0: i32) -> (i32, i32) {
    %c0_i32 = arith.constant 0 : i32
    %c0_i32_0 = arith.constant 0 : i32
    return %arg0, %c0_i32 : i32, i32
  }
  func.func @transform_5(%arg0: i32) -> (i32, i32) {
    %c0_i32 = arith.constant 0 : i32
    %c0_i32_0 = arith.constant 0 : i32
    %c0_i32_1 = arith.constant 0 : i32
    return %c0_i32, %c0_i32_0 : i32, i32
  }
  func.func @transform_6(%arg0: i32) -> (i32, i32) {
    %c0_i32 = arith.constant 0 : i32
    %c0_i32_0 = arith.constant 0 : i32
    %c0_i32_1 = arith.constant 0 : i32
    return %c0_i32, %c0_i32_0 : i32, i32
  }
  func.func @transform_7(%arg0: i32) -> (i32, i32) {
    %c0_i32 = arith.constant 0 : i32
    %c0_i32_0 = arith.constant 0 : i32
    %c0_i32_1 = arith.constant 0 : i32
    return %c0_i32, %c0_i32_0 : i32, i32
  }
  func.func @transform_8(%arg0: i32) -> (i32, i32) {
    %c0_i32 = arith.constant 0 : i32
    %c0_i32_0 = arith.constant 0 : i32
    return %arg0, %c0_i32 : i32, i32
  }
  func.func @transform_9(%arg0: i32) -> (i32, i32) {
    %c0_i32 = arith.constant 0 : i32
    %c0_i32_0 = arith.constant 0 : i32
    return %arg0, %c0_i32 : i32, i32
  }
}

module attributes {stable_mosaic.version = 11 : i64} {
  func.func @_conv_stats_kernel(%arg0: i32, %arg1: memref<512x288xbf16, #tpu.memory_space<vmem>>, %arg2: memref<288x32xbf16, #tpu.memory_space<vmem>>, %arg3: memref<512x32xf32, #tpu.memory_space<vmem>>, %arg4: memref<1x32xf32, #tpu.memory_space<vmem>>, %arg5: memref<1x32xf32, #tpu.memory_space<vmem>>) attributes {dimension_semantics = [#tpu.dimension_semantics<arbitrary>], iteration_bounds = array<i64: 1>, scalar_prefetch = 0 : i64, scratch_operands = 0 : i64, tpu.core_type = #tpu.core_type<tc>, window_params = [{transform_indices = @transform_0, window_bounds = array<i64: 512, 288>}, {pipeline_mode = #tpu.pipeline_mode<synchronous>, transform_indices = @transform_1, window_bounds = array<i64: 288, 32>}, {transform_indices = @transform_2, window_bounds = array<i64: 512, 32>}, {pipeline_mode = #tpu.pipeline_mode<synchronous>, transform_indices = @transform_3, window_bounds = array<i64: 1, 32>}, {pipeline_mode = #tpu.pipeline_mode<synchronous>, transform_indices = @transform_4, window_bounds = array<i64: 1, 32>}]} {
    %c0 = arith.constant 0 : index
    %c0_0 = arith.constant 0 : index
    %0 = vector.load %arg1[%c0, %c0_0] : memref<512x288xbf16, #tpu.memory_space<vmem>>, vector<512x288xbf16>
    %c0_1 = arith.constant 0 : index
    %c0_2 = arith.constant 0 : index
    %1 = vector.load %arg2[%c0_1, %c0_2] : memref<288x32xbf16, #tpu.memory_space<vmem>>, vector<288x32xbf16>
    %cst = arith.constant dense<0.000000e+00> : vector<512x32xf32>
    %2 = tpu.matmul %0, %1, %cst {dimension_numbers = #tpu.dot_dimension_numbers<[1], [0], [0], [1], [0, 0, 1, 1], [], []>} : vector<512x288xbf16>, vector<288x32xbf16>, vector<512x32xf32> -> vector<512x32xf32>
    %c0_3 = arith.constant 0 : index
    %c0_4 = arith.constant 0 : index
    %3 = vector.load %arg3[%c0_3, %c0_4] : memref<512x32xf32, #tpu.memory_space<vmem>>, vector<512x32xf32>
    tpu.vector_store %arg3[%c0_3, %c0_4], %2 {strides = array<i32>} : memref<512x32xf32, #tpu.memory_space<vmem>>, vector<512x32xf32>,
    %c0_i32 = arith.constant 0 : i32
    %4 = arith.cmpi eq, %arg0, %c0_i32 : i32
    %5 = arith.extui %4 : i1 to i32
    %c0_i32_5 = arith.constant 0 : i32
    %6 = arith.cmpi ne, %5, %c0_i32_5 : i32
    scf.if %6 {
      %cst_16 = arith.constant 0.000000e+00 : f32
      %18 = vector.broadcast %cst_16 : f32 to vector<1x32xf32>
      %c0_17 = arith.constant 0 : index
      %c0_18 = arith.constant 0 : index
      %19 = vector.load %arg4[%c0_17, %c0_18] : memref<1x32xf32, #tpu.memory_space<vmem>>, vector<1x32xf32>
      tpu.vector_store %arg4[%c0_17, %c0_18], %18 {strides = array<i32>} : memref<1x32xf32, #tpu.memory_space<vmem>>, vector<1x32xf32>,
      %cst_19 = arith.constant 0.000000e+00 : f32
      %20 = vector.broadcast %cst_19 : f32 to vector<1x32xf32>
      %c0_20 = arith.constant 0 : index
      %c0_21 = arith.constant 0 : index
      %21 = vector.load %arg5[%c0_20, %c0_21] : memref<1x32xf32, #tpu.memory_space<vmem>>, vector<1x32xf32>
      tpu.vector_store %arg5[%c0_20, %c0_21], %20 {strides = array<i32>} : memref<1x32xf32, #tpu.memory_space<vmem>>, vector<1x32xf32>,
    } else {
    }
    %c0_6 = arith.constant 0 : index
    %c0_7 = arith.constant 0 : index
    %7 = vector.load %arg4[%c0_6, %c0_7] : memref<1x32xf32, #tpu.memory_space<vmem>>, vector<1x32xf32>
    %cst_8 = arith.constant dense<0.000000e+00> : vector<32xf32>
    %8 = vector.multi_reduction <add>, %2, %cst_8 [0] : vector<512x32xf32> to vector<32xf32>
    %9 = vector.shape_cast %8 : vector<32xf32> to vector<1x32xf32>
    %10 = arith.addf %7, %9 : vector<1x32xf32>
    %c0_9 = arith.constant 0 : index
    %c0_10 = arith.constant 0 : index
    %11 = vector.load %arg4[%c0_9, %c0_10] : memref<1x32xf32, #tpu.memory_space<vmem>>, vector<1x32xf32>
    tpu.vector_store %arg4[%c0_9, %c0_10], %10 {strides = array<i32>} : memref<1x32xf32, #tpu.memory_space<vmem>>, vector<1x32xf32>,
    %c0_11 = arith.constant 0 : index
    %c0_12 = arith.constant 0 : index
    %12 = vector.load %arg5[%c0_11, %c0_12] : memref<1x32xf32, #tpu.memory_space<vmem>>, vector<1x32xf32>
    %13 = arith.mulf %2, %2 : vector<512x32xf32>
    %cst_13 = arith.constant dense<0.000000e+00> : vector<32xf32>
    %14 = vector.multi_reduction <add>, %13, %cst_13 [0] : vector<512x32xf32> to vector<32xf32>
    %15 = vector.shape_cast %14 : vector<32xf32> to vector<1x32xf32>
    %16 = arith.addf %12, %15 : vector<1x32xf32>
    %c0_14 = arith.constant 0 : index
    %c0_15 = arith.constant 0 : index
    %17 = vector.load %arg5[%c0_14, %c0_15] : memref<1x32xf32, #tpu.memory_space<vmem>>, vector<1x32xf32>
    tpu.vector_store %arg5[%c0_14, %c0_15], %16 {strides = array<i32>} : memref<1x32xf32, #tpu.memory_space<vmem>>, vector<1x32xf32>,
    return
  }
  func.func @transform_0(%arg0: i32) -> (i32, i32) {
    %c0_i32 = arith.constant 0 : i32
    %c0_i32_0 = arith.constant 0 : i32
    return %arg0, %c0_i32 : i32, i32
  }
  func.func @transform_1(%arg0: i32) -> (i32, i32) {
    %c0_i32 = arith.constant 0 : i32
    %c0_i32_0 = arith.constant 0 : i32
    %c0_i32_1 = arith.constant 0 : i32
    return %c0_i32, %c0_i32_0 : i32, i32
  }
  func.func @transform_2(%arg0: i32) -> (i32, i32) {
    %c0_i32 = arith.constant 0 : i32
    %c0_i32_0 = arith.constant 0 : i32
    return %arg0, %c0_i32 : i32, i32
  }
  func.func @transform_3(%arg0: i32) -> (i32, i32) {
    %c0_i32 = arith.constant 0 : i32
    %c0_i32_0 = arith.constant 0 : i32
    %c0_i32_1 = arith.constant 0 : i32
    return %c0_i32, %c0_i32_0 : i32, i32
  }
  func.func @transform_4(%arg0: i32) -> (i32, i32) {
    %c0_i32 = arith.constant 0 : i32
    %c0_i32_0 = arith.constant 0 : i32
    %c0_i32_1 = arith.constant 0 : i32
    return %c0_i32, %c0_i32_0 : i32, i32
  }
}

module attributes {stable_mosaic.version = 11 : i64} {
  func.func @_scale_shift_kernel(%arg0: i32, %arg1: memref<32x512xf32, #tpu.memory_space<vmem>>, %arg2: memref<1x512xf32, #tpu.memory_space<vmem>>, %arg3: memref<1x512xf32, #tpu.memory_space<vmem>>, %arg4: memref<32x512xf32, #tpu.memory_space<vmem>>) attributes {dimension_semantics = [#tpu.dimension_semantics<parallel>], iteration_bounds = array<i64: 1>, scalar_prefetch = 0 : i64, scratch_operands = 0 : i64, tpu.core_type = #tpu.core_type<tc>, window_params = [{transform_indices = @transform_0, window_bounds = array<i64: 32, 512>}, {pipeline_mode = #tpu.pipeline_mode<synchronous>, transform_indices = @transform_1, window_bounds = array<i64: 1, 512>}, {pipeline_mode = #tpu.pipeline_mode<synchronous>, transform_indices = @transform_2, window_bounds = array<i64: 1, 512>}, {transform_indices = @transform_3, window_bounds = array<i64: 32, 512>}]} {
    %c0 = arith.constant 0 : index
    %c0_0 = arith.constant 0 : index
    %0 = vector.load %arg1[%c0, %c0_0] : memref<32x512xf32, #tpu.memory_space<vmem>>, vector<32x512xf32>
    %c0_1 = arith.constant 0 : index
    %c0_2 = arith.constant 0 : index
    %1 = vector.load %arg2[%c0_1, %c0_2] : memref<1x512xf32, #tpu.memory_space<vmem>>, vector<1x512xf32>
    %2 = vector.broadcast %1 : vector<1x512xf32> to vector<32x512xf32>
    %3 = arith.mulf %0, %2 : vector<32x512xf32>
    %c0_3 = arith.constant 0 : index
    %c0_4 = arith.constant 0 : index
    %4 = vector.load %arg3[%c0_3, %c0_4] : memref<1x512xf32, #tpu.memory_space<vmem>>, vector<1x512xf32>
    %5 = vector.broadcast %4 : vector<1x512xf32> to vector<32x512xf32>
    %6 = arith.addf %3, %5 : vector<32x512xf32>
    %c0_5 = arith.constant 0 : index
    %c0_6 = arith.constant 0 : index
    %7 = vector.load %arg4[%c0_5, %c0_6] : memref<32x512xf32, #tpu.memory_space<vmem>>, vector<32x512xf32>
    tpu.vector_store %arg4[%c0_5, %c0_6], %6 {strides = array<i32>} : memref<32x512xf32, #tpu.memory_space<vmem>>, vector<32x512xf32>,
    return
  }
  func.func @transform_0(%arg0: i32) -> (i32, i32) {
    %c0_i32 = arith.constant 0 : i32
    %c0_i32_0 = arith.constant 0 : i32
    return %arg0, %c0_i32 : i32, i32
  }
  func.func @transform_1(%arg0: i32) -> (i32, i32) {
    %c0_i32 = arith.constant 0 : i32
    %c0_i32_0 = arith.constant 0 : i32
    %c0_i32_1 = arith.constant 0 : i32
    return %c0_i32, %c0_i32_0 : i32, i32
  }
  func.func @transform_2(%arg0: i32) -> (i32, i32) {
    %c0_i32 = arith.constant 0 : i32
    %c0_i32_0 = arith.constant 0 : i32
    %c0_i32_1 = arith.constant 0 : i32
    return %c0_i32, %c0_i32_0 : i32, i32
  }
  func.func @transform_3(%arg0: i32) -> (i32, i32) {
    %c0_i32 = arith.constant 0 : i32
    %c0_i32_0 = arith.constant 0 : i32
    return %arg0, %c0_i32 : i32, i32
  }
}

</mosaic_0001>

<llo_original>
// kernel: tile.63
$region0: #{tile.63}
  #allocation0 [shape = 's32[1]{0}', space=sflag, size = 0x4, scoped, tag = 'scoped memory for tile.63']
  %s0 = inlined_call_operand.vmem [shape: f32[32], index: 0, kind: input, shape index: {}]
  %s1 = inlined_call_operand.vmem [shape: f32[8,32], index: 1, kind: output, shape index: {}]
  // Predicated region
  $region2: #{tile.63} parent=0 // pred_check
    _
  $region3: #{tile.63} parent=0 // pred_check_branch
    %3 = sbr.rel (0) target = $region5
  $region4: #{tile.63} parent=0 // pred_region
    _
  $region5: #{tile.63} parent=0 // pred_fallthru
    _
  %v4 = vld [vmem:[%s0] ss:$0 sm:$0xff]
  %5 = vst [vmem:[%s1] sm:$0xff] %v4

// kernel: tile.64
$region0: #{tile.64}
  %s0 = inlined_call_operand.vmem [shape: f32[8,32], index: 0, kind: input, shape index: {}]
  %s1 = inlined_call_operand.vmem [shape: f32[1,256], index: 1, kind: output, shape index: {}]
  $region1: #{tile.64} parent=0
    #allocation0 [shape = 'u8[8192]{0}', space=vmem, size = 0x2000, scoped, tag = 'scoped mem for output reshape']
    %s2 = smov 3
    %v3 = vld [vmem:[%s0] ss:$4 sm:%s2]
    %vm4 = vcmask 261120
    %5 = vst.msk [vmem:[#allocation0] ss:$8 sm:$0x3] %vm4, %v3
    %s6 = scalar_lea.vmem %s0, 3
    %s7 = smov 3
    %v8 = vld [vmem:[%s6] ss:$4 sm:%s7]
    %9 = vrot.lane.b32.xlu0 %v8, 96
    %v10 = vpop.permute.xlu0 %9
    %vm11 = vcmask 1048320
    %12 = vst.msk [vmem:[#allocation0] ss:$8 sm:$0x3] %vm11, %v10
    %s13 = scalar_lea.vmem %s0, 2
    %s14 = smov 3
    %v15 = vld [vmem:[%s13] ss:$4 sm:%s14]
    %16 = vrot.lane.b32.xlu0 %v15, 64
    %v17 = vpop.permute.xlu0 %16
    %vm18 = vcmask 785920
    %19 = vst.msk [vmem:[#allocation0] ss:$8 sm:$0x3] %vm18, %v17
    %s20 = scalar_lea.vmem %s0, 1
    %s21 = smov 3
    %v22 = vld [vmem:[%s20] ss:$4 sm:%s21]
    %23 = vrot.lane.b32.xlu0 %v22, 32
    %v24 = vpop.permute.xlu0 %23
    %vm25 = vcmask 523520
    %26 = vst.msk [vmem:[#allocation0] ss:$8 sm:$0x3] %vm25, %v24
    %s28 = sshll.u32 1, 1
    %s29 = ssub.s32 %s28, 1
    %v31 = vld [vmem:[#allocation0] sm:%s29]
    %s32 = sshll.u32 1, 1
    %s33 = ssub.s32 %s32, 1
    %34 = vst [vmem:[%s1] sm:%s33] %v31
    %s35 = scalar_lea.vmem [#allocation0], 8
    %v36 = vld [vmem:[%s35] sm:%s29]
    %s37 = sshll.u32 1, 1
    %s38 = ssub.s32 %s37, 1
    %s39 = scalar_lea.vmem %s1, 1
    %40 = vst [vmem:[%s39] sm:%s38] %v36

// kernel: usrm3_forward.13
$region0: #{usrm3_forward.13}
  #allocation0 [shape = 'u32[]', space=smem, size = 0x4, offset = 0x4, fixed_abs, tag = 'smem constant byte address 0x4 - core index']
  #allocation1 [shape = 'u32[144,128]{1,0:T(1,128)}', space=vmem, size = 0x12000, scoped, tag = 'internal scratch']
  %s0 = inlined_call_operand.vmem [shape: f32[16,256], index: 0, kind: input, shape index: {}]
  %s1 = inlined_call_operand.vmem [shape: f32[1,256], index: 1, kind: input, shape index: {}]
  %s2 = inlined_call_operand.vmem [shape: f32[1,256], index: 2, kind: input, shape index: {}]
  %s3 = inlined_call_operand.vmem [shape: f32[16,256], index: 3, kind: output, shape index: {}]
  %s4 = sld [smem:[#allocation0]]
  $region22: #{usrm3_forward.13} parent=0
    _
  %s6 = ssub.s32 1, %s4
  %s7 = scalar_select 0, %s6, %s4
  // Predicated region
  $region2: #{usrm3_forward.13} parent=0 // pred_check
    _
  $region3: #{usrm3_forward.13} parent=0 // pred_check_branch
    %9 = sbr.rel (0) target = $region5
  $region4: #{usrm3_forward.13} parent=0 // pred_region
    _
  $region5: #{usrm3_forward.13} parent=0 // pred_fallthru
    _
  // Predicated region
  $region6: #{usrm3_forward.13} parent=0 // pred_check
    _
  $region7: #{usrm3_forward.13} parent=0 // pred_check_branch
    %11 = sbr.rel (0) target = $region9
  $region8: #{usrm3_forward.13} parent=0 // pred_region
    _
  $region9: #{usrm3_forward.13} parent=0 // pred_fallthru
    _
  // Predicated region
  $region10: #{usrm3_forward.13} parent=0 // pred_check
    _
  $region11: #{usrm3_forward.13} parent=0 // pred_check_branch
    %13 = sbr.rel (0) target = $region13
  $region12: #{usrm3_forward.13} parent=0 // pred_region
    _
  $region13: #{usrm3_forward.13} parent=0 // pred_fallthru
    _
  %v14 = vld [vmem:[%s0] sm:$0xff]
  %v15 = vld [vmem:[%s0 + $0x8] sm:$0xff]
  %v16 = vld [vmem:[%s0 + $0x10] sm:$0xff]
  %v17 = vld [vmem:[%s0 + $0x18] sm:$0xff]
  %v18 = vld [vmem:[%s1] sm:$0x3]
  %v20 = vlaneseq
  %v21 = vshrl.u32 %v20, 7
  %v22 = vsub.s32 0, %v21
  %v23 = vrot.slane %v18, %v22
  %v24 = vlaneseq
  %v25 = vshrl.u32 %v24, 7
  %v26 = vsub.s32 1, %v25
  %v27 = vrot.slane %v18, %v26
  %v30 = vmul.f32 %v14, %v23
  %v31 = vmul.f32 %v15, %v27
  %v32 = vmul.f32 %v16, %v23
  %v33 = vmul.f32 %v17, %v27
  %v34 = vld [vmem:[%s2] sm:$0x3]
  %v36 = vlaneseq
  %v37 = vshrl.u32 %v36, 7
  %v38 = vsub.s32 0, %v37
  %v39 = vrot.slane %v34, %v38
  %v40 = vlaneseq
  %v41 = vshrl.u32 %v40, 7
  %v42 = vsub.s32 1, %v41
  %v43 = vrot.slane %v34, %v42
  %v46 = vadd.f32 %v30, %v39
  %v47 = vadd.f32 %v31, %v43
  %v48 = vadd.f32 %v32, %v39
  %v49 = vadd.f32 %v33, %v43
  %50 = vst [vmem:[%s3] sm:$0xff] %v46
  %51 = vst [vmem:[%s3 + $0x8] sm:$0xff] %v47
  %52 = vst [vmem:[%s3 + $0x10] sm:$0xff] %v48
  %53 = vst [vmem:[%s3 + $0x18] sm:$0xff] %v49
  // Predicated region
  $region14: #{usrm3_forward.13} parent=0 // pred_check
    _
  $region15: #{usrm3_forward.13} parent=0 // pred_check_branch
    %55 = sbr.rel (0) target = $region17
  $region16: #{usrm3_forward.13} parent=0 // pred_region
    _
  $region17: #{usrm3_forward.13} parent=0 // pred_fallthru
    _
  // Predicated region
  $region18: #{usrm3_forward.13} parent=0 // pred_check
    _
  $region19: #{usrm3_forward.13} parent=0 // pred_check_branch
    %57 = sbr.rel (0) target = $region21
  $region20: #{usrm3_forward.13} parent=0 // pred_region
    _
  $region21: #{usrm3_forward.13} parent=0 // pred_fallthru
    _

// kernel: usrm3_forward.12
$region0: #{usrm3_forward.12}
  #allocation0 [shape = 'u32[]', space=smem, size = 0x4, offset = 0x4, fixed_abs, tag = 'smem constant byte address 0x4 - core index']
  #allocation1 [shape = 'u32[144,128]{1,0:T(1,128)}', space=vmem, size = 0x12000, scoped, tag = 'internal scratch']
  %s0 = inlined_call_operand.vmem [shape: bf16[128,288], index: 0, kind: input, shape index: {}]
  %s1 = inlined_call_operand.vmem [shape: bf16[288,32], index: 1, kind: input, shape index: {}]
  %s2 = inlined_call_operand.vmem [shape: f32[128,32], index: 2, kind: output, shape index: {0}]
  %s3 = inlined_call_operand.vmem [shape: f32[1,32], index: 3, kind: output, shape index: {1}]
  %s4 = inlined_call_operand.vmem [shape: f32[1,32], index: 4, kind: output, shape index: {2}]
  %5 = xla_tuple %s2, %s3, %s4
  %s6 = sld [smem:[#allocation0]]
  $region38: #{usrm3_forward.12} parent=0
    _
  %s8 = ssub.s32 1, %s6
  %s9 = scalar_select 0, %s8, %s6
  // Predicated region
  $region2: #{usrm3_forward.12} parent=0 // pred_check
    _
  $region3: #{usrm3_forward.12} parent=0 // pred_check_branch
    %11 = sbr.rel (0) target = $region5
  $region4: #{usrm3_forward.12} parent=0 // pred_region
    _
  $region5: #{usrm3_forward.12} parent=0 // pred_fallthru
    _
  // Predicated region
  $region6: #{usrm3_forward.12} parent=0 // pred_check
    _
  $region7: #{usrm3_forward.12} parent=0 // pred_check_branch
    %13 = sbr.rel (0) target = $region9
  $region8: #{usrm3_forward.12} parent=0 // pred_region
    _
  $region9: #{usrm3_forward.12} parent=0 // pred_fallthru
    _
  %v15 = vld [vmem:[%s0] sm:$0xff]
  %v16 = vld [vmem:[%s0 + $0x8] sm:$0xf]
  %v17 = vld [vmem:[%s0 + $0xc] sm:$0xff]
  %v18 = vld [vmem:[%s0 + $0x14] sm:$0xf]
  %v19 = vld [vmem:[%s0 + $0x18] sm:$0xff]
  %v20 = vld [vmem:[%s0 + $0x20] sm:$0xf]
  %v21 = vld [vmem:[%s0 + $0x24] sm:$0xff]
  %v22 = vld [vmem:[%s0 + $0x2c] sm:$0xf]
  %v23 = vld [vmem:[%s0 + $0x30] sm:$0xff]
  %v24 = vld [vmem:[%s0 + $0x38] sm:$0xf]
  %v25 = vld [vmem:[%s0 + $0x3c] sm:$0xff]
  %v26 = vld [vmem:[%s0 + $0x44] sm:$0xf]
  %v27 = vld [vmem:[%s0 + $0x48] sm:$0xff]
  %v28 = vld [vmem:[%s0 + $0x50] sm:$0xf]
  %v29 = vld [vmem:[%s0 + $0x54] sm:$0xff]
  %v30 = vld [vmem:[%s0 + $0x5c] sm:$0xf]
  %v31 = vld [vmem:[%s0 + $0x60] sm:$0xff]
  %v32 = vld [vmem:[%s0 + $0x68] sm:$0xf]
  %v33 = vld [vmem:[%s0 + $0x6c] sm:$0xff]
  %v34 = vld [vmem:[%s0 + $0x74] sm:$0xf]
  %v35 = vld [vmem:[%s0 + $0x78] sm:$0xff]
  %v36 = vld [vmem:[%s0 + $0x80] sm:$0xf]
  %v37 = vld [vmem:[%s0 + $0x84] sm:$0xff]
  %v38 = vld [vmem:[%s0 + $0x8c] sm:$0xf]
  %v39 = vld [vmem:[%s0 + $0x90] sm:$0xff]
  %v40 = vld [vmem:[%s0 + $0x98] sm:$0xf]
  %v41 = vld [vmem:[%s0 + $0x9c] sm:$0xff]
  %v42 = vld [vmem:[%s0 + $0xa4] sm:$0xf]
  %v43 = vld [vmem:[%s0 + $0xa8] sm:$0xff]
  %v44 = vld [vmem:[%s0 + $0xb0] sm:$0xf]
  %v45 = vld [vmem:[%s0 + $0xb4] sm:$0xff]
  %v46 = vld [vmem:[%s0 + $0xbc] sm:$0xf]
  %v47 = vld [vmem:[%s1] sm:$0xf]
  %v48 = vld [vmem:[%s1 + $0x4] sm:$0xf]
  %v49 = vld [vmem:[%s1 + $0x8] sm:$0xf]
  %v50 = vld [vmem:[%s1 + $0xc] sm:$0xf]
  %v51 = vld [vmem:[%s1 + $0x10] sm:$0xf]
  %v52 = vld [vmem:[%s1 + $0x14] sm:$0xf]
  %v53 = vld [vmem:[%s1 + $0x18] sm:$0xf]
  %v54 = vld [vmem:[%s1 + $0x1c] sm:$0xf]
  %v55 = vld [vmem:[%s1 + $0x20] sm:$0xf]
  %v56 = vld [vmem:[%s1 + $0x24] sm:$0xf]
  %v57 = vld [vmem:[%s1 + $0x28] sm:$0xf]
  %v58 = vld [vmem:[%s1 + $0x2c] sm:$0xf]
  %v59 = vld [vmem:[%s1 + $0x30] sm:$0xf]
  %v60 = vld [vmem:[%s1 + $0x34] sm:$0xf]
  %v61 = vld [vmem:[%s1 + $0x38] sm:$0xf]
  %v62 = vld [vmem:[%s1 + $0x3c] sm:$0xf]
  %v63 = vld [vmem:[%s1 + $0x40] sm:$0xf]
  %v64 = vld [vmem:[%s1 + $0x44] sm:$0xf]
  %v65 = vld [vmem:[%s1 + $0x48] sm:$0xf]
  %v66 = vld [vmem:[%s1 + $0x4c] sm:$0xf]
  %v67 = vld [vmem:[%s1 + $0x50] sm:$0xf]
  %v68 = vld [vmem:[%s1 + $0x54] sm:$0xf]
  %v69 = vld [vmem:[%s1 + $0x58] sm:$0xf]
  %v70 = vld [vmem:[%s1 + $0x5c] sm:$0xf]
  %v71 = vld [vmem:[%s1 + $0x60] sm:$0xf]
  %v72 = vld [vmem:[%s1 + $0x64] sm:$0xf]
  %v73 = vld [vmem:[%s1 + $0x68] sm:$0xf]
  %v74 = vld [vmem:[%s1 + $0x6c] sm:$0xf]
  %v75 = vld [vmem:[%s1 + $0x70] sm:$0xf]
  %v76 = vld [vmem:[%s1 + $0x74] sm:$0xf]
  %v77 = vld [vmem:[%s1 + $0x78] sm:$0xf]
  %v78 = vld [vmem:[%s1 + $0x7c] sm:$0xf]
  %v79 = vld [vmem:[%s1 + $0x80] sm:$0xf]
  %v80 = vld [vmem:[%s1 + $0x84] sm:$0xf]
  %v81 = vld [vmem:[%s1 + $0x88] sm:$0xf]
  %v82 = vld [vmem:[%s1 + $0x8c] sm:$0xf]
  %v115 = vunpack.c.l.b16 %v15
  %v116 = vunpack.c.h.b16 %v15
  %v117 = vunpack.c.l.b16 %v16
  %v118 = vunpack.c.l.b16 %v17
  %v119 = vunpack.c.h.b16 %v17
  %v120 = vunpack.c.l.b16 %v18
  %v121 = vunpack.c.l.b16 %v19
  %v122 = vunpack.c.h.b16 %v19
  %v123 = vunpack.c.l.b16 %v20
  %v124 = vunpack.c.l.b16 %v21
  %v125 = vunpack.c.h.b16 %v21
  %v126 = vunpack.c.l.b16 %v22
  %v127 = vunpack.c.l.b16 %v23
  %v128 = vunpack.c.h.b16 %v23
  %v129 = vunpack.c.l.b16 %v24
  %v130 = vunpack.c.l.b16 %v25
  %v131 = vunpack.c.h.b16 %v25
  %v132 = vunpack.c.l.b16 %v26
  %v133 = vunpack.c.l.b16 %v27
  %v134 = vunpack.c.h.b16 %v27
  %v135 = vunpack.c.l.b16 %v28
  %v136 = vunpack.c.l.b16 %v29
  %v137 = vunpack.c.h.b16 %v29
  %v138 = vunpack.c.l.b16 %v30
  %v139 = vunpack.c.l.b16 %v31
  %v140 = vunpack.c.h.b16 %v31
  %v141 = vunpack.c.l.b16 %v32
  %v142 = vunpack.c.l.b16 %v33
  %v143 = vunpack.c.h.b16 %v33
  %v144 = vunpack.c.l.b16 %v34
  %v145 = vunpack.c.l.b16 %v35
  %v146 = vunpack.c.h.b16 %v35
  %v147 = vunpack.c.l.b16 %v36
  %v148 = vunpack.c.l.b16 %v37
  %v149 = vunpack.c.h.b16 %v37
  %v150 = vunpack.c.l.b16 %v38
  %v151 = vunpack.c.l.b16 %v39
  %v152 = vunpack.c.h.b16 %v39
  %v153 = vunpack.c.l.b16 %v40
  %v154 = vunpack.c.l.b16 %v41
  %v155 = vunpack.c.h.b16 %v41
  %v156 = vunpack.c.l.b16 %v42
  %v157 = vunpack.c.l.b16 %v43
  %v158 = vunpack.c.h.b16 %v43
  %v159 = vunpack.c.l.b16 %v44
  %v160 = vunpack.c.l.b16 %v45
  %v161 = vunpack.c.h.b16 %v45
  %v162 = vunpack.c.l.b16 %v46
  %v163 = vpack.c.b16 %v118, %v115
  %v164 = vpack.c.b16 %v119, %v116
  %v165 = vpack.c.b16 %v120, %v117
  %v166 = vpack.c.b16 %v124, %v121
  %v167 = vpack.c.b16 %v125, %v122
  %v168 = vpack.c.b16 %v126, %v123
  %v169 = vpack.c.b16 %v130, %v127
  %v170 = vpack.c.b16 %v131, %v128
  %v171 = vpack.c.b16 %v132, %v129
  %v172 = vpack.c.b16 %v136, %v133
  %v173 = vpack.c.b16 %v137, %v134
  %v174 = vpack.c.b16 %v138, %v135
  %v175 = vpack.c.b16 %v142, %v139
  %v176 = vpack.c.b16 %v143, %v140
  %v177 = vpack.c.b16 %v144, %v141
  %v178 = vpack.c.b16 %v148, %v145
  %v179 = vpack.c.b16 %v149, %v146
  %v180 = vpack.c.b16 %v150, %v147
  %v181 = vpack.c.b16 %v154, %v151
  %v182 = vpack.c.b16 %v155, %v152
  %v183 = vpack.c.b16 %v156, %v153
  %v184 = vpack.c.b16 %v160, %v157
  %v185 = vpack.c.b16 %v161, %v158
  %v186 = vpack.c.b16 %v162, %v159
  %v239 = vunpack.c.l.b16 %v47
  %v240 = vunpack.c.l.b16 %v48
  %v241 = vunpack.c.l.b16 %v49
  %v242 = vunpack.c.l.b16 %v50
  %v243 = vunpack.c.l.b16 %v51
  %v244 = vunpack.c.l.b16 %v52
  %v245 = vunpack.c.l.b16 %v53
  %v246 = vunpack.c.l.b16 %v54
  %v247 = vunpack.c.l.b16 %v55
  %v248 = vunpack.c.l.b16 %v56
  %v249 = vunpack.c.l.b16 %v57
  %v250 = vunpack.c.l.b16 %v58
  %v251 = vunpack.c.l.b16 %v59
  %v252 = vunpack.c.l.b16 %v60
  %v253 = vunpack.c.l.b16 %v61
  %v254 = vunpack.c.l.b16 %v62
  %v255 = vunpack.c.l.b16 %v63
  %v256 = vunpack.c.l.b16 %v64
  %v257 = vunpack.c.l.b16 %v65
  %v258 = vunpack.c.l.b16 %v66
  %v259 = vunpack.c.l.b16 %v67
  %v260 = vunpack.c.l.b16 %v68
  %v261 = vunpack.c.l.b16 %v69
  %v262 = vunpack.c.l.b16 %v70
  %v263 = vunpack.c.l.b16 %v71
  %v264 = vunpack.c.l.b16 %v72
  %v265 = vunpack.c.l.b16 %v73
  %v266 = vunpack.c.l.b16 %v74
  %v267 = vunpack.c.l.b16 %v75
  %v268 = vunpack.c.l.b16 %v76
  %v269 = vunpack.c.l.b16 %v77
  %v270 = vunpack.c.l.b16 %v78
  %v271 = vunpack.c.l.b16 %v79
  %v272 = vunpack.c.l.b16 %v80
  %v273 = vunpack.c.l.b16 %v81
  %v274 = vunpack.c.l.b16 %v82
  %v275 = vpack.c.b16 %v240, %v239
  %v276 = vpack.c.b16 %v242, %v241
  %v277 = vpack.c.b16 %v244, %v243
  %v278 = vpack.c.b16 %v246, %v245
  %v279 = vpack.c.b16 %v248, %v247
  %v280 = vpack.c.b16 %v250, %v249
  %v281 = vpack.c.b16 %v252, %v251
  %v282 = vpack.c.b16 %v254, %v253
  %v283 = vpack.c.b16 %v256, %v255
  %v284 = vpack.c.b16 %v258, %v257
  %v285 = vpack.c.b16 %v260, %v259
  %v286 = vpack.c.b16 %v262, %v261
  %v287 = vpack.c.b16 %v264, %v263
  %v288 = vpack.c.b16 %v266, %v265
  %v289 = vpack.c.b16 %v268, %v267
  %v290 = vpack.c.b16 %v270, %v269
  %v291 = vpack.c.b16 %v272, %v271
  %v292 = vpack.c.b16 %v274, %v273
  %vm311 = vcmask 261120
  %v313 = vsel %vm311, %v165, 0
  %v316 = vsel %vm311, %v168, 0
  %v319 = vsel %vm311, %v171, 0
  %v322 = vsel %vm311, %v174, 0
  %v325 = vsel %vm311, %v177, 0
  %v328 = vsel %vm311, %v180, 0
  %v331 = vsel %vm311, %v183, 0
  %v334 = vsel %vm311, %v186, 0
  %336 = vmatprep.subr.bf16.mxu0 0
  %337 = vmatpush1.bf16.msra.mxu0 %v282
  %338 = vmatprep.subr.bf16.mxu0 0
  %339 = vmatpush1.bf16.msra.mxu0 %v281
  %340 = vmatprep.subr.bf16.mxu0 0
  %341 = vmatpush1.bf16.msra.mxu0 %v280
  %342 = vmatprep.subr.bf16.mxu0 0
  %343 = vmatpush1.bf16.msra.mxu0 %v279
  %344 = vmatprep.subr.bf16.mxu0 0
  %345 = vmatpush1.bf16.msra.mxu0 %v278
  %346 = vmatprep.subr.bf16.mxu0 0
  %347 = vmatpush1.bf16.msra.mxu0 %v277
  %348 = vmatprep.subr.bf16.mxu0 0
  %349 = vmatpush1.bf16.msra.mxu0 %v276
  %350 = vmatprep.subr.bf16.mxu0 0
  %351 = vmatpush1.bf16.msra.mxu0 %v275
  %352 = vmatprep.subr.bf16.mxu0 0
  %353 = vmatpush2.bf16.msra.mxu0 %v290
  %354 = vmatprep.subr.bf16.mxu0 0
  %355 = vmatpush2.bf16.msra.mxu0 %v289
  %356 = vmatprep.subr.bf16.mxu0 0
  %357 = vmatpush2.bf16.msra.mxu0 %v288
  %358 = vmatprep.subr.bf16.mxu0 0
  %359 = vmatpush2.bf16.msra.mxu0 %v287
  %360 = vmatprep.subr.bf16.mxu0 0
  %361 = vmatpush2.bf16.msra.mxu0 %v286
  %362 = vmatprep.subr.bf16.mxu0 0
  %363 = vmatpush2.bf16.msra.mxu0 %v285
  %364 = vmatprep.subr.bf16.mxu0 0
  %365 = vmatpush2.bf16.msra.mxu0 %v284
  %366 = vmatprep.subr.bf16.mxu0 0
  %367 = vmatpush2.bf16.msra.mxu0 %v283
  %368 = vmatprep.mubr.bf16.mxu0 %v164
  %369 = vmatmul.mubr.bf16.gmra.mxu0 %v163
  %v370 = vpop.f32.mrf.mxu0
  %v371 = vadd.f32 0.0, %v370
  %v372 = vpop.f32.mrf.mxu0
  %v373 = vpop.f32.mrf.mxu0
  %v374 = vadd.f32 0.0, %v373
  %v375 = vpop.f32.mrf.mxu0
  %376 = vmatprep.mubr.bf16.mxu0 %v167
  %377 = vmatmul.mubr.bf16.gmra.mxu0 %v166
  %v378 = vpop.f32.mrf.mxu0
  %v379 = vadd.f32 0.0, %v378
  %v380 = vpop.f32.mrf.mxu0
  %v381 = vpop.f32.mrf.mxu0
  %v382 = vadd.f32 0.0, %v381
  %v383 = vpop.f32.mrf.mxu0
  %384 = vmatprep.mubr.bf16.mxu0 %v170
  %385 = vmatmul.mubr.bf16.gmra.mxu0 %v169
  %v386 = vpop.f32.mrf.mxu0
  %v387 = vadd.f32 0.0, %v386
  %v388 = vpop.f32.mrf.mxu0
  %v389 = vpop.f32.mrf.mxu0
  %v390 = vadd.f32 0.0, %v389
  %v391 = vpop.f32.mrf.mxu0
  %392 = vmatprep.mubr.bf16.mxu0 %v173
  %393 = vmatmul.mubr.bf16.gmra.mxu0 %v172
  %v394 = vpop.f32.mrf.mxu0
  %v395 = vadd.f32 0.0, %v394
  %v396 = vpop.f32.mrf.mxu0
  %v397 = vpop.f32.mrf.mxu0
  %v398 = vadd.f32 0.0, %v397
  %v399 = vpop.f32.mrf.mxu0
  %400 = vmatprep.mubr.bf16.mxu0 %v176
  %401 = vmatmul.mubr.bf16.gmra.mxu0 %v175
  %v402 = vpop.f32.mrf.mxu0
  %v403 = vadd.f32 0.0, %v402
  %v404 = vpop.f32.mrf.mxu0
  %v405 = vpop.f32.mrf.mxu0
  %v406 = vadd.f32 0.0, %v405
  %v407 = vpop.f32.mrf.mxu0
  %408 = vmatprep.mubr.bf16.mxu0 %v179
  %409 = vmatmul.mubr.bf16.gmra.mxu0 %v178
  %v410 = vpop.f32.mrf.mxu0
  %v411 = vadd.f32 0.0, %v410
  %v412 = vpop.f32.mrf.mxu0
  %v413 = vpop.f32.mrf.mxu0
  %v414 = vadd.f32 0.0, %v413
  %v415 = vpop.f32.mrf.mxu0
  %416 = vmatprep.mubr.bf16.mxu0 %v182
  %417 = vmatmul.mubr.bf16.gmra.mxu0 %v181
  %v418 = vpop.f32.mrf.mxu0
  %v419 = vadd.f32 0.0, %v418
  %v420 = vpop.f32.mrf.mxu0
  %v421 = vpop.f32.mrf.mxu0
  %v422 = vadd.f32 0.0, %v421
  %v423 = vpop.f32.mrf.mxu0
  %424 = vmatprep.mubr.bf16.mxu0 %v185
  %425 = vmatmul.mubr.bf16.gmra.mxu0 %v184
  %v426 = vpop.f32.mrf.mxu0
  %v427 = vadd.f32 0.0, %v426
  %v428 = vpop.f32.mrf.mxu0
  %v429 = vpop.f32.mrf.mxu0
  %v430 = vadd.f32 0.0, %v429
  %v431 = vpop.f32.mrf.mxu0
  %432 = vdwg.mxu0
  %433 = vmatprep.subr.bf16.mxu0 0
  %434 = vmatpush1.bf16.msra.mxu0 0
  %435 = vmatprep.subr.bf16.mxu0 0
  %436 = vmatpush1.bf16.msra.mxu0 0
  %437 = vmatprep.subr.bf16.mxu0 0
  %438 = vmatpush1.bf16.msra.mxu0 0
  %439 = vmatprep.subr.bf16.mxu0 0
  %440 = vmatpush1.bf16.msra.mxu0 0
  %441 = vmatprep.subr.bf16.mxu0 0
  %442 = vmatpush1.bf16.msra.mxu0 0
  %443 = vmatprep.subr.bf16.mxu0 0
  %444 = vmatpush1.bf16.msra.mxu0 0
  %445 = vmatprep.subr.bf16.mxu0 0
  %446 = vmatpush1.bf16.msra.mxu0 %v292
  %447 = vmatprep.subr.bf16.mxu0 0
  %448 = vmatpush1.bf16.msra.mxu0 %v291
  %449 = vmatprep.subr.bf16.mxu0 0
  %450 = vmatpush2.bf16.msra.mxu0 0
  %451 = vmatprep.subr.bf16.mxu0 0
  %452 = vmatpush2.bf16.msra.mxu0 0
  %453 = vmatprep.subr.bf16.mxu0 0
  %454 = vmatpush2.bf16.msra.mxu0 0
  %455 = vmatprep.subr.bf16.mxu0 0
  %456 = vmatpush2.bf16.msra.mxu0 0
  %457 = vmatprep.subr.bf16.mxu0 0
  %458 = vmatpush2.bf16.msra.mxu0 0
  %459 = vmatprep.subr.bf16.mxu0 0
  %460 = vmatpush2.bf16.msra.mxu0 0
  %461 = vmatprep.subr.bf16.mxu0 0
  %462 = vmatpush2.bf16.msra.mxu0 0
  %463 = vmatprep.subr.bf16.mxu0 0
  %464 = vmatpush2.bf16.msra.mxu0 0
  %465 = vmatprep.mubr.bf16.mxu0 0
  %466 = vmatmul.mubr.bf16.gmra.mxu0 %v313
  %v467 = vpop.f32.mrf.mxu0
  %v468 = vadd.f32 %v371, %v467
  %v469 = vpop.f32.mrf.mxu0
  %v470 = vpop.f32.mrf.mxu0
  %v471 = vadd.f32 %v374, %v470
  %v472 = vpop.f32.mrf.mxu0
  %473 = vmatprep.mubr.bf16.mxu0 0
  %474 = vmatmul.mubr.bf16.gmra.mxu0 %v316
  %v475 = vpop.f32.mrf.mxu0
  %v476 = vadd.f32 %v379, %v475
  %v477 = vpop.f32.mrf.mxu0
  %v478 = vpop.f32.mrf.mxu0
  %v479 = vadd.f32 %v382, %v478
  %v480 = vpop.f32.mrf.mxu0
  %481 = vmatprep.mubr.bf16.mxu0 0
  %482 = vmatmul.mubr.bf16.gmra.mxu0 %v319
  %v483 = vpop.f32.mrf.mxu0
  %v484 = vadd.f32 %v387, %v483
  %v485 = vpop.f32.mrf.mxu0
  %v486 = vpop.f32.mrf.mxu0
  %v487 = vadd.f32 %v390, %v486
  %v488 = vpop.f32.mrf.mxu0
  %489 = vmatprep.mubr.bf16.mxu0 0
  %490 = vmatmul.mubr.bf16.gmra.mxu0 %v322
  %v491 = vpop.f32.mrf.mxu0
  %v492 = vadd.f32 %v395, %v491
  %v493 = vpop.f32.mrf.mxu0
  %v494 = vpop.f32.mrf.mxu0
  %v495 = vadd.f32 %v398, %v494
  %v496 = vpop.f32.mrf.mxu0
  %497 = vmatprep.mubr.bf16.mxu0 0
  %498 = vmatmul.mubr.bf16.gmra.mxu0 %v325
  %v499 = vpop.f32.mrf.mxu0
  %v500 = vadd.f32 %v403, %v499
  %v501 = vpop.f32.mrf.mxu0
  %v502 = vpop.f32.mrf.mxu0
  %v503 = vadd.f32 %v406, %v502
  %v504 = vpop.f32.mrf.mxu0
  %505 = vmatprep.mubr.bf16.mxu0 0
  %506 = vmatmul.mubr.bf16.gmra.mxu0 %v328
  %v507 = vpop.f32.mrf.mxu0
  %v508 = vadd.f32 %v411, %v507
  %v509 = vpop.f32.mrf.mxu0
  %v510 = vpop.f32.mrf.mxu0
  %v511 = vadd.f32 %v414, %v510
  %v512 = vpop.f32.mrf.mxu0
  %513 = vmatprep.mubr.bf16.mxu0 0
  %514 = vmatmul.mubr.bf16.gmra.mxu0 %v331
  %v515 = vpop.f32.mrf.mxu0
  %v516 = vadd.f32 %v419, %v515
  %v517 = vpop.f32.mrf.mxu0
  %v518 = vpop.f32.mrf.mxu0
  %v519 = vadd.f32 %v422, %v518
  %v520 = vpop.f32.mrf.mxu0
  %521 = vmatprep.mubr.bf16.mxu0 0
  %522 = vmatmul.mubr.bf16.gmra.mxu0 %v334
  %v523 = vpop.f32.mrf.mxu0
  %v524 = vadd.f32 %v427, %v523
  %v525 = vpop.f32.mrf.mxu0
  %v526 = vpop.f32.mrf.mxu0
  %v527 = vadd.f32 %v430, %v526
  %v528 = vpop.f32.mrf.mxu0
  %529 = vdwg.mxu0
  %530 = vst.msk [vmem:[%s2] sm:$0xff] %vm311, %v468
  %531 = vst.msk [vmem:[%s2 + $0x8] sm:$0xff] %vm311, %v471
  %532 = vst.msk [vmem:[%s2 + $0x10] sm:$0xff] %vm311, %v476
  %533 = vst.msk [vmem:[%s2 + $0x18] sm:$0xff] %vm311, %v479
  %534 = vst.msk [vmem:[%s2 + $0x20] sm:$0xff] %vm311, %v484
  %535 = vst.msk [vmem:[%s2 + $0x28] sm:$0xff] %vm311, %v487
  %536 = vst.msk [vmem:[%s2 + $0x30] sm:$0xff] %vm311, %v492
  %537 = vst.msk [vmem:[%s2 + $0x38] sm:$0xff] %vm311, %v495
  %538 = vst.msk [vmem:[%s2 + $0x40] sm:$0xff] %vm311, %v500
  %539 = vst.msk [vmem:[%s2 + $0x48] sm:$0xff] %vm311, %v503
  %540 = vst.msk [vmem:[%s2 + $0x50] sm:$0xff] %vm311, %v508
  %541 = vst.msk [vmem:[%s2 + $0x58] sm:$0xff] %vm311, %v511
  %542 = vst.msk [vmem:[%s2 + $0x60] sm:$0xff] %vm311, %v516
  %543 = vst.msk [vmem:[%s2 + $0x68] sm:$0xff] %vm311, %v519
  %544 = vst.msk [vmem:[%s2 + $0x70] sm:$0xff] %vm311, %v524
  %545 = vst.msk [vmem:[%s2 + $0x78] sm:$0xff] %vm311, %v527
  %p546 = scmp.eq.s32.totalorder 0, 0
  // Predicated region
  $region10: #{usrm3_forward.12} parent=0 // pred_check
    %p547 = pneg %p546
  $region11: #{usrm3_forward.12} parent=0 // pred_check_branch
    %549 = sbr.rel (%p547) target = $region13
  $region12: #{usrm3_forward.12} parent=0 // pred_region
    %vm550 = vcmask 253952
    %551 = vst.msk [vmem:[%s3] sm:$0x1] %vm550, 0.0
    %552 = vst.msk [vmem:[%s4] sm:$0x1] %vm550, 0.0
  $region13: #{usrm3_forward.12} parent=0 // pred_fallthru
    _
  %v553 = vld [vmem:[%s3] sm:$0x1]
  %v554 = vsel %vm311, %v468, 0.0
  %v555 = vsel %vm311, %v471, 0.0
  %v556 = vadd.f32 %v554, %v555
  %v557 = vsel %vm311, %v476, 0.0
  %v558 = vadd.f32 %v556, %v557
  %v559 = vsel %vm311, %v479, 0.0
  %v560 = vadd.f32 %v558, %v559
  %v561 = vsel %vm311, %v484, 0.0
  %v562 = vadd.f32 %v560, %v561
  %v563 = vsel %vm311, %v487, 0.0
  %v564 = vadd.f32 %v562, %v563
  %v565 = vsel %vm311, %v492, 0.0
  %v566 = vadd.f32 %v564, %v565
  %v567 = vsel %vm311, %v495, 0.0
  %v568 = vadd.f32 %v566, %v567
  %v569 = vsel %vm311, %v500, 0.0
  %v570 = vadd.f32 %v568, %v569
  %v571 = vsel %vm311, %v503, 0.0
  %v572 = vadd.f32 %v570, %v571
  %v573 = vsel %vm311, %v508, 0.0
  %v574 = vadd.f32 %v572, %v573
  %v575 = vsel %vm311, %v511, 0.0
  %v576 = vadd.f32 %v574, %v575
  %v577 = vsel %vm311, %v516, 0.0
  %v578 = vadd.f32 %v576, %v577
  %v579 = vsel %vm311, %v519, 0.0
  %v580 = vadd.f32 %v578, %v579
  %v581 = vsel %vm311, %v524, 0.0
  %v582 = vadd.f32 %v580, %v581
  %v583 = vsel %vm311, %v527, 0.0
  %v584 = vadd.f32 %v582, %v583
  %v585 = vrot.slane %v584, 4
  %v586 = vadd.f32 %v584, %v585
  %v587 = vrot.slane %v586, 2
  %v588 = vadd.f32 %v586, %v587
  %v589 = vrot.slane %v588, 1
  %v590 = vadd.f32 %v588, %v589
  %v591 = vadd.f32 %v553, %v590
  %vm592 = vcmask 253952
  %593 = vst.msk [vmem:[%s3] sm:$0x1] %vm592, %v591
  %v594 = vld [vmem:[%s4] sm:$0x1]
  %v595 = vmul.f32 %v468, %v468
  %v596 = vmul.f32 %v471, %v471
  %v597 = vmul.f32 %v476, %v476
  %v598 = vmul.f32 %v479, %v479
  %v599 = vmul.f32 %v484, %v484
  %v600 = vmul.f32 %v487, %v487
  %v601 = vmul.f32 %v492, %v492
  %v602 = vmul.f32 %v495, %v495
  %v603 = vmul.f32 %v500, %v500
  %v604 = vmul.f32 %v503, %v503
  %v605 = vmul.f32 %v508, %v508
  %v606 = vmul.f32 %v511, %v511
  %v607 = vmul.f32 %v516, %v516
  %v608 = vmul.f32 %v519, %v519
  %v609 = vmul.f32 %v524, %v524
  %v610 = vmul.f32 %v527, %v527
  %v611 = vsel %vm311, %v595, 0.0
  %v612 = vsel %vm311, %v596, 0.0
  %v613 = vadd.f32 %v611, %v612
  %v614 = vsel %vm311, %v597, 0.0
  %v615 = vadd.f32 %v613, %v614
  %v616 = vsel %vm311, %v598, 0.0
  %v617 = vadd.f32 %v615, %v616
  %v618 = vsel %vm311, %v599, 0.0
  %v619 = vadd.f32 %v617, %v618
  %v620 = vsel %vm311, %v600, 0.0
  %v621 = vadd.f32 %v619, %v620
  %v622 = vsel %vm311, %v601, 0.0
  %v623 = vadd.f32 %v621, %v622
  %v624 = vsel %vm311, %v602, 0.0
  %v625 = vadd.f32 %v623, %v624
  %v626 = vsel %vm311, %v603, 0.0
  %v627 = vadd.f32 %v625, %v626
  %v628 = vsel %vm311, %v604, 0.0
  %v629 = vadd.f32 %v627, %v628
  %v630 = vsel %vm311, %v605, 0.0
  %v631 = vadd.f32 %v629, %v630
  %v632 = vsel %vm311, %v606, 0.0
  %v633 = vadd.f32 %v631, %v632
  %v634 = vsel %vm311, %v607, 0.0
  %v635 = vadd.f32 %v633, %v634
  %v636 = vsel %vm311, %v608, 0.0
  %v637 = vadd.f32 %v635, %v636
  %v638 = vsel %vm311, %v609, 0.0
  %v639 = vadd.f32 %v637, %v638
  %v640 = vsel %vm311, %v610, 0.0
  %v641 = vadd.f32 %v639, %v640
  %v642 = vrot.slane %v641, 4
  %v643 = vadd.f32 %v641, %v642
  %v644 = vrot.slane %v643, 2
  %v645 = vadd.f32 %v643, %v644
  %v646 = vrot.slane %v645, 1
  %v647 = vadd.f32 %v645, %v646
  %v648 = vadd.f32 %v594, %v647
  %649 = vst.msk [vmem:[%s4] sm:$0x1] %vm592, %v648
  // Predicated region
  $region14: #{usrm3_forward.12} parent=0 // pred_check
    _
  $region15: #{usrm3_forward.12} parent=0 // pred_check_branch
    %651 = sbr.rel (0) target = $region17
  $region16: #{usrm3_forward.12} parent=0 // pred_region
    _
  $region17: #{usrm3_forward.12} parent=0 // pred_fallthru
    _
  // Predicated region
  $region18: #{usrm3_forward.12} parent=0 // pred_check
    _
  $region19: #{usrm3_forward.12} parent=0 // pred_check_branch
    %653 = sbr.rel (0) target = $region21
  $region20: #{usrm3_forward.12} parent=0 // pred_region
    _
  $region21: #{usrm3_forward.12} parent=0 // pred_fallthru
    _
  // Predicated region
  $region22: #{usrm3_forward.12} parent=0 // pred_check
    _
  $region23: #{usrm3_forward.12} parent=0 // pred_check_branch
    %655 = sbr.rel (0) target = $region25
  $region24: #{usrm3_forward.12} parent=0 // pred_region
    _
  $region25: #{usrm3_forward.12} parent=0 // pred_fallthru
    _
  // Predicated region
  $region26: #{usrm3_forward.12} parent=0 // pred_check
    _
  $region27: #{usrm3_forward.12} parent=0 // pred_check_branch
    %657 = sbr.rel (0) target = $region29
  $region28: #{usrm3_forward.12} parent=0 // pred_region
    _
  $region29: #{usrm3_forward.12} parent=0 // pred_fallthru
    _
  // Predicated region
  $region30: #{usrm3_forward.12} parent=0 // pred_check
    _
  $region31: #{usrm3_forward.12} parent=0 // pred_check_branch
    %659 = sbr.rel (0) target = $region33
  $region32: #{usrm3_forward.12} parent=0 // pred_region
    _
  $region33: #{usrm3_forward.12} parent=0 // pred_fallthru
    _
  // Predicated region
  $region34: #{usrm3_forward.12} parent=0 // pred_check
    _
  $region35: #{usrm3_forward.12} parent=0 // pred_check_branch
    %661 = sbr.rel (0) target = $region37
  $region36: #{usrm3_forward.12} parent=0 // pred_region
    _
  $region37: #{usrm3_forward.12} parent=0 // pred_fallthru
    _

// kernel: tile.73
$region0: #{tile.73}
  #allocation0 [shape = 's32[1]{0}', space=sflag, size = 0x4, scoped, tag = 'scoped memory for tile.73']
  %s0 = inlined_call_operand.vmem [shape: f32[32], index: 0, kind: input, shape index: {}]
  %s1 = inlined_call_operand.vmem [shape: f32[4,32], index: 1, kind: output, shape index: {}]
  // Predicated region
  $region2: #{tile.73} parent=0 // pred_check
    _
  $region3: #{tile.73} parent=0 // pred_check_branch
    %3 = sbr.rel (0) target = $region5
  $region4: #{tile.73} parent=0 // pred_region
    _
  $region5: #{tile.73} parent=0 // pred_fallthru
    _
  %v4 = vld [vmem:[%s0] ss:$0 sm:$0xff]
  %5 = vst [vmem:[%s1] sm:$0xf] %v4

// kernel: tile.74
$region0: #{tile.74}
  %s0 = inlined_call_operand.vmem [shape: f32[4,32], index: 0, kind: input, shape index: {}]
  %s1 = inlined_call_operand.vmem [shape: f32[1,128], index: 1, kind: output, shape index: {}]
  $region1: #{tile.74} parent=0
    #allocation0 [shape = 'u8[4096]{0}', space=vmem, size = 0x1000, scoped, tag = 'scoped mem for output reshape']
    #allocation1 [shape = 'u8[4096]{0}', space=vmem, size = 0x1000, scoped, tag = 'scoped mem for input reshape']
    %s3 = sshll.u32 1, 4
    %s4 = ssub.s32 %s3, 1
    %v5 = vld [vmem:[%s0] sm:%s4]
    %6 = vst [vmem:[#allocation1] sm:%s4] %v5
    %v7 = vld [vmem:[#allocation1] sm:$0x1]
    %vm8 = vcmask 261120
    %9 = vst.msk [vmem:[#allocation0] sm:$0x1] %vm8, %v7
    %s10 = scalar_lea.vmem [#allocation1], 3
    %v11 = vld [vmem:[%s10] sm:$0x1]
    %12 = vrot.lane.b32.xlu0 %v11, 96
    %v13 = vpop.permute.xlu0 %12
    %vm14 = vcmask 1048320
    %15 = vst.msk [vmem:[#allocation0] sm:$0x1] %vm14, %v13
    %s16 = scalar_lea.vmem [#allocation1], 2
    %v17 = vld [vmem:[%s16] sm:$0x1]
    %18 = vrot.lane.b32.xlu0 %v17, 64
    %v19 = vpop.permute.xlu0 %18
    %vm20 = vcmask 785920
    %21 = vst.msk [vmem:[#allocation0] sm:$0x1] %vm20, %v19
    %s22 = scalar_lea.vmem [#allocation1], 1
    %v23 = vld [vmem:[%s22] sm:$0x1]
    %24 = vrot.lane.b32.xlu0 %v23, 32
    %v25 = vpop.permute.xlu0 %24
    %vm26 = vcmask 523520
    %27 = vst.msk [vmem:[#allocation0] sm:$0x1] %vm26, %v25
    %s29 = sshll.u32 1, 1
    %s30 = ssub.s32 %s29, 1
    %v32 = vld [vmem:[#allocation0] sm:%s30]
    %s33 = sshll.u32 1, 1
    %s34 = ssub.s32 %s33, 1
    %35 = vst [vmem:[%s1] sm:%s34] %v32

// kernel: usrm3_forward.17
$region0: #{usrm3_forward.17}
  #allocation0 [shape = 'u32[]', space=smem, size = 0x4, offset = 0x4, fixed_abs, tag = 'smem constant byte address 0x4 - core index']
  #allocation1 [shape = 'u32[144,128]{1,0:T(1,128)}', space=vmem, size = 0x12000, scoped, tag = 'internal scratch']
  %s0 = inlined_call_operand.vmem [shape: f32[8,128], index: 0, kind: input, shape index: {}]
  %s1 = inlined_call_operand.vmem [shape: f32[1,128], index: 1, kind: input, shape index: {}]
  %s2 = inlined_call_operand.vmem [shape: f32[1,128], index: 2, kind: input, shape index: {}]
  %s3 = inlined_call_operand.vmem [shape: f32[8,128], index: 3, kind: input, shape index: {}]
  %s4 = inlined_call_operand.vmem [shape: f32[8,128], index: 4, kind: output, shape index: {}]
  %s5 = sld [smem:[#allocation0]]
  $region26: #{usrm3_forward.17} parent=0
    _
  %s7 = ssub.s32 1, %s5
  %s8 = scalar_select 0, %s7, %s5
  // Predicated region
  $region2: #{usrm3_forward.17} parent=0 // pred_check
    _
  $region3: #{usrm3_forward.17} parent=0 // pred_check_branch
    %10 = sbr.rel (0) target = $region5
  $region4: #{usrm3_forward.17} parent=0 // pred_region
    _
  $region5: #{usrm3_forward.17} parent=0 // pred_fallthru
    _
  // Predicated region
  $region6: #{usrm3_forward.17} parent=0 // pred_check
    _
  $region7: #{usrm3_forward.17} parent=0 // pred_check_branch
    %12 = sbr.rel (0) target = $region9
  $region8: #{usrm3_forward.17} parent=0 // pred_region
    _
  $region9: #{usrm3_forward.17} parent=0 // pred_fallthru
    _
  // Predicated region
  $region10: #{usrm3_forward.17} parent=0 // pred_check
    _
  $region11: #{usrm3_forward.17} parent=0 // pred_check_branch
    %14 = sbr.rel (0) target = $region13
  $region12: #{usrm3_forward.17} parent=0 // pred_region
    _
  $region13: #{usrm3_forward.17} parent=0 // pred_fallthru
    _
  // Predicated region
  $region14: #{usrm3_forward.17} parent=0 // pred_check
    _
  $region15: #{usrm3_forward.17} parent=0 // pred_check_branch
    %16 = sbr.rel (0) target = $region17
  $region16: #{usrm3_forward.17} parent=0 // pred_region
    _
  $region17: #{usrm3_forward.17} parent=0 // pred_fallthru
    _
  %v17 = vld [vmem:[%s0] sm:$0xff]
  %v18 = vld [vmem:[%s1] sm:$0x1]
  %v20 = vlaneseq
  %v21 = vshrl.u32 %v20, 7
  %v22 = vsub.s32 0, %v21
  %v23 = vrot.slane %v18, %v22
  %v25 = vmul.f32 %v17, %v23
  %v26 = vld [vmem:[%s2] sm:$0x1]
  %v28 = vlaneseq
  %v29 = vshrl.u32 %v28, 7
  %v30 = vsub.s32 0, %v29
  %v31 = vrot.slane %v26, %v30
  %v33 = vadd.f32 %v25, %v31
  %v34 = vld [vmem:[%s3] sm:$0xff]
  %v35 = vadd.f32 %v33, %v34
  %36 = vst [vmem:[%s4] sm:$0xff] %v35
  // Predicated region
  $region18: #{usrm3_forward.17} parent=0 // pred_check
    _
  $region19: #{usrm3_forward.17} parent=0 // pred_check_branch
    %38 = sbr.rel (0) target = $region21
  $region20: #{usrm3_forward.17} parent=0 // pred_region
    _
  $region21: #{usrm3_forward.17} parent=0 // pred_fallthru
    _
  // Predicated region
  $region22: #{usrm3_forward.17} parent=0 // pred_check
    _
  $region23: #{usrm3_forward.17} parent=0 // pred_check_branch
    %40 = sbr.rel (0) target = $region25
  $region24: #{usrm3_forward.17} parent=0 // pred_region
    _
  $region25: #{usrm3_forward.17} parent=0 // pred_fallthru
    _

// kernel: usrm3_forward.15
$region0: #{usrm3_forward.15}
  #allocation0 [shape = 'u32[]', space=smem, size = 0x4, offset = 0x4, fixed_abs, tag = 'smem constant byte address 0x4 - core index']
  #allocation1 [shape = 'u32[144,128]{1,0:T(1,128)}', space=vmem, size = 0x12000, scoped, tag = 'internal scratch']
  %s0 = inlined_call_operand.vmem [shape: f32[8,128], index: 0, kind: input, shape index: {}]
  %s1 = inlined_call_operand.vmem [shape: f32[1,128], index: 1, kind: input, shape index: {}]
  %s2 = inlined_call_operand.vmem [shape: f32[1,128], index: 2, kind: input, shape index: {}]
  %s3 = inlined_call_operand.vmem [shape: f32[8,128], index: 3, kind: output, shape index: {}]
  %s4 = sld [smem:[#allocation0]]
  $region22: #{usrm3_forward.15} parent=0
    _
  %s6 = ssub.s32 1, %s4
  %s7 = scalar_select 0, %s6, %s4
  // Predicated region
  $region2: #{usrm3_forward.15} parent=0 // pred_check
    _
  $region3: #{usrm3_forward.15} parent=0 // pred_check_branch
    %9 = sbr.rel (0) target = $region5
  $region4: #{usrm3_forward.15} parent=0 // pred_region
    _
  $region5: #{usrm3_forward.15} parent=0 // pred_fallthru
    _
  // Predicated region
  $region6: #{usrm3_forward.15} parent=0 // pred_check
    _
  $region7: #{usrm3_forward.15} parent=0 // pred_check_branch
    %11 = sbr.rel (0) target = $region9
  $region8: #{usrm3_forward.15} parent=0 // pred_region
    _
  $region9: #{usrm3_forward.15} parent=0 // pred_fallthru
    _
  // Predicated region
  $region10: #{usrm3_forward.15} parent=0 // pred_check
    _
  $region11: #{usrm3_forward.15} parent=0 // pred_check_branch
    %13 = sbr.rel (0) target = $region13
  $region12: #{usrm3_forward.15} parent=0 // pred_region
    _
  $region13: #{usrm3_forward.15} parent=0 // pred_fallthru
    _
  %v14 = vld [vmem:[%s0] sm:$0xff]
  %v15 = vld [vmem:[%s1] sm:$0x1]
  %v17 = vlaneseq
  %v18 = vshrl.u32 %v17, 7
  %v19 = vsub.s32 0, %v18
  %v20 = vrot.slane %v15, %v19
  %v22 = vmul.f32 %v14, %v20
  %v23 = vld [vmem:[%s2] sm:$0x1]
  %v25 = vlaneseq
  %v26 = vshrl.u32 %v25, 7
  %v27 = vsub.s32 0, %v26
  %v28 = vrot.slane %v23, %v27
  %v30 = vadd.f32 %v22, %v28
  %31 = vst [vmem:[%s3] sm:$0xff] %v30
  // Predicated region
  $region14: #{usrm3_forward.15} parent=0 // pred_check
    _
  $region15: #{usrm3_forward.15} parent=0 // pred_check_branch
    %33 = sbr.rel (0) target = $region17
  $region16: #{usrm3_forward.15} parent=0 // pred_region
    _
  $region17: #{usrm3_forward.15} parent=0 // pred_fallthru
    _
  // Predicated region
  $region18: #{usrm3_forward.15} parent=0 // pred_check
    _
  $region19: #{usrm3_forward.15} parent=0 // pred_check_branch
    %35 = sbr.rel (0) target = $region21
  $region20: #{usrm3_forward.15} parent=0 // pred_region
    _
  $region21: #{usrm3_forward.15} parent=0 // pred_fallthru
    _

// kernel: usrm3_forward.14
$region0: #{usrm3_forward.14}
  #allocation0 [shape = 'u32[]', space=smem, size = 0x4, offset = 0x4, fixed_abs, tag = 'smem constant byte address 0x4 - core index']
  #allocation1 [shape = 'u32[144,128]{1,0:T(1,128)}', space=vmem, size = 0x12000, scoped, tag = 'internal scratch']
  %s0 = inlined_call_operand.vmem [shape: bf16[32,288], index: 0, kind: input, shape index: {}]
  %s1 = inlined_call_operand.vmem [shape: bf16[288,32], index: 1, kind: input, shape index: {}]
  %s2 = inlined_call_operand.vmem [shape: f32[32,32], index: 2, kind: output, shape index: {0}]
  %s3 = inlined_call_operand.vmem [shape: f32[1,32], index: 3, kind: output, shape index: {1}]
  %s4 = inlined_call_operand.vmem [shape: f32[1,32], index: 4, kind: output, shape index: {2}]
  %5 = xla_tuple %s2, %s3, %s4
  %s6 = sld [smem:[#allocation0]]
  $region38: #{usrm3_forward.14} parent=0
    _
  %s8 = ssub.s32 1, %s6
  %s9 = scalar_select 0, %s8, %s6
  // Predicated region
  $region2: #{usrm3_forward.14} parent=0 // pred_check
    _
  $region3: #{usrm3_forward.14} parent=0 // pred_check_branch
    %11 = sbr.rel (0) target = $region5
  $region4: #{usrm3_forward.14} parent=0 // pred_region
    _
  $region5: #{usrm3_forward.14} parent=0 // pred_fallthru
    _
  // Predicated region
  $region6: #{usrm3_forward.14} parent=0 // pred_check
    _
  $region7: #{usrm3_forward.14} parent=0 // pred_check_branch
    %13 = sbr.rel (0) target = $region9
  $region8: #{usrm3_forward.14} parent=0 // pred_region
    _
  $region9: #{usrm3_forward.14} parent=0 // pred_fallthru
    _
  %v15 = vld [vmem:[%s0] sm:$0xff]
  %v16 = vld [vmem:[%s0 + $0x8] sm:$0xf]
  %v17 = vld [vmem:[%s0 + $0xc] sm:$0xff]
  %v18 = vld [vmem:[%s0 + $0x14] sm:$0xf]
  %v19 = vld [vmem:[%s0 + $0x18] sm:$0xff]
  %v20 = vld [vmem:[%s0 + $0x20] sm:$0xf]
  %v21 = vld [vmem:[%s0 + $0x24] sm:$0xff]
  %v22 = vld [vmem:[%s0 + $0x2c] sm:$0xf]
  %v23 = vld [vmem:[%s1] sm:$0xf]
  %v24 = vld [vmem:[%s1 + $0x4] sm:$0xf]
  %v25 = vld [vmem:[%s1 + $0x8] sm:$0xf]
  %v26 = vld [vmem:[%s1 + $0xc] sm:$0xf]
  %v27 = vld [vmem:[%s1 + $0x10] sm:$0xf]
  %v28 = vld [vmem:[%s1 + $0x14] sm:$0xf]
  %v29 = vld [vmem:[%s1 + $0x18] sm:$0xf]
  %v30 = vld [vmem:[%s1 + $0x1c] sm:$0xf]
  %v31 = vld [vmem:[%s1 + $0x20] sm:$0xf]
  %v32 = vld [vmem:[%s1 + $0x24] sm:$0xf]
  %v33 = vld [vmem:[%s1 + $0x28] sm:$0xf]
  %v34 = vld [vmem:[%s1 + $0x2c] sm:$0xf]
  %v35 = vld [vmem:[%s1 + $0x30] sm:$0xf]
  %v36 = vld [vmem:[%s1 + $0x34] sm:$0xf]
  %v37 = vld [vmem:[%s1 + $0x38] sm:$0xf]
  %v38 = vld [vmem:[%s1 + $0x3c] sm:$0xf]
  %v39 = vld [vmem:[%s1 + $0x40] sm:$0xf]
  %v40 = vld [vmem:[%s1 + $0x44] sm:$0xf]
  %v41 = vld [vmem:[%s1 + $0x48] sm:$0xf]
  %v42 = vld [vmem:[%s1 + $0x4c] sm:$0xf]
  %v43 = vld [vmem:[%s1 + $0x50] sm:$0xf]
  %v44 = vld [vmem:[%s1 + $0x54] sm:$0xf]
  %v45 = vld [vmem:[%s1 + $0x58] sm:$0xf]
  %v46 = vld [vmem:[%s1 + $0x5c] sm:$0xf]
  %v47 = vld [vmem:[%s1 + $0x60] sm:$0xf]
  %v48 = vld [vmem:[%s1 + $0x64] sm:$0xf]
  %v49 = vld [vmem:[%s1 + $0x68] sm:$0xf]
  %v50 = vld [vmem:[%s1 + $0x6c] sm:$0xf]
  %v51 = vld [vmem:[%s1 + $0x70] sm:$0xf]
  %v52 = vld [vmem:[%s1 + $0x74] sm:$0xf]
  %v53 = vld [vmem:[%s1 + $0x78] sm:$0xf]
  %v54 = vld [vmem:[%s1 + $0x7c] sm:$0xf]
  %v55 = vld [vmem:[%s1 + $0x80] sm:$0xf]
  %v56 = vld [vmem:[%s1 + $0x84] sm:$0xf]
  %v57 = vld [vmem:[%s1 + $0x88] sm:$0xf]
  %v58 = vld [vmem:[%s1 + $0x8c] sm:$0xf]
  %v67 = vunpack.c.l.b16 %v15
  %v68 = vunpack.c.h.b16 %v15
  %v69 = vunpack.c.l.b16 %v16
  %v70 = vunpack.c.l.b16 %v17
  %v71 = vunpack.c.h.b16 %v17
  %v72 = vunpack.c.l.b16 %v18
  %v73 = vunpack.c.l.b16 %v19
  %v74 = vunpack.c.h.b16 %v19
  %v75 = vunpack.c.l.b16 %v20
  %v76 = vunpack.c.l.b16 %v21
  %v77 = vunpack.c.h.b16 %v21
  %v78 = vunpack.c.l.b16 %v22
  %v79 = vpack.c.b16 %v70, %v67
  %v80 = vpack.c.b16 %v71, %v68
  %v81 = vpack.c.b16 %v72, %v69
  %v82 = vpack.c.b16 %v76, %v73
  %v83 = vpack.c.b16 %v77, %v74
  %v84 = vpack.c.b16 %v78, %v75
  %v125 = vunpack.c.l.b16 %v23
  %v126 = vunpack.c.l.b16 %v24
  %v127 = vunpack.c.l.b16 %v25
  %v128 = vunpack.c.l.b16 %v26
  %v129 = vunpack.c.l.b16 %v27
  %v130 = vunpack.c.l.b16 %v28
  %v131 = vunpack.c.l.b16 %v29
  %v132 = vunpack.c.l.b16 %v30
  %v133 = vunpack.c.l.b16 %v31
  %v134 = vunpack.c.l.b16 %v32
  %v135 = vunpack.c.l.b16 %v33
  %v136 = vunpack.c.l.b16 %v34
  %v137 = vunpack.c.l.b16 %v35
  %v138 = vunpack.c.l.b16 %v36
  %v139 = vunpack.c.l.b16 %v37
  %v140 = vunpack.c.l.b16 %v38
  %v141 = vunpack.c.l.b16 %v39
  %v142 = vunpack.c.l.b16 %v40
  %v143 = vunpack.c.l.b16 %v41
  %v144 = vunpack.c.l.b16 %v42
  %v145 = vunpack.c.l.b16 %v43
  %v146 = vunpack.c.l.b16 %v44
  %v147 = vunpack.c.l.b16 %v45
  %v148 = vunpack.c.l.b16 %v46
  %v149 = vunpack.c.l.b16 %v47
  %v150 = vunpack.c.l.b16 %v48
  %v151 = vunpack.c.l.b16 %v49
  %v152 = vunpack.c.l.b16 %v50
  %v153 = vunpack.c.l.b16 %v51
  %v154 = vunpack.c.l.b16 %v52
  %v155 = vunpack.c.l.b16 %v53
  %v156 = vunpack.c.l.b16 %v54
  %v157 = vunpack.c.l.b16 %v55
  %v158 = vunpack.c.l.b16 %v56
  %v159 = vunpack.c.l.b16 %v57
  %v160 = vunpack.c.l.b16 %v58
  %v161 = vpack.c.b16 %v126, %v125
  %v162 = vpack.c.b16 %v128, %v127
  %v163 = vpack.c.b16 %v130, %v129
  %v164 = vpack.c.b16 %v132, %v131
  %v165 = vpack.c.b16 %v134, %v133
  %v166 = vpack.c.b16 %v136, %v135
  %v167 = vpack.c.b16 %v138, %v137
  %v168 = vpack.c.b16 %v140, %v139
  %v169 = vpack.c.b16 %v142, %v141
  %v170 = vpack.c.b16 %v144, %v143
  %v171 = vpack.c.b16 %v146, %v145
  %v172 = vpack.c.b16 %v148, %v147
  %v173 = vpack.c.b16 %v150, %v149
  %v174 = vpack.c.b16 %v152, %v151
  %v175 = vpack.c.b16 %v154, %v153
  %v176 = vpack.c.b16 %v156, %v155
  %v177 = vpack.c.b16 %v158, %v157
  %v178 = vpack.c.b16 %v160, %v159
  %vm197 = vcmask 261120
  %v199 = vsel %vm197, %v81, 0
  %v202 = vsel %vm197, %v84, 0
  %204 = vmatprep.subr.bf16.mxu0 0
  %205 = vmatpush1.bf16.msra.mxu0 %v168
  %206 = vmatprep.subr.bf16.mxu0 0
  %207 = vmatpush1.bf16.msra.mxu0 %v167
  %208 = vmatprep.subr.bf16.mxu0 0
  %209 = vmatpush1.bf16.msra.mxu0 %v166
  %210 = vmatprep.subr.bf16.mxu0 0
  %211 = vmatpush1.bf16.msra.mxu0 %v165
  %212 = vmatprep.subr.bf16.mxu0 0
  %213 = vmatpush1.bf16.msra.mxu0 %v164
  %214 = vmatprep.subr.bf16.mxu0 0
  %215 = vmatpush1.bf16.msra.mxu0 %v163
  %216 = vmatprep.subr.bf16.mxu0 0
  %217 = vmatpush1.bf16.msra.mxu0 %v162
  %218 = vmatprep.subr.bf16.mxu0 0
  %219 = vmatpush1.bf16.msra.mxu0 %v161
  %220 = vmatprep.subr.bf16.mxu0 0
  %221 = vmatpush2.bf16.msra.mxu0 %v176
  %222 = vmatprep.subr.bf16.mxu0 0
  %223 = vmatpush2.bf16.msra.mxu0 %v175
  %224 = vmatprep.subr.bf16.mxu0 0
  %225 = vmatpush2.bf16.msra.mxu0 %v174
  %226 = vmatprep.subr.bf16.mxu0 0
  %227 = vmatpush2.bf16.msra.mxu0 %v173
  %228 = vmatprep.subr.bf16.mxu0 0
  %229 = vmatpush2.bf16.msra.mxu0 %v172
  %230 = vmatprep.subr.bf16.mxu0 0
  %231 = vmatpush2.bf16.msra.mxu0 %v171
  %232 = vmatprep.subr.bf16.mxu0 0
  %233 = vmatpush2.bf16.msra.mxu0 %v170
  %234 = vmatprep.subr.bf16.mxu0 0
  %235 = vmatpush2.bf16.msra.mxu0 %v169
  %236 = vmatprep.mubr.bf16.mxu0 %v80
  %237 = vmatmul.mubr.bf16.gmra.mxu0 %v79
  %v238 = vpop.f32.mrf.mxu0
  %v239 = vadd.f32 0.0, %v238
  %v240 = vpop.f32.mrf.mxu0
  %v241 = vpop.f32.mrf.mxu0
  %v242 = vadd.f32 0.0, %v241
  %v243 = vpop.f32.mrf.mxu0
  %244 = vmatprep.mubr.bf16.mxu0 %v83
  %245 = vmatmul.mubr.bf16.gmra.mxu0 %v82
  %v246 = vpop.f32.mrf.mxu0
  %v247 = vadd.f32 0.0, %v246
  %v248 = vpop.f32.mrf.mxu0
  %v249 = vpop.f32.mrf.mxu0
  %v250 = vadd.f32 0.0, %v249
  %v251 = vpop.f32.mrf.mxu0
  %252 = vdwg.mxu0
  %253 = vmatprep.subr.bf16.mxu0 0
  %254 = vmatpush1.bf16.msra.mxu0 0
  %255 = vmatprep.subr.bf16.mxu0 0
  %256 = vmatpush1.bf16.msra.mxu0 0
  %257 = vmatprep.subr.bf16.mxu0 0
  %258 = vmatpush1.bf16.msra.mxu0 0
  %259 = vmatprep.subr.bf16.mxu0 0
  %260 = vmatpush1.bf16.msra.mxu0 0
  %261 = vmatprep.subr.bf16.mxu0 0
  %262 = vmatpush1.bf16.msra.mxu0 0
  %263 = vmatprep.subr.bf16.mxu0 0
  %264 = vmatpush1.bf16.msra.mxu0 0
  %265 = vmatprep.subr.bf16.mxu0 0
  %266 = vmatpush1.bf16.msra.mxu0 %v178
  %267 = vmatprep.subr.bf16.mxu0 0
  %268 = vmatpush1.bf16.msra.mxu0 %v177
  %269 = vmatprep.subr.bf16.mxu0 0
  %270 = vmatpush2.bf16.msra.mxu0 0
  %271 = vmatprep.subr.bf16.mxu0 0
  %272 = vmatpush2.bf16.msra.mxu0 0
  %273 = vmatprep.subr.bf16.mxu0 0
  %274 = vmatpush2.bf16.msra.mxu0 0
  %275 = vmatprep.subr.bf16.mxu0 0
  %276 = vmatpush2.bf16.msra.mxu0 0
  %277 = vmatprep.subr.bf16.mxu0 0
  %278 = vmatpush2.bf16.msra.mxu0 0
  %279 = vmatprep.subr.bf16.mxu0 0
  %280 = vmatpush2.bf16.msra.mxu0 0
  %281 = vmatprep.subr.bf16.mxu0 0
  %282 = vmatpush2.bf16.msra.mxu0 0
  %283 = vmatprep.subr.bf16.mxu0 0
  %284 = vmatpush2.bf16.msra.mxu0 0
  %285 = vmatprep.mubr.bf16.mxu0 0
  %286 = vmatmul.mubr.bf16.gmra.mxu0 %v199
  %v287 = vpop.f32.mrf.mxu0
  %v288 = vadd.f32 %v239, %v287
  %v289 = vpop.f32.mrf.mxu0
  %v290 = vpop.f32.mrf.mxu0
  %v291 = vadd.f32 %v242, %v290
  %v292 = vpop.f32.mrf.mxu0
  %293 = vmatprep.mubr.bf16.mxu0 0
  %294 = vmatmul.mubr.bf16.gmra.mxu0 %v202
  %v295 = vpop.f32.mrf.mxu0
  %v296 = vadd.f32 %v247, %v295
  %v297 = vpop.f32.mrf.mxu0
  %v298 = vpop.f32.mrf.mxu0
  %v299 = vadd.f32 %v250, %v298
  %v300 = vpop.f32.mrf.mxu0
  %301 = vdwg.mxu0
  %302 = vst.msk [vmem:[%s2] sm:$0xff] %vm197, %v288
  %303 = vst.msk [vmem:[%s2 + $0x8] sm:$0xff] %vm197, %v291
  %304 = vst.msk [vmem:[%s2 + $0x10] sm:$0xff] %vm197, %v296
  %305 = vst.msk [vmem:[%s2 + $0x18] sm:$0xff] %vm197, %v299
  %p306 = scmp.eq.s32.totalorder 0, 0
  // Predicated region
  $region10: #{usrm3_forward.14} parent=0 // pred_check
    %p307 = pneg %p306
  $region11: #{usrm3_forward.14} parent=0 // pred_check_branch
    %309 = sbr.rel (%p307) target = $region13
  $region12: #{usrm3_forward.14} parent=0 // pred_region
    %vm310 = vcmask 253952
    %311 = vst.msk [vmem:[%s3] sm:$0x1] %vm310, 0.0
    %312 = vst.msk [vmem:[%s4] sm:$0x1] %vm310, 0.0
  $region13: #{usrm3_forward.14} parent=0 // pred_fallthru
    _
  %v313 = vld [vmem:[%s3] sm:$0x1]
  %v314 = vsel %vm197, %v288, 0.0
  %v315 = vsel %vm197, %v291, 0.0
  %v316 = vadd.f32 %v314, %v315
  %v317 = vsel %vm197, %v296, 0.0
  %v318 = vadd.f32 %v316, %v317
  %v319 = vsel %vm197, %v299, 0.0
  %v320 = vadd.f32 %v318, %v319
  %v321 = vrot.slane %v320, 4
  %v322 = vadd.f32 %v320, %v321
  %v323 = vrot.slane %v322, 2
  %v324 = vadd.f32 %v322, %v323
  %v325 = vrot.slane %v324, 1
  %v326 = vadd.f32 %v324, %v325
  %v327 = vadd.f32 %v313, %v326
  %vm328 = vcmask 253952
  %329 = vst.msk [vmem:[%s3] sm:$0x1] %vm328, %v327
  %v330 = vld [vmem:[%s4] sm:$0x1]
  %v331 = vmul.f32 %v288, %v288
  %v332 = vmul.f32 %v291, %v291
  %v333 = vmul.f32 %v296, %v296
  %v334 = vmul.f32 %v299, %v299
  %v335 = vsel %vm197, %v331, 0.0
  %v336 = vsel %vm197, %v332, 0.0
  %v337 = vadd.f32 %v335, %v336
  %v338 = vsel %vm197, %v333, 0.0
  %v339 = vadd.f32 %v337, %v338
  %v340 = vsel %vm197, %v334, 0.0
  %v341 = vadd.f32 %v339, %v340
  %v342 = vrot.slane %v341, 4
  %v343 = vadd.f32 %v341, %v342
  %v344 = vrot.slane %v343, 2
  %v345 = vadd.f32 %v343, %v344
  %v346 = vrot.slane %v345, 1
  %v347 = vadd.f32 %v345, %v346
  %v348 = vadd.f32 %v330, %v347
  %349 = vst.msk [vmem:[%s4] sm:$0x1] %vm328, %v348
  // Predicated region
  $region14: #{usrm3_forward.14} parent=0 // pred_check
    _
  $region15: #{usrm3_forward.14} parent=0 // pred_check_branch
    %351 = sbr.rel (0) target = $region17
  $region16: #{usrm3_forward.14} parent=0 // pred_region
    _
  $region17: #{usrm3_forward.14} parent=0 // pred_fallthru
    _
  // Predicated region
  $region18: #{usrm3_forward.14} parent=0 // pred_check
    _
  $region19: #{usrm3_forward.14} parent=0 // pred_check_branch
    %353 = sbr.rel (0) target = $region21
  $region20: #{usrm3_forward.14} parent=0 // pred_region
    _
  $region21: #{usrm3_forward.14} parent=0 // pred_fallthru
    _
  // Predicated region
  $region22: #{usrm3_forward.14} parent=0 // pred_check
    _
  $region23: #{usrm3_forward.14} parent=0 // pred_check_branch
    %355 = sbr.rel (0) target = $region25
  $region24: #{usrm3_forward.14} parent=0 // pred_region
    _
  $region25: #{usrm3_forward.14} parent=0 // pred_fallthru
    _
  // Predicated region
  $region26: #{usrm3_forward.14} parent=0 // pred_check
    _
  $region27: #{usrm3_forward.14} parent=0 // pred_check_branch
    %357 = sbr.rel (0) target = $region29
  $region28: #{usrm3_forward.14} parent=0 // pred_region
    _
  $region29: #{usrm3_forward.14} parent=0 // pred_fallthru
    _
  // Predicated region
  $region30: #{usrm3_forward.14} parent=0 // pred_check
    _
  $region31: #{usrm3_forward.14} parent=0 // pred_check_branch
    %359 = sbr.rel (0) target = $region33
  $region32: #{usrm3_forward.14} parent=0 // pred_region
    _
  $region33: #{usrm3_forward.14} parent=0 // pred_fallthru
    _
  // Predicated region
  $region34: #{usrm3_forward.14} parent=0 // pred_check
    _
  $region35: #{usrm3_forward.14} parent=0 // pred_check_branch
    %361 = sbr.rel (0) target = $region37
  $region36: #{usrm3_forward.14} parent=0 // pred_region
    _
  $region37: #{usrm3_forward.14} parent=0 // pred_fallthru
    _

// kernel: tile.103
$region0: #{tile.103}
  #allocation0 [shape = 's32[1]{0}', space=sflag, size = 0x4, scoped, tag = 'scoped memory for tile.103']
  %s0 = inlined_call_operand.vmem [shape: f32[32], index: 0, kind: input, shape index: {}]
  %s1 = inlined_call_operand.vmem [shape: f32[16,32], index: 1, kind: output, shape index: {}]
  // Predicated region
  $region2: #{tile.103} parent=0 // pred_check
    _
  $region3: #{tile.103} parent=0 // pred_check_branch
    %3 = sbr.rel (0) target = $region5
  $region4: #{tile.103} parent=0 // pred_region
    _
  $region5: #{tile.103} parent=0 // pred_fallthru
    _
  %v4 = vld [vmem:[%s0] ss:$0 sm:$0xff]
  %5 = vst [vmem:[%s1] sm:$0xff] %v4
  %s6 = scalar_lea.vmem %s1, 8
  %7 = vst [vmem:[%s6] sm:$0xff] %v4

// kernel: tile.104
$region0: #{tile.104}
  %s0 = inlined_call_operand.vmem [shape: f32[16,32], index: 0, kind: input, shape index: {}]
  %s1 = inlined_call_operand.vmem [shape: f32[1,512], index: 1, kind: output, shape index: {}]
  $region1: #{tile.104} parent=0
    #allocation0 [shape = 'u8[16384]{0}', space=vmem, size = 0x4000, scoped, tag = 'scoped mem for output reshape']
    %v2 = vld [vmem:[%s0] ss:$4 sm:$0xf]
    %vm3 = vcmask 261120
    %4 = vst.msk [vmem:[#allocation0] ss:$8 sm:$0xf] %vm3, %v2
    %s5 = scalar_lea.vmem %s0, 3
    %v6 = vld [vmem:[%s5] ss:$4 sm:$0xf]
    %7 = vrot.lane.b32.xlu0 %v6, 96
    %v8 = vpop.permute.xlu0 %7
    %vm9 = vcmask 1048320
    %10 = vst.msk [vmem:[#allocation0] ss:$8 sm:$0xf] %vm9, %v8
    %s11 = scalar_lea.vmem %s0, 2
    %v12 = vld [vmem:[%s11] ss:$4 sm:$0xf]
    %13 = vrot.lane.b32.xlu0 %v12, 64
    %v14 = vpop.permute.xlu0 %13
    %vm15 = vcmask 785920
    %16 = vst.msk [vmem:[#allocation0] ss:$8 sm:$0xf] %vm15, %v14
    %s17 = scalar_lea.vmem %s0, 1
    %v18 = vld [vmem:[%s17] ss:$4 sm:$0xf]
    %19 = vrot.lane.b32.xlu0 %v18, 32
    %v20 = vpop.permute.xlu0 %19
    %vm21 = vcmask 523520
    %22 = vst.msk [vmem:[#allocation0] ss:$8 sm:$0xf] %vm21, %v20
    %s24 = sshll.u32 1, 1
    %s25 = ssub.s32 %s24, 1
    %v27 = vld [vmem:[#allocation0] sm:%s25]
    %s28 = sshll.u32 1, 1
    %s29 = ssub.s32 %s28, 1
    %30 = vst [vmem:[%s1] sm:%s29] %v27
    %s31 = scalar_lea.vmem [#allocation0], 8
    %v32 = vld [vmem:[%s31] sm:%s25]
    %s33 = sshll.u32 1, 1
    %s34 = ssub.s32 %s33, 1
    %s35 = scalar_lea.vmem %s1, 1
    %36 = vst [vmem:[%s35] sm:%s34] %v32
    %s37 = scalar_lea.vmem [#allocation0], 16
    %v38 = vld [vmem:[%s37] sm:%s25]
    %s39 = sshll.u32 1, 1
    %s40 = ssub.s32 %s39, 1
    %s41 = smul.addr 1, 2
    %s42 = scalar_lea.vmem %s1, %s41
    %43 = vst [vmem:[%s42] sm:%s40] %v38
    %s44 = scalar_lea.vmem [#allocation0], 24
    %v45 = vld [vmem:[%s44] sm:%s25]
    %s46 = sshll.u32 1, 1
    %s47 = ssub.s32 %s46, 1
    %s48 = smul.addr 1, 3
    %s49 = scalar_lea.vmem %s1, %s48
    %50 = vst [vmem:[%s49] sm:%s47] %v45

// kernel: usrm3_forward.19
$region0: #{usrm3_forward.19}
  #allocation0 [shape = 'u32[]', space=smem, size = 0x4, offset = 0x4, fixed_abs, tag = 'smem constant byte address 0x4 - core index']
  #allocation1 [shape = 'u32[144,128]{1,0:T(1,128)}', space=vmem, size = 0x12000, scoped, tag = 'internal scratch']
  %s0 = inlined_call_operand.vmem [shape: f32[16,256], index: 0, kind: input, shape index: {}]
  %s1 = inlined_call_operand.vmem [shape: f32[16,256], index: 1, kind: input, shape index: {}]
  %s2 = inlined_call_operand.vmem [shape: f32[16,256], index: 2, kind: input, shape index: {}]
  %s3 = inlined_call_operand.vmem [shape: f32[16,256], index: 3, kind: input, shape index: {}]
  %s4 = inlined_call_operand.vmem [shape: f32[16,1], index: 4, kind: input, shape index: {}]
  %s5 = inlined_call_operand.vmem [shape: f32[1,256], index: 5, kind: input, shape index: {}]
  %s6 = inlined_call_operand.vmem [shape: f32[1,256], index: 6, kind: input, shape index: {}]
  %s7 = inlined_call_operand.vmem [shape: f32[1,256], index: 7, kind: input, shape index: {}]
  %s8 = inlined_call_operand.vmem [shape: f32[16,256], index: 8, kind: input, shape index: {}]
  %s9 = inlined_call_operand.vmem [shape: f32[16,256], index: 9, kind: output, shape index: {}]
  %s10 = sld [smem:[#allocation0]]
  $region46: #{usrm3_forward.19} parent=0
    _
  %s12 = ssub.s32 1, %s10
  %s13 = scalar_select 0, %s12, %s10
  // Predicated region
  $region2: #{usrm3_forward.19} parent=0 // pred_check
    _
  $region3: #{usrm3_forward.19} parent=0 // pred_check_branch
    %15 = sbr.rel (0) target = $region5
  $region4: #{usrm3_forward.19} parent=0 // pred_region
    _
  $region5: #{usrm3_forward.19} parent=0 // pred_fallthru
    _
  // Predicated region
  $region6: #{usrm3_forward.19} parent=0 // pred_check
    _
  $region7: #{usrm3_forward.19} parent=0 // pred_check_branch
    %17 = sbr.rel (0) target = $region9
  $region8: #{usrm3_forward.19} parent=0 // pred_region
    _
  $region9: #{usrm3_forward.19} parent=0 // pred_fallthru
    _
  // Predicated region
  $region10: #{usrm3_forward.19} parent=0 // pred_check
    _
  $region11: #{usrm3_forward.19} parent=0 // pred_check_branch
    %19 = sbr.rel (0) target = $region13
  $region12: #{usrm3_forward.19} parent=0 // pred_region
    _
  $region13: #{usrm3_forward.19} parent=0 // pred_fallthru
    _
  // Predicated region
  $region14: #{usrm3_forward.19} parent=0 // pred_check
    _
  $region15: #{usrm3_forward.19} parent=0 // pred_check_branch
    %21 = sbr.rel (0) target = $region17
  $region16: #{usrm3_forward.19} parent=0 // pred_region
    _
  $region17: #{usrm3_forward.19} parent=0 // pred_fallthru
    _
  // Predicated region
  $region18: #{usrm3_forward.19} parent=0 // pred_check
    _
  $region19: #{usrm3_forward.19} parent=0 // pred_check_branch
    %23 = sbr.rel (0) target = $region21
  $region20: #{usrm3_forward.19} parent=0 // pred_region
    _
  $region21: #{usrm3_forward.19} parent=0 // pred_fallthru
    _
  // Predicated region
  $region22: #{usrm3_forward.19} parent=0 // pred_check
    _
  $region23: #{usrm3_forward.19} parent=0 // pred_check_branch
    %25 = sbr.rel (0) target = $region25
  $region24: #{usrm3_forward.19} parent=0 // pred_region
    _
  $region25: #{usrm3_forward.19} parent=0 // pred_fallthru
    _
  // Predicated region
  $region26: #{usrm3_forward.19} parent=0 // pred_check
    _
  $region27: #{usrm3_forward.19} parent=0 // pred_check_branch
    %27 = sbr.rel (0) target = $region29
  $region28: #{usrm3_forward.19} parent=0 // pred_region
    _
  $region29: #{usrm3_forward.19} parent=0 // pred_fallthru
    _
  // Predicated region
  $region30: #{usrm3_forward.19} parent=0 // pred_check
    _
  $region31: #{usrm3_forward.19} parent=0 // pred_check_branch
    %29 = sbr.rel (0) target = $region33
  $region32: #{usrm3_forward.19} parent=0 // pred_region
    _
  $region33: #{usrm3_forward.19} parent=0 // pred_fallthru
    _
  // Predicated region
  $region34: #{usrm3_forward.19} parent=0 // pred_check
    _
  $region35: #{usrm3_forward.19} parent=0 // pred_check_branch
    %31 = sbr.rel (0) target = $region37
  $region36: #{usrm3_forward.19} parent=0 // pred_region
    _
  $region37: #{usrm3_forward.19} parent=0 // pred_fallthru
    _
  %v32 = vld [vmem:[%s5] sm:$0x3]
  %v33 = vld [vmem:[%s0] sm:$0xff]
  %v34 = vld [vmem:[%s0 + $0x8] sm:$0xff]
  %v35 = vld [vmem:[%s0 + $0x10] sm:$0xff]
  %v36 = vld [vmem:[%s0 + $0x18] sm:$0xff]
  %v37 = vld [vmem:[%s1] sm:$0xff]
  %v38 = vld [vmem:[%s1 + $0x8] sm:$0xff]
  %v39 = vld [vmem:[%s1 + $0x10] sm:$0xff]
  %v40 = vld [vmem:[%s1 + $0x18] sm:$0xff]
  %v41 = vsub.f32 %v37, %v33
  %v42 = vsub.f32 %v38, %v34
  %v43 = vsub.f32 %v39, %v35
  %v44 = vsub.f32 %v40, %v36
  %v46 = vlaneseq
  %v47 = vshrl.u32 %v46, 7
  %v48 = vsub.s32 0, %v47
  %v49 = vrot.slane %v32, %v48
  %v50 = vlaneseq
  %v51 = vshrl.u32 %v50, 7
  %v52 = vsub.s32 1, %v51
  %v53 = vrot.slane %v32, %v52
  %v56 = vmul.f32 %v49, %v41
  %v57 = vmul.f32 %v53, %v42
  %v58 = vmul.f32 %v49, %v43
  %v59 = vmul.f32 %v53, %v44
  %v60 = vadd.f32 %v33, %v56
  %v61 = vadd.f32 %v34, %v57
  %v62 = vadd.f32 %v35, %v58
  %v63 = vadd.f32 %v36, %v59
  %v64 = vld [vmem:[%s2] sm:$0xff]
  %v65 = vld [vmem:[%s2 + $0x8] sm:$0xff]
  %v66 = vld [vmem:[%s2 + $0x10] sm:$0xff]
  %v67 = vld [vmem:[%s2 + $0x18] sm:$0xff]
  %v68 = vld [vmem:[%s3] sm:$0xff]
  %v69 = vld [vmem:[%s3 + $0x8] sm:$0xff]
  %v70 = vld [vmem:[%s3 + $0x10] sm:$0xff]
  %v71 = vld [vmem:[%s3 + $0x18] sm:$0xff]
  %v72 = vsub.f32 %v68, %v64
  %v73 = vsub.f32 %v69, %v65
  %v74 = vsub.f32 %v70, %v66
  %v75 = vsub.f32 %v71, %v67
  %v76 = vmul.f32 %v49, %v72
  %v77 = vmul.f32 %v53, %v73
  %v78 = vmul.f32 %v49, %v74
  %v79 = vmul.f32 %v53, %v75
  %v80 = vadd.f32 %v64, %v76
  %v81 = vadd.f32 %v65, %v77
  %v82 = vadd.f32 %v66, %v78
  %v83 = vadd.f32 %v67, %v79
  %v84 = vld [vmem:[%s4] sm:$0xff]
  %v85 = vld [vmem:[%s4 + $0x8] sm:$0xff]
  %v86 = vsub.f32 %v80, %v60
  %v87 = vsub.f32 %v81, %v61
  %v88 = vsub.f32 %v82, %v62
  %v89 = vsub.f32 %v83, %v63
  %91 = vset.pattern.permute.xlu0 0
  %92 = vperm.xlu0 %91, %v84
  %v93 = vpop.permute.xlu0 %92
  %96 = vset.pattern.permute.xlu0 0
  %97 = vperm.xlu0 %96, %v85
  %v98 = vpop.permute.xlu0 %97
  %v100 = vmul.f32 %v93, %v86
  %v101 = vmul.f32 %v93, %v87
  %v102 = vmul.f32 %v98, %v88
  %v103 = vmul.f32 %v98, %v89
  %v104 = vadd.f32 %v60, %v100
  %v105 = vadd.f32 %v61, %v101
  %v106 = vadd.f32 %v62, %v102
  %v107 = vadd.f32 %v63, %v103
  %v108 = vld [vmem:[%s6] sm:$0x3]
  %v110 = vlaneseq
  %v111 = vshrl.u32 %v110, 7
  %v112 = vsub.s32 0, %v111
  %v113 = vrot.slane %v108, %v112
  %v114 = vlaneseq
  %v115 = vshrl.u32 %v114, 7
  %v116 = vsub.s32 1, %v115
  %v117 = vrot.slane %v108, %v116
  %v120 = vmul.f32 %v104, %v113
  %v121 = vmul.f32 %v105, %v117
  %v122 = vmul.f32 %v106, %v113
  %v123 = vmul.f32 %v107, %v117
  %v124 = vld [vmem:[%s7] sm:$0x3]
  %v126 = vlaneseq
  %v127 = vshrl.u32 %v126, 7
  %v128 = vsub.s32 0, %v127
  %v129 = vrot.slane %v124, %v128
  %v130 = vlaneseq
  %v131 = vshrl.u32 %v130, 7
  %v132 = vsub.s32 1, %v131
  %v133 = vrot.slane %v124, %v132
  %v136 = vadd.f32 %v120, %v129
  %v137 = vadd.f32 %v121, %v133
  %v138 = vadd.f32 %v122, %v129
  %v139 = vadd.f32 %v123, %v133
  %v140 = vld [vmem:[%s8] sm:$0xff]
  %v141 = vld [vmem:[%s8 + $0x8] sm:$0xff]
  %v142 = vld [vmem:[%s8 + $0x10] sm:$0xff]
  %v143 = vld [vmem:[%s8 + $0x18] sm:$0xff]
  %v144 = vadd.f32 %v136, %v140
  %v145 = vadd.f32 %v137, %v141
  %v146 = vadd.f32 %v138, %v142
  %v147 = vadd.f32 %v139, %v143
  %148 = vst [vmem:[%s9] sm:$0xff] %v144
  %149 = vst [vmem:[%s9 + $0x8] sm:$0xff] %v145
  %150 = vst [vmem:[%s9 + $0x10] sm:$0xff] %v146
  %151 = vst [vmem:[%s9 + $0x18] sm:$0xff] %v147
  // Predicated region
  $region38: #{usrm3_forward.19} parent=0 // pred_check
    _
  $region39: #{usrm3_forward.19} parent=0 // pred_check_branch
    %153 = sbr.rel (0) target = $region41
  $region40: #{usrm3_forward.19} parent=0 // pred_region
    _
  $region41: #{usrm3_forward.19} parent=0 // pred_fallthru
    _
  // Predicated region
  $region42: #{usrm3_forward.19} parent=0 // pred_check
    _
  $region43: #{usrm3_forward.19} parent=0 // pred_check_branch
    %155 = sbr.rel (0) target = $region45
  $region44: #{usrm3_forward.19} parent=0 // pred_region
    _
  $region45: #{usrm3_forward.19} parent=0 // pred_fallthru
    _

// kernel: usrm3_forward.21
$region0: #{usrm3_forward.21}
  #allocation0 [shape = 'u32[]', space=smem, size = 0x4, offset = 0x4, fixed_abs, tag = 'smem constant byte address 0x4 - core index']
  #allocation1 [shape = 'u32[144,128]{1,0:T(1,128)}', space=vmem, size = 0x12000, scoped, tag = 'internal scratch']
  %s0 = inlined_call_operand.vmem [shape: f32[32,512], index: 0, kind: input, shape index: {}]
  %s1 = inlined_call_operand.vmem [shape: f32[32,512], index: 1, kind: input, shape index: {}]
  %s2 = inlined_call_operand.vmem [shape: f32[32,512], index: 2, kind: input, shape index: {}]
  %s3 = inlined_call_operand.vmem [shape: f32[32,512], index: 3, kind: input, shape index: {}]
  %s4 = inlined_call_operand.vmem [shape: f32[32,1], index: 4, kind: input, shape index: {}]
  %s5 = inlined_call_operand.vmem [shape: f32[1,512], index: 5, kind: input, shape index: {}]
  %s6 = inlined_call_operand.vmem [shape: f32[1,512], index: 6, kind: input, shape index: {}]
  %s7 = inlined_call_operand.vmem [shape: f32[1,512], index: 7, kind: input, shape index: {}]
  %s8 = inlined_call_operand.vmem [shape: f32[32,512], index: 8, kind: input, shape index: {}]
  %s9 = inlined_call_operand.vmem [shape: f32[32,512], index: 9, kind: output, shape index: {}]
  %s10 = sld [smem:[#allocation0]]
  $region46: #{usrm3_forward.21} parent=0
    _
  %s12 = ssub.s32 1, %s10
  %s13 = scalar_select 0, %s12, %s10
  // Predicated region
  $region2: #{usrm3_forward.21} parent=0 // pred_check
    _
  $region3: #{usrm3_forward.21} parent=0 // pred_check_branch
    %15 = sbr.rel (0) target = $region5
  $region4: #{usrm3_forward.21} parent=0 // pred_region
    _
  $region5: #{usrm3_forward.21} parent=0 // pred_fallthru
    _
  // Predicated region
  $region6: #{usrm3_forward.21} parent=0 // pred_check
    _
  $region7: #{usrm3_forward.21} parent=0 // pred_check_branch
    %17 = sbr.rel (0) target = $region9
  $region8: #{usrm3_forward.21} parent=0 // pred_region
    _
  $region9: #{usrm3_forward.21} parent=0 // pred_fallthru
    _
  // Predicated region
  $region10: #{usrm3_forward.21} parent=0 // pred_check
    _
  $region11: #{usrm3_forward.21} parent=0 // pred_check_branch
    %19 = sbr.rel (0) target = $region13
  $region12: #{usrm3_forward.21} parent=0 // pred_region
    _
  $region13: #{usrm3_forward.21} parent=0 // pred_fallthru
    _
  // Predicated region
  $region14: #{usrm3_forward.21} parent=0 // pred_check
    _
  $region15: #{usrm3_forward.21} parent=0 // pred_check_branch
    %21 = sbr.rel (0) target = $region17
  $region16: #{usrm3_forward.21} parent=0 // pred_region
    _
  $region17: #{usrm3_forward.21} parent=0 // pred_fallthru
    _
  // Predicated region
  $region18: #{usrm3_forward.21} parent=0 // pred_check
    _
  $region19: #{usrm3_forward.21} parent=0 // pred_check_branch
    %23 = sbr.rel (0) target = $region21
  $region20: #{usrm3_forward.21} parent=0 // pred_region
    _
  $region21: #{usrm3_forward.21} parent=0 // pred_fallthru
    _
  // Predicated region
  $region22: #{usrm3_forward.21} parent=0 // pred_check
    _
  $region23: #{usrm3_forward.21} parent=0 // pred_check_branch
    %25 = sbr.rel (0) target = $region25
  $region24: #{usrm3_forward.21} parent=0 // pred_region
    _
  $region25: #{usrm3_forward.21} parent=0 // pred_fallthru
    _
  // Predicated region
  $region26: #{usrm3_forward.21} parent=0 // pred_check
    _
  $region27: #{usrm3_forward.21} parent=0 // pred_check_branch
    %27 = sbr.rel (0) target = $region29
  $region28: #{usrm3_forward.21} parent=0 // pred_region
    _
  $region29: #{usrm3_forward.21} parent=0 // pred_fallthru
    _
  // Predicated region
  $region30: #{usrm3_forward.21} parent=0 // pred_check
    _
  $region31: #{usrm3_forward.21} parent=0 // pred_check_branch
    %29 = sbr.rel (0) target = $region33
  $region32: #{usrm3_forward.21} parent=0 // pred_region
    _
  $region33: #{usrm3_forward.21} parent=0 // pred_fallthru
    _
  // Predicated region
  $region34: #{usrm3_forward.21} parent=0 // pred_check
    _
  $region35: #{usrm3_forward.21} parent=0 // pred_check_branch
    %31 = sbr.rel (0) target = $region37
  $region36: #{usrm3_forward.21} parent=0 // pred_region
    _
  $region37: #{usrm3_forward.21} parent=0 // pred_fallthru
    _
  %v32 = vld [vmem:[%s5] sm:$0xf]
  %v33 = vld [vmem:[%s0] sm:$0xff]
  %v34 = vld [vmem:[%s0 + $0x8] sm:$0xff]
  %v35 = vld [vmem:[%s0 + $0x10] sm:$0xff]
  %v36 = vld [vmem:[%s0 + $0x18] sm:$0xff]
  %v37 = vld [vmem:[%s0 + $0x20] sm:$0xff]
  %v38 = vld [vmem:[%s0 + $0x28] sm:$0xff]
  %v39 = vld [vmem:[%s0 + $0x30] sm:$0xff]
  %v40 = vld [vmem:[%s0 + $0x38] sm:$0xff]
  %v41 = vld [vmem:[%s0 + $0x40] sm:$0xff]
  %v42 = vld [vmem:[%s0 + $0x48] sm:$0xff]
  %v43 = vld [vmem:[%s0 + $0x50] sm:$0xff]
  %v44 = vld [vmem:[%s0 + $0x58] sm:$0xff]
  %v45 = vld [vmem:[%s0 + $0x60] sm:$0xff]
  %v46 = vld [vmem:[%s0 + $0x68] sm:$0xff]
  %v47 = vld [vmem:[%s0 + $0x70] sm:$0xff]
  %v48 = vld [vmem:[%s0 + $0x78] sm:$0xff]
  %v49 = vld [vmem:[%s1] sm:$0xff]
  %v50 = vld [vmem:[%s1 + $0x8] sm:$0xff]
  %v51 = vld [vmem:[%s1 + $0x10] sm:$0xff]
  %v52 = vld [vmem:[%s1 + $0x18] sm:$0xff]
  %v53 = vld [vmem:[%s1 + $0x20] sm:$0xff]
  %v54 = vld [vmem:[%s1 + $0x28] sm:$0xff]
  %v55 = vld [vmem:[%s1 + $0x30] sm:$0xff]
  %v56 = vld [vmem:[%s1 + $0x38] sm:$0xff]
  %v57 = vld [vmem:[%s1 + $0x40] sm:$0xff]
  %v58 = vld [vmem:[%s1 + $0x48] sm:$0xff]
  %v59 = vld [vmem:[%s1 + $0x50] sm:$0xff]
  %v60 = vld [vmem:[%s1 + $0x58] sm:$0xff]
  %v61 = vld [vmem:[%s1 + $0x60] sm:$0xff]
  %v62 = vld [vmem:[%s1 + $0x68] sm:$0xff]
  %v63 = vld [vmem:[%s1 + $0x70] sm:$0xff]
  %v64 = vld [vmem:[%s1 + $0x78] sm:$0xff]
  %v65 = vsub.f32 %v49, %v33
  %v66 = vsub.f32 %v50, %v34
  %v67 = vsub.f32 %v51, %v35
  %v68 = vsub.f32 %v52, %v36
  %v69 = vsub.f32 %v53, %v37
  %v70 = vsub.f32 %v54, %v38
  %v71 = vsub.f32 %v55, %v39
  %v72 = vsub.f32 %v56, %v40
  %v73 = vsub.f32 %v57, %v41
  %v74 = vsub.f32 %v58, %v42
  %v75 = vsub.f32 %v59, %v43
  %v76 = vsub.f32 %v60, %v44
  %v77 = vsub.f32 %v61, %v45
  %v78 = vsub.f32 %v62, %v46
  %v79 = vsub.f32 %v63, %v47
  %v80 = vsub.f32 %v64, %v48
  %v82 = vlaneseq
  %v83 = vshrl.u32 %v82, 7
  %v84 = vsub.s32 0, %v83
  %v85 = vrot.slane %v32, %v84
  %v86 = vlaneseq
  %v87 = vshrl.u32 %v86, 7
  %v88 = vsub.s32 1, %v87
  %v89 = vrot.slane %v32, %v88
  %v90 = vlaneseq
  %v91 = vshrl.u32 %v90, 7
  %v92 = vsub.s32 2, %v91
  %v93 = vrot.slane %v32, %v92
  %v94 = vlaneseq
  %v95 = vshrl.u32 %v94, 7
  %v96 = vsub.s32 3, %v95
  %v97 = vrot.slane %v32, %v96
  %v102 = vmul.f32 %v85, %v65
  %v103 = vmul.f32 %v89, %v66
  %v104 = vmul.f32 %v93, %v67
  %v105 = vmul.f32 %v97, %v68
  %v106 = vmul.f32 %v85, %v69
  %v107 = vmul.f32 %v89, %v70
  %v108 = vmul.f32 %v93, %v71
  %v109 = vmul.f32 %v97, %v72
  %v110 = vmul.f32 %v85, %v73
  %v111 = vmul.f32 %v89, %v74
  %v112 = vmul.f32 %v93, %v75
  %v113 = vmul.f32 %v97, %v76
  %v114 = vmul.f32 %v85, %v77
  %v115 = vmul.f32 %v89, %v78
  %v116 = vmul.f32 %v93, %v79
  %v117 = vmul.f32 %v97, %v80
  %v118 = vadd.f32 %v33, %v102
  %v119 = vadd.f32 %v34, %v103
  %v120 = vadd.f32 %v35, %v104
  %v121 = vadd.f32 %v36, %v105
  %v122 = vadd.f32 %v37, %v106
  %v123 = vadd.f32 %v38, %v107
  %v124 = vadd.f32 %v39, %v108
  %v125 = vadd.f32 %v40, %v109
  %v126 = vadd.f32 %v41, %v110
  %v127 = vadd.f32 %v42, %v111
  %v128 = vadd.f32 %v43, %v112
  %v129 = vadd.f32 %v44, %v113
  %v130 = vadd.f32 %v45, %v114
  %v131 = vadd.f32 %v46, %v115
  %v132 = vadd.f32 %v47, %v116
  %v133 = vadd.f32 %v48, %v117
  %v134 = vld [vmem:[%s2] sm:$0xff]
  %v135 = vld [vmem:[%s2 + $0x8] sm:$0xff]
  %v136 = vld [vmem:[%s2 + $0x10] sm:$0xff]
  %v137 = vld [vmem:[%s2 + $0x18] sm:$0xff]
  %v138 = vld [vmem:[%s2 + $0x20] sm:$0xff]
  %v139 = vld [vmem:[%s2 + $0x28] sm:$0xff]
  %v140 = vld [vmem:[%s2 + $0x30] sm:$0xff]
  %v141 = vld [vmem:[%s2 + $0x38] sm:$0xff]
  %v142 = vld [vmem:[%s2 + $0x40] sm:$0xff]
  %v143 = vld [vmem:[%s2 + $0x48] sm:$0xff]
  %v144 = vld [vmem:[%s2 + $0x50] sm:$0xff]
  %v145 = vld [vmem:[%s2 + $0x58] sm:$0xff]
  %v146 = vld [vmem:[%s2 + $0x60] sm:$0xff]
  %v147 = vld [vmem:[%s2 + $0x68] sm:$0xff]
  %v148 = vld [vmem:[%s2 + $0x70] sm:$0xff]
  %v149 = vld [vmem:[%s2 + $0x78] sm:$0xff]
  %v150 = vld [vmem:[%s3] sm:$0xff]
  %v151 = vld [vmem:[%s3 + $0x8] sm:$0xff]
  %v152 = vld [vmem:[%s3 + $0x10] sm:$0xff]
  %v153 = vld [vmem:[%s3 + $0x18] sm:$0xff]
  %v154 = vld [vmem:[%s3 + $0x20] sm:$0xff]
  %v155 = vld [vmem:[%s3 + $0x28] sm:$0xff]
  %v156 = vld [vmem:[%s3 + $0x30] sm:$0xff]
  %v157 = vld [vmem:[%s3 + $0x38] sm:$0xff]
  %v158 = vld [vmem:[%s3 + $0x40] sm:$0xff]
  %v159 = vld [vmem:[%s3 + $0x48] sm:$0xff]
  %v160 = vld [vmem:[%s3 + $0x50] sm:$0xff]
  %v161 = vld [vmem:[%s3 + $0x58] sm:$0xff]
  %v162 = vld [vmem:[%s3 + $0x60] sm:$0xff]
  %v163 = vld [vmem:[%s3 + $0x68] sm:$0xff]
  %v164 = vld [vmem:[%s3 + $0x70] sm:$0xff]
  %v165 = vld [vmem:[%s3 + $0x78] sm:$0xff]
  %v166 = vsub.f32 %v150, %v134
  %v167 = vsub.f32 %v151, %v135
  %v168 = vsub.f32 %v152, %v136
  %v169 = vsub.f32 %v153, %v137
  %v170 = vsub.f32 %v154, %v138
  %v171 = vsub.f32 %v155, %v139
  %v172 = vsub.f32 %v156, %v140
  %v173 = vsub.f32 %v157, %v141
  %v174 = vsub.f32 %v158, %v142
  %v175 = vsub.f32 %v159, %v143
  %v176 = vsub.f32 %v160, %v144
  %v177 = vsub.f32 %v161, %v145
  %v178 = vsub.f32 %v162, %v146
  %v179 = vsub.f32 %v163, %v147
  %v180 = vsub.f32 %v164, %v148
  %v181 = vsub.f32 %v165, %v149
  %v182 = vmul.f32 %v85, %v166
  %v183 = vmul.f32 %v89, %v167
  %v184 = vmul.f32 %v93, %v168
  %v185 = vmul.f32 %v97, %v169
  %v186 = vmul.f32 %v85, %v170
  %v187 = vmul.f32 %v89, %v171
  %v188 = vmul.f32 %v93, %v172
  %v189 = vmul.f32 %v97, %v173
  %v190 = vmul.f32 %v85, %v174
  %v191 = vmul.f32 %v89, %v175
  %v192 = vmul.f32 %v93, %v176
  %v193 = vmul.f32 %v97, %v177
  %v194 = vmul.f32 %v85, %v178
  %v195 = vmul.f32 %v89, %v179
  %v196 = vmul.f32 %v93, %v180
  %v197 = vmul.f32 %v97, %v181
  %v198 = vadd.f32 %v134, %v182
  %v199 = vadd.f32 %v135, %v183
  %v200 = vadd.f32 %v136, %v184
  %v201 = vadd.f32 %v137, %v185
  %v202 = vadd.f32 %v138, %v186
  %v203 = vadd.f32 %v139, %v187
  %v204 = vadd.f32 %v140, %v188
  %v205 = vadd.f32 %v141, %v189
  %v206 = vadd.f32 %v142, %v190
  %v207 = vadd.f32 %v143, %v191
  %v208 = vadd.f32 %v144, %v192
  %v209 = vadd.f32 %v145, %v193
  %v210 = vadd.f32 %v146, %v194
  %v211 = vadd.f32 %v147, %v195
  %v212 = vadd.f32 %v148, %v196
  %v213 = vadd.f32 %v149, %v197
  %v214 = vld [vmem:[%s4] sm:$0xff]
  %v215 = vld [vmem:[%s4 + $0x8] sm:$0xff]
  %v216 = vld [vmem:[%s4 + $0x10] sm:$0xff]
  %v217 = vld [vmem:[%s4 + $0x18] sm:$0xff]
  %v218 = vsub.f32 %v198, %v118
  %v219 = vsub.f32 %v199, %v119
  %v220 = vsub.f32 %v200, %v120
  %v221 = vsub.f32 %v201, %v121
  %v222 = vsub.f32 %v202, %v122
  %v223 = vsub.f32 %v203, %v123
  %v224 = vsub.f32 %v204, %v124
  %v225 = vsub.f32 %v205, %v125
  %v226 = vsub.f32 %v206, %v126
  %v227 = vsub.f32 %v207, %v127
  %v228 = vsub.f32 %v208, %v128
  %v229 = vsub.f32 %v209, %v129
  %v230 = vsub.f32 %v210, %v130
  %v231 = vsub.f32 %v211, %v131
  %v232 = vsub.f32 %v212, %v132
  %v233 = vsub.f32 %v213, %v133
  %235 = vset.pattern.permute.xlu0 0
  %236 = vperm.xlu0 %235, %v214
  %v237 = vpop.permute.xlu0 %236
  %240 = vset.pattern.permute.xlu0 0
  %241 = vperm.xlu0 %240, %v215
  %v242 = vpop.permute.xlu0 %241
  %245 = vset.pattern.permute.xlu0 0
  %246 = vperm.xlu0 %245, %v216
  %v247 = vpop.permute.xlu0 %246
  %250 = vset.pattern.permute.xlu0 0
  %251 = vperm.xlu0 %250, %v217
  %v252 = vpop.permute.xlu0 %251
  %v254 = vmul.f32 %v237, %v218
  %v255 = vmul.f32 %v237, %v219
  %v256 = vmul.f32 %v237, %v220
  %v257 = vmul.f32 %v237, %v221
  %v258 = vmul.f32 %v242, %v222
  %v259 = vmul.f32 %v242, %v223
  %v260 = vmul.f32 %v242, %v224
  %v261 = vmul.f32 %v242, %v225
  %v262 = vmul.f32 %v247, %v226
  %v263 = vmul.f32 %v247, %v227
  %v264 = vmul.f32 %v247, %v228
  %v265 = vmul.f32 %v247, %v229
  %v266 = vmul.f32 %v252, %v230
  %v267 = vmul.f32 %v252, %v231
  %v268 = vmul.f32 %v252, %v232
  %v269 = vmul.f32 %v252, %v233
  %v270 = vadd.f32 %v118, %v254
  %v271 = vadd.f32 %v119, %v255
  %v272 = vadd.f32 %v120, %v256
  %v273 = vadd.f32 %v121, %v257
  %v274 = vadd.f32 %v122, %v258
  %v275 = vadd.f32 %v123, %v259
  %v276 = vadd.f32 %v124, %v260
  %v277 = vadd.f32 %v125, %v261
  %v278 = vadd.f32 %v126, %v262
  %v279 = vadd.f32 %v127, %v263
  %v280 = vadd.f32 %v128, %v264
  %v281 = vadd.f32 %v129, %v265
  %v282 = vadd.f32 %v130, %v266
  %v283 = vadd.f32 %v131, %v267
  %v284 = vadd.f32 %v132, %v268
  %v285 = vadd.f32 %v133, %v269
  %v286 = vld [vmem:[%s6] sm:$0xf]
  %v288 = vlaneseq
  %v289 = vshrl.u32 %v288, 7
  %v290 = vsub.s32 0, %v289
  %v291 = vrot.slane %v286, %v290
  %v292 = vlaneseq
  %v293 = vshrl.u32 %v292, 7
  %v294 = vsub.s32 1, %v293
  %v295 = vrot.slane %v286, %v294
  %v296 = vlaneseq
  %v297 = vshrl.u32 %v296, 7
  %v298 = vsub.s32 2, %v297
  %v299 = vrot.slane %v286, %v298
  %v300 = vlaneseq
  %v301 = vshrl.u32 %v300, 7
  %v302 = vsub.s32 3, %v301
  %v303 = vrot.slane %v286, %v302
  %v308 = vmul.f32 %v270, %v291
  %v309 = vmul.f32 %v271, %v295
  %v310 = vmul.f32 %v272, %v299
  %v311 = vmul.f32 %v273, %v303
  %v312 = vmul.f32 %v274, %v291
  %v313 = vmul.f32 %v275, %v295
  %v314 = vmul.f32 %v276, %v299
  %v315 = vmul.f32 %v277, %v303
  %v316 = vmul.f32 %v278, %v291
  %v317 = vmul.f32 %v279, %v295
  %v318 = vmul.f32 %v280, %v299
  %v319 = vmul.f32 %v281, %v303
  %v320 = vmul.f32 %v282, %v291
  %v321 = vmul.f32 %v283, %v295
  %v322 = vmul.f32 %v284, %v299
  %v323 = vmul.f32 %v285, %v303
  %v324 = vld [vmem:[%s7] sm:$0xf]
  %v326 = vlaneseq
  %v327 = vshrl.u32 %v326, 7
  %v328 = vsub.s32 0, %v327
  %v329 = vrot.slane %v324, %v328
  %v330 = vlaneseq
  %v331 = vshrl.u32 %v330, 7
  %v332 = vsub.s32 1, %v331
  %v333 = vrot.slane %v324, %v332
  %v334 = vlaneseq
  %v335 = vshrl.u32 %v334, 7
  %v336 = vsub.s32 2, %v335
  %v337 = vrot.slane %v324, %v336
  %v338 = vlaneseq
  %v339 = vshrl.u32 %v338, 7
  %v340 = vsub.s32 3, %v339
  %v341 = vrot.slane %v324, %v340
  %v346 = vadd.f32 %v308, %v329
  %v347 = vadd.f32 %v309, %v333
  %v348 = vadd.f32 %v310, %v337
  %v349 = vadd.f32 %v311, %v341
  %v350 = vadd.f32 %v312, %v329
  %v351 = vadd.f32 %v313, %v333
  %v352 = vadd.f32 %v314, %v337
  %v353 = vadd.f32 %v315, %v341
  %v354 = vadd.f32 %v316, %v329
  %v355 = vadd.f32 %v317, %v333
  %v356 = vadd.f32 %v318, %v337
  %v357 = vadd.f32 %v319, %v341
  %v358 = vadd.f32 %v320, %v329
  %v359 = vadd.f32 %v321, %v333
  %v360 = vadd.f32 %v322, %v337
  %v361 = vadd.f32 %v323, %v341
  %v362 = vld [vmem:[%s8] sm:$0xff]
  %v363 = vld [vmem:[%s8 + $0x8] sm:$0xff]
  %v364 = vld [vmem:[%s8 + $0x10] sm:$0xff]
  %v365 = vld [vmem:[%s8 + $0x18] sm:$0xff]
  %v366 = vld [vmem:[%s8 + $0x20] sm:$0xff]
  %v367 = vld [vmem:[%s8 + $0x28] sm:$0xff]
  %v368 = vld [vmem:[%s8 + $0x30] sm:$0xff]
  %v369 = vld [vmem:[%s8 + $0x38] sm:$0xff]
  %v370 = vld [vmem:[%s8 + $0x40] sm:$0xff]
  %v371 = vld [vmem:[%s8 + $0x48] sm:$0xff]
  %v372 = vld [vmem:[%s8 + $0x50] sm:$0xff]
  %v373 = vld [vmem:[%s8 + $0x58] sm:$0xff]
  %v374 = vld [vmem:[%s8 + $0x60] sm:$0xff]
  %v375 = vld [vmem:[%s8 + $0x68] sm:$0xff]
  %v376 = vld [vmem:[%s8 + $0x70] sm:$0xff]
  %v377 = vld [vmem:[%s8 + $0x78] sm:$0xff]
  %v378 = vadd.f32 %v346, %v362
  %v379 = vadd.f32 %v347, %v363
  %v380 = vadd.f32 %v348, %v364
  %v381 = vadd.f32 %v349, %v365
  %v382 = vadd.f32 %v350, %v366
  %v383 = vadd.f32 %v351, %v367
  %v384 = vadd.f32 %v352, %v368
  %v385 = vadd.f32 %v353, %v369
  %v386 = vadd.f32 %v354, %v370
  %v387 = vadd.f32 %v355, %v371
  %v388 = vadd.f32 %v356, %v372
  %v389 = vadd.f32 %v357, %v373
  %v390 = vadd.f32 %v358, %v374
  %v391 = vadd.f32 %v359, %v375
  %v392 = vadd.f32 %v360, %v376
  %v393 = vadd.f32 %v361, %v377
  %v394 = vmax.f32 %v378, 0.0
  %v395 = vmax.f32 %v379, 0.0
  %v396 = vmax.f32 %v380, 0.0
  %v397 = vmax.f32 %v381, 0.0
  %v398 = vmax.f32 %v382, 0.0
  %v399 = vmax.f32 %v383, 0.0
  %v400 = vmax.f32 %v384, 0.0
  %v401 = vmax.f32 %v385, 0.0
  %v402 = vmax.f32 %v386, 0.0
  %v403 = vmax.f32 %v387, 0.0
  %v404 = vmax.f32 %v388, 0.0
  %v405 = vmax.f32 %v389, 0.0
  %v406 = vmax.f32 %v390, 0.0
  %v407 = vmax.f32 %v391, 0.0
  %v408 = vmax.f32 %v392, 0.0
  %v409 = vmax.f32 %v393, 0.0
  %410 = vst [vmem:[%s9] sm:$0xff] %v394
  %411 = vst [vmem:[%s9 + $0x8] sm:$0xff] %v395
  %412 = vst [vmem:[%s9 + $0x10] sm:$0xff] %v396
  %413 = vst [vmem:[%s9 + $0x18] sm:$0xff] %v397
  %414 = vst [vmem:[%s9 + $0x20] sm:$0xff] %v398
  %415 = vst [vmem:[%s9 + $0x28] sm:$0xff] %v399
  %416 = vst [vmem:[%s9 + $0x30] sm:$0xff] %v400
  %417 = vst [vmem:[%s9 + $0x38] sm:$0xff] %v401
  %418 = vst [vmem:[%s9 + $0x40] sm:$0xff] %v402
  %419 = vst [vmem:[%s9 + $0x48] sm:$0xff] %v403
  %420 = vst [vmem:[%s9 + $0x50] sm:$0xff] %v404
  %421 = vst [vmem:[%s9 + $0x58] sm:$0xff] %v405
  %422 = vst [vmem:[%s9 + $0x60] sm:$0xff] %v406
  %423 = vst [vmem:[%s9 + $0x68] sm:$0xff] %v407
  %424 = vst [vmem:[%s9 + $0x70] sm:$0xff] %v408
  %425 = vst [vmem:[%s9 + $0x78] sm:$0xff] %v409
  // Predicated region
  $region38: #{usrm3_forward.21} parent=0 // pred_check
    _
  $region39: #{usrm3_forward.21} parent=0 // pred_check_branch
    %427 = sbr.rel (0) target = $region41
  $region40: #{usrm3_forward.21} parent=0 // pred_region
    _
  $region41: #{usrm3_forward.21} parent=0 // pred_fallthru
    _
  // Predicated region
  $region42: #{usrm3_forward.21} parent=0 // pred_check
    _
  $region43: #{usrm3_forward.21} parent=0 // pred_check_branch
    %429 = sbr.rel (0) target = $region45
  $region44: #{usrm3_forward.21} parent=0 // pred_region
    _
  $region45: #{usrm3_forward.21} parent=0 // pred_fallthru
    _

// kernel: usrm3_forward.23
$region0: #{usrm3_forward.23}
  #allocation0 [shape = 'u32[]', space=smem, size = 0x4, offset = 0x4, fixed_abs, tag = 'smem constant byte address 0x4 - core index']
  #allocation1 [shape = 'u32[144,128]{1,0:T(1,128)}', space=vmem, size = 0x12000, scoped, tag = 'internal scratch']
  %s0 = inlined_call_operand.vmem [shape: f32[32,512], index: 0, kind: input, shape index: {}]
  %s1 = inlined_call_operand.vmem [shape: f32[1,512], index: 1, kind: input, shape index: {}]
  %s2 = inlined_call_operand.vmem [shape: f32[1,512], index: 2, kind: input, shape index: {}]
  %s3 = inlined_call_operand.vmem [shape: f32[32,512], index: 3, kind: output, shape index: {}]
  %s4 = sld [smem:[#allocation0]]
  $region22: #{usrm3_forward.23} parent=0
    _
  %s6 = ssub.s32 1, %s4
  %s7 = scalar_select 0, %s6, %s4
  // Predicated region
  $region2: #{usrm3_forward.23} parent=0 // pred_check
    _
  $region3: #{usrm3_forward.23} parent=0 // pred_check_branch
    %9 = sbr.rel (0) target = $region5
  $region4: #{usrm3_forward.23} parent=0 // pred_region
    _
  $region5: #{usrm3_forward.23} parent=0 // pred_fallthru
    _
  // Predicated region
  $region6: #{usrm3_forward.23} parent=0 // pred_check
    _
  $region7: #{usrm3_forward.23} parent=0 // pred_check_branch
    %11 = sbr.rel (0) target = $region9
  $region8: #{usrm3_forward.23} parent=0 // pred_region
    _
  $region9: #{usrm3_forward.23} parent=0 // pred_fallthru
    _
  // Predicated region
  $region10: #{usrm3_forward.23} parent=0 // pred_check
    _
  $region11: #{usrm3_forward.23} parent=0 // pred_check_branch
    %13 = sbr.rel (0) target = $region13
  $region12: #{usrm3_forward.23} parent=0 // pred_region
    _
  $region13: #{usrm3_forward.23} parent=0 // pred_fallthru
    _
  %v14 = vld [vmem:[%s0] sm:$0xff]
  %v15 = vld [vmem:[%s0 + $0x8] sm:$0xff]
  %v16 = vld [vmem:[%s0 + $0x10] sm:$0xff]
  %v17 = vld [vmem:[%s0 + $0x18] sm:$0xff]
  %v18 = vld [vmem:[%s0 + $0x20] sm:$0xff]
  %v19 = vld [vmem:[%s0 + $0x28] sm:$0xff]
  %v20 = vld [vmem:[%s0 + $0x30] sm:$0xff]
  %v21 = vld [vmem:[%s0 + $0x38] sm:$0xff]
  %v22 = vld [vmem:[%s0 + $0x40] sm:$0xff]
  %v23 = vld [vmem:[%s0 + $0x48] sm:$0xff]
  %v24 = vld [vmem:[%s0 + $0x50] sm:$0xff]
  %v25 = vld [vmem:[%s0 + $0x58] sm:$0xff]
  %v26 = vld [vmem:[%s0 + $0x60] sm:$0xff]
  %v27 = vld [vmem:[%s0 + $0x68] sm:$0xff]
  %v28 = vld [vmem:[%s0 + $0x70] sm:$0xff]
  %v29 = vld [vmem:[%s0 + $0x78] sm:$0xff]
  %v30 = vld [vmem:[%s1] sm:$0xf]
  %v32 = vlaneseq
  %v33 = vshrl.u32 %v32, 7
  %v34 = vsub.s32 0, %v33
  %v35 = vrot.slane %v30, %v34
  %v36 = vlaneseq
  %v37 = vshrl.u32 %v36, 7
  %v38 = vsub.s32 1, %v37
  %v39 = vrot.slane %v30, %v38
  %v40 = vlaneseq
  %v41 = vshrl.u32 %v40, 7
  %v42 = vsub.s32 2, %v41
  %v43 = vrot.slane %v30, %v42
  %v44 = vlaneseq
  %v45 = vshrl.u32 %v44, 7
  %v46 = vsub.s32 3, %v45
  %v47 = vrot.slane %v30, %v46
  %v52 = vmul.f32 %v14, %v35
  %v53 = vmul.f32 %v15, %v39
  %v54 = vmul.f32 %v16, %v43
  %v55 = vmul.f32 %v17, %v47
  %v56 = vmul.f32 %v18, %v35
  %v57 = vmul.f32 %v19, %v39
  %v58 = vmul.f32 %v20, %v43
  %v59 = vmul.f32 %v21, %v47
  %v60 = vmul.f32 %v22, %v35
  %v61 = vmul.f32 %v23, %v39
  %v62 = vmul.f32 %v24, %v43
  %v63 = vmul.f32 %v25, %v47
  %v64 = vmul.f32 %v26, %v35
  %v65 = vmul.f32 %v27, %v39
  %v66 = vmul.f32 %v28, %v43
  %v67 = vmul.f32 %v29, %v47
  %v68 = vld [vmem:[%s2] sm:$0xf]
  %v70 = vlaneseq
  %v71 = vshrl.u32 %v70, 7
  %v72 = vsub.s32 0, %v71
  %v73 = vrot.slane %v68, %v72
  %v74 = vlaneseq
  %v75 = vshrl.u32 %v74, 7
  %v76 = vsub.s32 1, %v75
  %v77 = vrot.slane %v68, %v76
  %v78 = vlaneseq
  %v79 = vshrl.u32 %v78, 7
  %v80 = vsub.s32 2, %v79
  %v81 = vrot.slane %v68, %v80
  %v82 = vlaneseq
  %v83 = vshrl.u32 %v82, 7
  %v84 = vsub.s32 3, %v83
  %v85 = vrot.slane %v68, %v84
  %v90 = vadd.f32 %v52, %v73
  %v91 = vadd.f32 %v53, %v77
  %v92 = vadd.f32 %v54, %v81
  %v93 = vadd.f32 %v55, %v85
  %v94 = vadd.f32 %v56, %v73
  %v95 = vadd.f32 %v57, %v77
  %v96 = vadd.f32 %v58, %v81
  %v97 = vadd.f32 %v59, %v85
  %v98 = vadd.f32 %v60, %v73
  %v99 = vadd.f32 %v61, %v77
  %v100 = vadd.f32 %v62, %v81
  %v101 = vadd.f32 %v63, %v85
  %v102 = vadd.f32 %v64, %v73
  %v103 = vadd.f32 %v65, %v77
  %v104 = vadd.f32 %v66, %v81
  %v105 = vadd.f32 %v67, %v85
  %106 = vst [vmem:[%s3] sm:$0xff] %v90
  %107 = vst [vmem:[%s3 + $0x8] sm:$0xff] %v91
  %108 = vst [vmem:[%s3 + $0x10] sm:$0xff] %v92
  %109 = vst [vmem:[%s3 + $0x18] sm:$0xff] %v93
  %110 = vst [vmem:[%s3 + $0x20] sm:$0xff] %v94
  %111 = vst [vmem:[%s3 + $0x28] sm:$0xff] %v95
  %112 = vst [vmem:[%s3 + $0x30] sm:$0xff] %v96
  %113 = vst [vmem:[%s3 + $0x38] sm:$0xff] %v97
  %114 = vst [vmem:[%s3 + $0x40] sm:$0xff] %v98
  %115 = vst [vmem:[%s3 + $0x48] sm:$0xff] %v99
  %116 = vst [vmem:[%s3 + $0x50] sm:$0xff] %v100
  %117 = vst [vmem:[%s3 + $0x58] sm:$0xff] %v101
  %118 = vst [vmem:[%s3 + $0x60] sm:$0xff] %v102
  %119 = vst [vmem:[%s3 + $0x68] sm:$0xff] %v103
  %120 = vst [vmem:[%s3 + $0x70] sm:$0xff] %v104
  %121 = vst [vmem:[%s3 + $0x78] sm:$0xff] %v105
  // Predicated region
  $region14: #{usrm3_forward.23} parent=0 // pred_check
    _
  $region15: #{usrm3_forward.23} parent=0 // pred_check_branch
    %123 = sbr.rel (0) target = $region17
  $region16: #{usrm3_forward.23} parent=0 // pred_region
    _
  $region17: #{usrm3_forward.23} parent=0 // pred_fallthru
    _
  // Predicated region
  $region18: #{usrm3_forward.23} parent=0 // pred_check
    _
  $region19: #{usrm3_forward.23} parent=0 // pred_check_branch
    %125 = sbr.rel (0) target = $region21
  $region20: #{usrm3_forward.23} parent=0 // pred_region
    _
  $region21: #{usrm3_forward.23} parent=0 // pred_fallthru
    _

// kernel: usrm3_forward.22
$region0: #{usrm3_forward.22}
  #allocation0 [shape = 'u32[]', space=smem, size = 0x4, offset = 0x4, fixed_abs, tag = 'smem constant byte address 0x4 - core index']
  #allocation1 [shape = 'u32[144,128]{1,0:T(1,128)}', space=vmem, size = 0x12000, scoped, tag = 'internal scratch']
  %s0 = inlined_call_operand.vmem [shape: bf16[512,288], index: 0, kind: input, shape index: {}]
  %s1 = inlined_call_operand.vmem [shape: bf16[288,32], index: 1, kind: input, shape index: {}]
  %s2 = inlined_call_operand.vmem [shape: f32[512,32], index: 2, kind: output, shape index: {0}]
  %s3 = inlined_call_operand.vmem [shape: f32[1,32], index: 3, kind: output, shape index: {1}]
  %s4 = inlined_call_operand.vmem [shape: f32[1,32], index: 4, kind: output, shape index: {2}]
  %5 = xla_tuple %s2, %s3, %s4
  %s6 = sld [smem:[#allocation0]]
  $region38: #{usrm3_forward.22} parent=0
    _
  %s8 = ssub.s32 1, %s6
  %s9 = scalar_select 0, %s8, %s6
  // Predicated region
  $region2: #{usrm3_forward.22} parent=0 // pred_check
    _
  $region3: #{usrm3_forward.22} parent=0 // pred_check_branch
    %11 = sbr.rel (0) target = $region5
  $region4: #{usrm3_forward.22} parent=0 // pred_region
    _
  $region5: #{usrm3_forward.22} parent=0 // pred_fallthru
    _
  // Predicated region
  $region6: #{usrm3_forward.22} parent=0 // pred_check
    _
  $region7: #{usrm3_forward.22} parent=0 // pred_check_branch
    %13 = sbr.rel (0) target = $region9
  $region8: #{usrm3_forward.22} parent=0 // pred_region
    _
  $region9: #{usrm3_forward.22} parent=0 // pred_fallthru
    _
  %v15 = vld [vmem:[%s0] sm:$0xff]
  %v16 = vld [vmem:[%s0 + $0x8] sm:$0xf]
  %v17 = vld [vmem:[%s0 + $0xc] sm:$0xff]
  %v18 = vld [vmem:[%s0 + $0x14] sm:$0xf]
  %v19 = vld [vmem:[%s0 + $0x18] sm:$0xff]
  %v20 = vld [vmem:[%s0 + $0x20] sm:$0xf]
  %v21 = vld [vmem:[%s0 + $0x24] sm:$0xff]
  %v22 = vld [vmem:[%s0 + $0x2c] sm:$0xf]
  %v23 = vld [vmem:[%s0 + $0x30] sm:$0xff]
  %v24 = vld [vmem:[%s0 + $0x38] sm:$0xf]
  %v25 = vld [vmem:[%s0 + $0x3c] sm:$0xff]
  %v26 = vld [vmem:[%s0 + $0x44] sm:$0xf]
  %v27 = vld [vmem:[%s0 + $0x48] sm:$0xff]
  %v28 = vld [vmem:[%s0 + $0x50] sm:$0xf]
  %v29 = vld [vmem:[%s0 + $0x54] sm:$0xff]
  %v30 = vld [vmem:[%s0 + $0x5c] sm:$0xf]
  %v31 = vld [vmem:[%s0 + $0x60] sm:$0xff]
  %v32 = vld [vmem:[%s0 + $0x68] sm:$0xf]
  %v33 = vld [vmem:[%s0 + $0x6c] sm:$0xff]
  %v34 = vld [vmem:[%s0 + $0x74] sm:$0xf]
  %v35 = vld [vmem:[%s0 + $0x78] sm:$0xff]
  %v36 = vld [vmem:[%s0 + $0x80] sm:$0xf]
  %v37 = vld [vmem:[%s0 + $0x84] sm:$0xff]
  %v38 = vld [vmem:[%s0 + $0x8c] sm:$0xf]
  %v39 = vld [vmem:[%s0 + $0x90] sm:$0xff]
  %v40 = vld [vmem:[%s0 + $0x98] sm:$0xf]
  %v41 = vld [vmem:[%s0 + $0x9c] sm:$0xff]
  %v42 = vld [vmem:[%s0 + $0xa4] sm:$0xf]
  %v43 = vld [vmem:[%s0 + $0xa8] sm:$0xff]
  %v44 = vld [vmem:[%s0 + $0xb0] sm:$0xf]
  %v45 = vld [vmem:[%s0 + $0xb4] sm:$0xff]
  %v46 = vld [vmem:[%s0 + $0xbc] sm:$0xf]
  %v47 = vld [vmem:[%s0 + $0xc0] sm:$0xff]
  %v48 = vld [vmem:[%s0 + $0xc8] sm:$0xf]
  %v49 = vld [vmem:[%s0 + $0xcc] sm:$0xff]
  %v50 = vld [vmem:[%s0 + $0xd4] sm:$0xf]
  %v51 = vld [vmem:[%s0 + $0xd8] sm:$0xff]
  %v52 = vld [vmem:[%s0 + $0xe0] sm:$0xf]
  %v53 = vld [vmem:[%s0 + $0xe4] sm:$0xff]
  %v54 = vld [vmem:[%s0 + $0xec] sm:$0xf]
  %v55 = vld [vmem:[%s0 + $0xf0] sm:$0xff]
  %v56 = vld [vmem:[%s0 + $0xf8] sm:$0xf]
  %v57 = vld [vmem:[%s0 + $0xfc] sm:$0xff]
  %v58 = vld [vmem:[%s0 + $0x104] sm:$0xf]
  %v59 = vld [vmem:[%s0 + $0x108] sm:$0xff]
  %v60 = vld [vmem:[%s0 + $0x110] sm:$0xf]
  %v61 = vld [vmem:[%s0 + $0x114] sm:$0xff]
  %v62 = vld [vmem:[%s0 + $0x11c] sm:$0xf]
  %v63 = vld [vmem:[%s0 + $0x120] sm:$0xff]
  %v64 = vld [vmem:[%s0 + $0x128] sm:$0xf]
  %v65 = vld [vmem:[%s0 + $0x12c] sm:$0xff]
  %v66 = vld [vmem:[%s0 + $0x134] sm:$0xf]
  %v67 = vld [vmem:[%s0 + $0x138] sm:$0xff]
  %v68 = vld [vmem:[%s0 + $0x140] sm:$0xf]
  %v69 = vld [vmem:[%s0 + $0x144] sm:$0xff]
  %v70 = vld [vmem:[%s0 + $0x14c] sm:$0xf]
  %v71 = vld [vmem:[%s0 + $0x150] sm:$0xff]
  %v72 = vld [vmem:[%s0 + $0x158] sm:$0xf]
  %v73 = vld [vmem:[%s0 + $0x15c] sm:$0xff]
  %v74 = vld [vmem:[%s0 + $0x164] sm:$0xf]
  %v75 = vld [vmem:[%s0 + $0x168] sm:$0xff]
  %v76 = vld [vmem:[%s0 + $0x170] sm:$0xf]
  %v77 = vld [vmem:[%s0 + $0x174] sm:$0xff]
  %v78 = vld [vmem:[%s0 + $0x17c] sm:$0xf]
  %v79 = vld [vmem:[%s0 + $0x180] sm:$0xff]
  %v80 = vld [vmem:[%s0 + $0x188] sm:$0xf]
  %v81 = vld [vmem:[%s0 + $0x18c] sm:$0xff]
  %v82 = vld [vmem:[%s0 + $0x194] sm:$0xf]
  %v83 = vld [vmem:[%s0 + $0x198] sm:$0xff]
  %v84 = vld [vmem:[%s0 + $0x1a0] sm:$0xf]
  %v85 = vld [vmem:[%s0 + $0x1a4] sm:$0xff]
  %v86 = vld [vmem:[%s0 + $0x1ac] sm:$0xf]
  %v87 = vld [vmem:[%s0 + $0x1b0] sm:$0xff]
  %v88 = vld [vmem:[%s0 + $0x1b8] sm:$0xf]
  %v89 = vld [vmem:[%s0 + $0x1bc] sm:$0xff]
  %v90 = vld [vmem:[%s0 + $0x1c4] sm:$0xf]
  %v91 = vld [vmem:[%s0 + $0x1c8] sm:$0xff]
  %v92 = vld [vmem:[%s0 + $0x1d0] sm:$0xf]
  %v93 = vld [vmem:[%s0 + $0x1d4] sm:$0xff]
  %v94 = vld [vmem:[%s0 + $0x1dc] sm:$0xf]
  %v95 = vld [vmem:[%s0 + $0x1e0] sm:$0xff]
  %v96 = vld [vmem:[%s0 + $0x1e8] sm:$0xf]
  %v97 = vld [vmem:[%s0 + $0x1ec] sm:$0xff]
  %v98 = vld [vmem:[%s0 + $0x1f4] sm:$0xf]
  %v99 = vld [vmem:[%s0 + $0x1f8] sm:$0xff]
  %v100 = vld [vmem:[%s0 + $0x200] sm:$0xf]
  %v101 = vld [vmem:[%s0 + $0x204] sm:$0xff]
  %v102 = vld [vmem:[%s0 + $0x20c] sm:$0xf]
  %v103 = vld [vmem:[%s0 + $0x210] sm:$0xff]
  %v104 = vld [vmem:[%s0 + $0x218] sm:$0xf]
  %v105 = vld [vmem:[%s0 + $0x21c] sm:$0xff]
  %v106 = vld [vmem:[%s0 + $0x224] sm:$0xf]
  %v107 = vld [vmem:[%s0 + $0x228] sm:$0xff]
  %v108 = vld [vmem:[%s0 + $0x230] sm:$0xf]
  %v109 = vld [vmem:[%s0 + $0x234] sm:$0xff]
  %v110 = vld [vmem:[%s0 + $0x23c] sm:$0xf]
  %v111 = vld [vmem:[%s0 + $0x240] sm:$0xff]
  %v112 = vld [vmem:[%s0 + $0x248] sm:$0xf]
  %v113 = vld [vmem:[%s0 + $0x24c] sm:$0xff]
  %v114 = vld [vmem:[%s0 + $0x254] sm:$0xf]
  %v115 = vld [vmem:[%s0 + $0x258] sm:$0xff]
  %v116 = vld [vmem:[%s0 + $0x260] sm:$0xf]
  %v117 = vld [vmem:[%s0 + $0x264] sm:$0xff]
  %v118 = vld [vmem:[%s0 + $0x26c] sm:$0xf]
  %v119 = vld [vmem:[%s0 + $0x270] sm:$0xff]
  %v120 = vld [vmem:[%s0 + $0x278] sm:$0xf]
  %v121 = vld [vmem:[%s0 + $0x27c] sm:$0xff]
  %v122 = vld [vmem:[%s0 + $0x284] sm:$0xf]
  %v123 = vld [vmem:[%s0 + $0x288] sm:$0xff]
  %v124 = vld [vmem:[%s0 + $0x290] sm:$0xf]
  %v125 = vld [vmem:[%s0 + $0x294] sm:$0xff]
  %v126 = vld [vmem:[%s0 + $0x29c] sm:$0xf]
  %v127 = vld [vmem:[%s0 + $0x2a0] sm:$0xff]
  %v128 = vld [vmem:[%s0 + $0x2a8] sm:$0xf]
  %v129 = vld [vmem:[%s0 + $0x2ac] sm:$0xff]
  %v130 = vld [vmem:[%s0 + $0x2b4] sm:$0xf]
  %v131 = vld [vmem:[%s0 + $0x2b8] sm:$0xff]
  %v132 = vld [vmem:[%s0 + $0x2c0] sm:$0xf]
  %v133 = vld [vmem:[%s0 + $0x2c4] sm:$0xff]
  %v134 = vld [vmem:[%s0 + $0x2cc] sm:$0xf]
  %v135 = vld [vmem:[%s0 + $0x2d0] sm:$0xff]
  %v136 = vld [vmem:[%s0 + $0x2d8] sm:$0xf]
  %v137 = vld [vmem:[%s0 + $0x2dc] sm:$0xff]
  %v138 = vld [vmem:[%s0 + $0x2e4] sm:$0xf]
  %v139 = vld [vmem:[%s0 + $0x2e8] sm:$0xff]
  %v140 = vld [vmem:[%s0 + $0x2f0] sm:$0xf]
  %v141 = vld [vmem:[%s0 + $0x2f4] sm:$0xff]
  %v142 = vld [vmem:[%s0 + $0x2fc] sm:$0xf]
  %v143 = vld [vmem:[%s1] sm:$0xf]
  %v144 = vld [vmem:[%s1 + $0x4] sm:$0xf]
  %v145 = vld [vmem:[%s1 + $0x8] sm:$0xf]
  %v146 = vld [vmem:[%s1 + $0xc] sm:$0xf]
  %v147 = vld [vmem:[%s1 + $0x10] sm:$0xf]
  %v148 = vld [vmem:[%s1 + $0x14] sm:$0xf]
  %v149 = vld [vmem:[%s1 + $0x18] sm:$0xf]
  %v150 = vld [vmem:[%s1 + $0x1c] sm:$0xf]
  %v151 = vld [vmem:[%s1 + $0x20] sm:$0xf]
  %v152 = vld [vmem:[%s1 + $0x24] sm:$0xf]
  %v153 = vld [vmem:[%s1 + $0x28] sm:$0xf]
  %v154 = vld [vmem:[%s1 + $0x2c] sm:$0xf]
  %v155 = vld [vmem:[%s1 + $0x30] sm:$0xf]
  %v156 = vld [vmem:[%s1 + $0x34] sm:$0xf]
  %v157 = vld [vmem:[%s1 + $0x38] sm:$0xf]
  %v158 = vld [vmem:[%s1 + $0x3c] sm:$0xf]
  %v159 = vld [vmem:[%s1 + $0x40] sm:$0xf]
  %v160 = vld [vmem:[%s1 + $0x44] sm:$0xf]
  %v161 = vld [vmem:[%s1 + $0x48] sm:$0xf]
  %v162 = vld [vmem:[%s1 + $0x4c] sm:$0xf]
  %v163 = vld [vmem:[%s1 + $0x50] sm:$0xf]
  %v164 = vld [vmem:[%s1 + $0x54] sm:$0xf]
  %v165 = vld [vmem:[%s1 + $0x58] sm:$0xf]
  %v166 = vld [vmem:[%s1 + $0x5c] sm:$0xf]
  %v167 = vld [vmem:[%s1 + $0x60] sm:$0xf]
  %v168 = vld [vmem:[%s1 + $0x64] sm:$0xf]
  %v169 = vld [vmem:[%s1 + $0x68] sm:$0xf]
  %v170 = vld [vmem:[%s1 + $0x6c] sm:$0xf]
  %v171 = vld [vmem:[%s1 + $0x70] sm:$0xf]
  %v172 = vld [vmem:[%s1 + $0x74] sm:$0xf]
  %v173 = vld [vmem:[%s1 + $0x78] sm:$0xf]
  %v174 = vld [vmem:[%s1 + $0x7c] sm:$0xf]
  %v175 = vld [vmem:[%s1 + $0x80] sm:$0xf]
  %v176 = vld [vmem:[%s1 + $0x84] sm:$0xf]
  %v177 = vld [vmem:[%s1 + $0x88] sm:$0xf]
  %v178 = vld [vmem:[%s1 + $0x8c] sm:$0xf]
  %v307 = vunpack.c.l.b16 %v15
  %v308 = vunpack.c.h.b16 %v15
  %v309 = vunpack.c.l.b16 %v16
  %v310 = vunpack.c.l.b16 %v17
  %v311 = vunpack.c.h.b16 %v17
  %v312 = vunpack.c.l.b16 %v18
  %v313 = vunpack.c.l.b16 %v19
  %v314 = vunpack.c.h.b16 %v19
  %v315 = vunpack.c.l.b16 %v20
  %v316 = vunpack.c.l.b16 %v21
  %v317 = vunpack.c.h.b16 %v21
  %v318 = vunpack.c.l.b16 %v22
  %v319 = vunpack.c.l.b16 %v23
  %v320 = vunpack.c.h.b16 %v23
  %v321 = vunpack.c.l.b16 %v24
  %v322 = vunpack.c.l.b16 %v25
  %v323 = vunpack.c.h.b16 %v25
  %v324 = vunpack.c.l.b16 %v26
  %v325 = vunpack.c.l.b16 %v27
  %v326 = vunpack.c.h.b16 %v27
  %v327 = vunpack.c.l.b16 %v28
  %v328 = vunpack.c.l.b16 %v29
  %v329 = vunpack.c.h.b16 %v29
  %v330 = vunpack.c.l.b16 %v30
  %v331 = vunpack.c.l.b16 %v31
  %v332 = vunpack.c.h.b16 %v31
  %v333 = vunpack.c.l.b16 %v32
  %v334 = vunpack.c.l.b16 %v33
  %v335 = vunpack.c.h.b16 %v33
  %v336 = vunpack.c.l.b16 %v34
  %v337 = vunpack.c.l.b16 %v35
  %v338 = vunpack.c.h.b16 %v35
  %v339 = vunpack.c.l.b16 %v36
  %v340 = vunpack.c.l.b16 %v37
  %v341 = vunpack.c.h.b16 %v37
  %v342 = vunpack.c.l.b16 %v38
  %v343 = vunpack.c.l.b16 %v39
  %v344 = vunpack.c.h.b16 %v39
  %v345 = vunpack.c.l.b16 %v40
  %v346 = vunpack.c.l.b16 %v41
  %v347 = vunpack.c.h.b16 %v41
  %v348 = vunpack.c.l.b16 %v42
  %v349 = vunpack.c.l.b16 %v43
  %v350 = vunpack.c.h.b16 %v43
  %v351 = vunpack.c.l.b16 %v44
  %v352 = vunpack.c.l.b16 %v45
  %v353 = vunpack.c.h.b16 %v45
  %v354 = vunpack.c.l.b16 %v46
  %v355 = vunpack.c.l.b16 %v47
  %v356 = vunpack.c.h.b16 %v47
  %v357 = vunpack.c.l.b16 %v48
  %v358 = vunpack.c.l.b16 %v49
  %v359 = vunpack.c.h.b16 %v49
  %v360 = vunpack.c.l.b16 %v50
  %v361 = vunpack.c.l.b16 %v51
  %v362 = vunpack.c.h.b16 %v51
  %v363 = vunpack.c.l.b16 %v52
  %v364 = vunpack.c.l.b16 %v53
  %v365 = vunpack.c.h.b16 %v53
  %v366 = vunpack.c.l.b16 %v54
  %v367 = vunpack.c.l.b16 %v55
  %v368 = vunpack.c.h.b16 %v55
  %v369 = vunpack.c.l.b16 %v56
  %v370 = vunpack.c.l.b16 %v57
  %v371 = vunpack.c.h.b16 %v57
  %v372 = vunpack.c.l.b16 %v58
  %v373 = vunpack.c.l.b16 %v59
  %v374 = vunpack.c.h.b16 %v59
  %v375 = vunpack.c.l.b16 %v60
  %v376 = vunpack.c.l.b16 %v61
  %v377 = vunpack.c.h.b16 %v61
  %v378 = vunpack.c.l.b16 %v62
  %v379 = vunpack.c.l.b16 %v63
  %v380 = vunpack.c.h.b16 %v63
  %v381 = vunpack.c.l.b16 %v64
  %v382 = vunpack.c.l.b16 %v65
  %v383 = vunpack.c.h.b16 %v65
  %v384 = vunpack.c.l.b16 %v66
  %v385 = vunpack.c.l.b16 %v67
  %v386 = vunpack.c.h.b16 %v67
  %v387 = vunpack.c.l.b16 %v68
  %v388 = vunpack.c.l.b16 %v69
  %v389 = vunpack.c.h.b16 %v69
  %v390 = vunpack.c.l.b16 %v70
  %v391 = vunpack.c.l.b16 %v71
  %v392 = vunpack.c.h.b16 %v71
  %v393 = vunpack.c.l.b16 %v72
  %v394 = vunpack.c.l.b16 %v73
  %v395 = vunpack.c.h.b16 %v73
  %v396 = vunpack.c.l.b16 %v74
  %v397 = vunpack.c.l.b16 %v75
  %v398 = vunpack.c.h.b16 %v75
  %v399 = vunpack.c.l.b16 %v76
  %v400 = vunpack.c.l.b16 %v77
  %v401 = vunpack.c.h.b16 %v77
  %v402 = vunpack.c.l.b16 %v78
  %v403 = vunpack.c.l.b16 %v79
  %v404 = vunpack.c.h.b16 %v79
  %v405 = vunpack.c.l.b16 %v80
  %v406 = vunpack.c.l.b16 %v81
  %v407 = vunpack.c.h.b16 %v81
  %v408 = vunpack.c.l.b16 %v82
  %v409 = vunpack.c.l.b16 %v83
  %v410 = vunpack.c.h.b16 %v83
  %v411 = vunpack.c.l.b16 %v84
  %v412 = vunpack.c.l.b16 %v85
  %v413 = vunpack.c.h.b16 %v85
  %v414 = vunpack.c.l.b16 %v86
  %v415 = vunpack.c.l.b16 %v87
  %v416 = vunpack.c.h.b16 %v87
  %v417 = vunpack.c.l.b16 %v88
  %v418 = vunpack.c.l.b16 %v89
  %v419 = vunpack.c.h.b16 %v89
  %v420 = vunpack.c.l.b16 %v90
  %v421 = vunpack.c.l.b16 %v91
  %v422 = vunpack.c.h.b16 %v91
  %v423 = vunpack.c.l.b16 %v92
  %v424 = vunpack.c.l.b16 %v93
  %v425 = vunpack.c.h.b16 %v93
  %v426 = vunpack.c.l.b16 %v94
  %v427 = vunpack.c.l.b16 %v95
  %v428 = vunpack.c.h.b16 %v95
  %v429 = vunpack.c.l.b16 %v96
  %v430 = vunpack.c.l.b16 %v97
  %v431 = vunpack.c.h.b16 %v97
  %v432 = vunpack.c.l.b16 %v98
  %v433 = vunpack.c.l.b16 %v99
  %v434 = vunpack.c.h.b16 %v99
  %v435 = vunpack.c.l.b16 %v100
  %v436 = vunpack.c.l.b16 %v101
  %v437 = vunpack.c.h.b16 %v101
  %v438 = vunpack.c.l.b16 %v102
  %v439 = vunpack.c.l.b16 %v103
  %v440 = vunpack.c.h.b16 %v103
  %v441 = vunpack.c.l.b16 %v104
  %v442 = vunpack.c.l.b16 %v105
  %v443 = vunpack.c.h.b16 %v105
  %v444 = vunpack.c.l.b16 %v106
  %v445 = vunpack.c.l.b16 %v107
  %v446 = vunpack.c.h.b16 %v107
  %v447 = vunpack.c.l.b16 %v108
  %v448 = vunpack.c.l.b16 %v109
  %v449 = vunpack.c.h.b16 %v109
  %v450 = vunpack.c.l.b16 %v110
  %v451 = vunpack.c.l.b16 %v111
  %v452 = vunpack.c.h.b16 %v111
  %v453 = vunpack.c.l.b16 %v112
  %v454 = vunpack.c.l.b16 %v113
  %v455 = vunpack.c.h.b16 %v113
  %v456 = vunpack.c.l.b16 %v114
  %v457 = vunpack.c.l.b16 %v115
  %v458 = vunpack.c.h.b16 %v115
  %v459 = vunpack.c.l.b16 %v116
  %v460 = vunpack.c.l.b16 %v117
  %v461 = vunpack.c.h.b16 %v117
  %v462 = vunpack.c.l.b16 %v118
  %v463 = vunpack.c.l.b16 %v119
  %v464 = vunpack.c.h.b16 %v119
  %v465 = vunpack.c.l.b16 %v120
  %v466 = vunpack.c.l.b16 %v121
  %v467 = vunpack.c.h.b16 %v121
  %v468 = vunpack.c.l.b16 %v122
  %v469 = vunpack.c.l.b16 %v123
  %v470 = vunpack.c.h.b16 %v123
  %v471 = vunpack.c.l.b16 %v124
  %v472 = vunpack.c.l.b16 %v125
  %v473 = vunpack.c.h.b16 %v125
  %v474 = vunpack.c.l.b16 %v126
  %v475 = vunpack.c.l.b16 %v127
  %v476 = vunpack.c.h.b16 %v127
  %v477 = vunpack.c.l.b16 %v128
  %v478 = vunpack.c.l.b16 %v129
  %v479 = vunpack.c.h.b16 %v129
  %v480 = vunpack.c.l.b16 %v130
  %v481 = vunpack.c.l.b16 %v131
  %v482 = vunpack.c.h.b16 %v131
  %v483 = vunpack.c.l.b16 %v132
  %v484 = vunpack.c.l.b16 %v133
  %v485 = vunpack.c.h.b16 %v133
  %v486 = vunpack.c.l.b16 %v134
  %v487 = vunpack.c.l.b16 %v135
  %v488 = vunpack.c.h.b16 %v135
  %v489 = vunpack.c.l.b16 %v136
  %v490 = vunpack.c.l.b16 %v137
  %v491 = vunpack.c.h.b16 %v137
  %v492 = vunpack.c.l.b16 %v138
  %v493 = vunpack.c.l.b16 %v139
  %v494 = vunpack.c.h.b16 %v139
  %v495 = vunpack.c.l.b16 %v140
  %v496 = vunpack.c.l.b16 %v141
  %v497 = vunpack.c.h.b16 %v141
  %v498 = vunpack.c.l.b16 %v142
  %v499 = vpack.c.b16 %v310, %v307
  %v500 = vpack.c.b16 %v311, %v308
  %v501 = vpack.c.b16 %v312, %v309
  %v502 = vpack.c.b16 %v316, %v313
  %v503 = vpack.c.b16 %v317, %v314
  %v504 = vpack.c.b16 %v318, %v315
  %v505 = vpack.c.b16 %v322, %v319
  %v506 = vpack.c.b16 %v323, %v320
  %v507 = vpack.c.b16 %v324, %v321
  %v508 = vpack.c.b16 %v328, %v325
  %v509 = vpack.c.b16 %v329, %v326
  %v510 = vpack.c.b16 %v330, %v327
  %v511 = vpack.c.b16 %v334, %v331
  %v512 = vpack.c.b16 %v335, %v332
  %v513 = vpack.c.b16 %v336, %v333
  %v514 = vpack.c.b16 %v340, %v337
  %v515 = vpack.c.b16 %v341, %v338
  %v516 = vpack.c.b16 %v342, %v339
  %v517 = vpack.c.b16 %v346, %v343
  %v518 = vpack.c.b16 %v347, %v344
  %v519 = vpack.c.b16 %v348, %v345
  %v520 = vpack.c.b16 %v352, %v349
  %v521 = vpack.c.b16 %v353, %v350
  %v522 = vpack.c.b16 %v354, %v351
  %v523 = vpack.c.b16 %v358, %v355
  %v524 = vpack.c.b16 %v359, %v356
  %v525 = vpack.c.b16 %v360, %v357
  %v526 = vpack.c.b16 %v364, %v361
  %v527 = vpack.c.b16 %v365, %v362
  %v528 = vpack.c.b16 %v366, %v363
  %v529 = vpack.c.b16 %v370, %v367
  %v530 = vpack.c.b16 %v371, %v368
  %v531 = vpack.c.b16 %v372, %v369
  %v532 = vpack.c.b16 %v376, %v373
  %v533 = vpack.c.b16 %v377, %v374
  %v534 = vpack.c.b16 %v378, %v375
  %v535 = vpack.c.b16 %v382, %v379
  %v536 = vpack.c.b16 %v383, %v380
  %v537 = vpack.c.b16 %v384, %v381
  %v538 = vpack.c.b16 %v388, %v385
  %v539 = vpack.c.b16 %v389, %v386
  %v540 = vpack.c.b16 %v390, %v387
  %v541 = vpack.c.b16 %v394, %v391
  %v542 = vpack.c.b16 %v395, %v392
  %v543 = vpack.c.b16 %v396, %v393
  %v544 = vpack.c.b16 %v400, %v397
  %v545 = vpack.c.b16 %v401, %v398
  %v546 = vpack.c.b16 %v402, %v399
  %v547 = vpack.c.b16 %v406, %v403
  %v548 = vpack.c.b16 %v407, %v404
  %v549 = vpack.c.b16 %v408, %v405
  %v550 = vpack.c.b16 %v412, %v409
  %v551 = vpack.c.b16 %v413, %v410
  %v552 = vpack.c.b16 %v414, %v411
  %v553 = vpack.c.b16 %v418, %v415
  %v554 = vpack.c.b16 %v419, %v416
  %v555 = vpack.c.b16 %v420, %v417
  %v556 = vpack.c.b16 %v424, %v421
  %v557 = vpack.c.b16 %v425, %v422
  %v558 = vpack.c.b16 %v426, %v423
  %v559 = vpack.c.b16 %v430, %v427
  %v560 = vpack.c.b16 %v431, %v428
  %v561 = vpack.c.b16 %v432, %v429
  %v562 = vpack.c.b16 %v436, %v433
  %v563 = vpack.c.b16 %v437, %v434
  %v564 = vpack.c.b16 %v438, %v435
  %v565 = vpack.c.b16 %v442, %v439
  %v566 = vpack.c.b16 %v443, %v440
  %v567 = vpack.c.b16 %v444, %v441
  %v568 = vpack.c.b16 %v448, %v445
  %v569 = vpack.c.b16 %v449, %v446
  %v570 = vpack.c.b16 %v450, %v447
  %v571 = vpack.c.b16 %v454, %v451
  %v572 = vpack.c.b16 %v455, %v452
  %v573 = vpack.c.b16 %v456, %v453
  %v574 = vpack.c.b16 %v460, %v457
  %v575 = vpack.c.b16 %v461, %v458
  %v576 = vpack.c.b16 %v462, %v459
  %v577 = vpack.c.b16 %v466, %v463
  %v578 = vpack.c.b16 %v467, %v464
  %v579 = vpack.c.b16 %v468, %v465
  %v580 = vpack.c.b16 %v472, %v469
  %v581 = vpack.c.b16 %v473, %v470
  %v582 = vpack.c.b16 %v474, %v471
  %v583 = vpack.c.b16 %v478, %v475
  %v584 = vpack.c.b16 %v479, %v476
  %v585 = vpack.c.b16 %v480, %v477
  %v586 = vpack.c.b16 %v484, %v481
  %v587 = vpack.c.b16 %v485, %v482
  %v588 = vpack.c.b16 %v486, %v483
  %v589 = vpack.c.b16 %v490, %v487
  %v590 = vpack.c.b16 %v491, %v488
  %v591 = vpack.c.b16 %v492, %v489
  %v592 = vpack.c.b16 %v496, %v493
  %v593 = vpack.c.b16 %v497, %v494
  %v594 = vpack.c.b16 %v498, %v495
  %v695 = vunpack.c.l.b16 %v143
  %v696 = vunpack.c.l.b16 %v144
  %v697 = vunpack.c.l.b16 %v145
  %v698 = vunpack.c.l.b16 %v146
  %v699 = vunpack.c.l.b16 %v147
  %v700 = vunpack.c.l.b16 %v148
  %v701 = vunpack.c.l.b16 %v149
  %v702 = vunpack.c.l.b16 %v150
  %v703 = vunpack.c.l.b16 %v151
  %v704 = vunpack.c.l.b16 %v152
  %v705 = vunpack.c.l.b16 %v153
  %v706 = vunpack.c.l.b16 %v154
  %v707 = vunpack.c.l.b16 %v155
  %v708 = vunpack.c.l.b16 %v156
  %v709 = vunpack.c.l.b16 %v157
  %v710 = vunpack.c.l.b16 %v158
  %v711 = vunpack.c.l.b16 %v159
  %v712 = vunpack.c.l.b16 %v160
  %v713 = vunpack.c.l.b16 %v161
  %v714 = vunpack.c.l.b16 %v162
  %v715 = vunpack.c.l.b16 %v163
  %v716 = vunpack.c.l.b16 %v164
  %v717 = vunpack.c.l.b16 %v165
  %v718 = vunpack.c.l.b16 %v166
  %v719 = vunpack.c.l.b16 %v167
  %v720 = vunpack.c.l.b16 %v168
  %v721 = vunpack.c.l.b16 %v169
  %v722 = vunpack.c.l.b16 %v170
  %v723 = vunpack.c.l.b16 %v171
  %v724 = vunpack.c.l.b16 %v172
  %v725 = vunpack.c.l.b16 %v173
  %v726 = vunpack.c.l.b16 %v174
  %v727 = vunpack.c.l.b16 %v175
  %v728 = vunpack.c.l.b16 %v176
  %v729 = vunpack.c.l.b16 %v177
  %v730 = vunpack.c.l.b16 %v178
  %v731 = vpack.c.b16 %v696, %v695
  %v732 = vpack.c.b16 %v698, %v697
  %v733 = vpack.c.b16 %v700, %v699
  %v734 = vpack.c.b16 %v702, %v701
  %v735 = vpack.c.b16 %v704, %v703
  %v736 = vpack.c.b16 %v706, %v705
  %v737 = vpack.c.b16 %v708, %v707
  %v738 = vpack.c.b16 %v710, %v709
  %v739 = vpack.c.b16 %v712, %v711
  %v740 = vpack.c.b16 %v714, %v713
  %v741 = vpack.c.b16 %v716, %v715
  %v742 = vpack.c.b16 %v718, %v717
  %v743 = vpack.c.b16 %v720, %v719
  %v744 = vpack.c.b16 %v722, %v721
  %v745 = vpack.c.b16 %v724, %v723
  %v746 = vpack.c.b16 %v726, %v725
  %v747 = vpack.c.b16 %v728, %v727
  %v748 = vpack.c.b16 %v730, %v729
  %vm767 = vcmask 261120
  %v769 = vsel %vm767, %v501, 0
  %v772 = vsel %vm767, %v504, 0
  %v775 = vsel %vm767, %v507, 0
  %v778 = vsel %vm767, %v510, 0
  %v781 = vsel %vm767, %v513, 0
  %v784 = vsel %vm767, %v516, 0
  %v787 = vsel %vm767, %v519, 0
  %v790 = vsel %vm767, %v522, 0
  %v793 = vsel %vm767, %v525, 0
  %v796 = vsel %vm767, %v528, 0
  %v799 = vsel %vm767, %v531, 0
  %v802 = vsel %vm767, %v534, 0
  %v805 = vsel %vm767, %v537, 0
  %v808 = vsel %vm767, %v540, 0
  %v811 = vsel %vm767, %v543, 0
  %v814 = vsel %vm767, %v546, 0
  %v817 = vsel %vm767, %v549, 0
  %v820 = vsel %vm767, %v552, 0
  %v823 = vsel %vm767, %v555, 0
  %v826 = vsel %vm767, %v558, 0
  %v829 = vsel %vm767, %v561, 0
  %v832 = vsel %vm767, %v564, 0
  %v835 = vsel %vm767, %v567, 0
  %v838 = vsel %vm767, %v570, 0
  %v841 = vsel %vm767, %v573, 0
  %v844 = vsel %vm767, %v576, 0
  %v847 = vsel %vm767, %v579, 0
  %v850 = vsel %vm767, %v582, 0
  %v853 = vsel %vm767, %v585, 0
  %v856 = vsel %vm767, %v588, 0
  %v859 = vsel %vm767, %v591, 0
  %v862 = vsel %vm767, %v594, 0
  %864 = vmatprep.subr.bf16.mxu0 0
  %865 = vmatpush1.bf16.msra.mxu0 %v738
  %866 = vmatprep.subr.bf16.mxu0 0
  %867 = vmatpush1.bf16.msra.mxu0 %v737
  %868 = vmatprep.subr.bf16.mxu0 0
  %869 = vmatpush1.bf16.msra.mxu0 %v736
  %870 = vmatprep.subr.bf16.mxu0 0
  %871 = vmatpush1.bf16.msra.mxu0 %v735
  %872 = vmatprep.subr.bf16.mxu0 0
  %873 = vmatpush1.bf16.msra.mxu0 %v734
  %874 = vmatprep.subr.bf16.mxu0 0
  %875 = vmatpush1.bf16.msra.mxu0 %v733
  %876 = vmatprep.subr.bf16.mxu0 0
  %877 = vmatpush1.bf16.msra.mxu0 %v732
  %878 = vmatprep.subr.bf16.mxu0 0
  %879 = vmatpush1.bf16.msra.mxu0 %v731
  %880 = vmatprep.subr.bf16.mxu0 0
  %881 = vmatpush2.bf16.msra.mxu0 %v746
  %882 = vmatprep.subr.bf16.mxu0 0
  %883 = vmatpush2.bf16.msra.mxu0 %v745
  %884 = vmatprep.subr.bf16.mxu0 0
  %885 = vmatpush2.bf16.msra.mxu0 %v744
  %886 = vmatprep.subr.bf16.mxu0 0
  %887 = vmatpush2.bf16.msra.mxu0 %v743
  %888 = vmatprep.subr.bf16.mxu0 0
  %889 = vmatpush2.bf16.msra.mxu0 %v742
  %890 = vmatprep.subr.bf16.mxu0 0
  %891 = vmatpush2.bf16.msra.mxu0 %v741
  %892 = vmatprep.subr.bf16.mxu0 0
  %893 = vmatpush2.bf16.msra.mxu0 %v740
  %894 = vmatprep.subr.bf16.mxu0 0
  %895 = vmatpush2.bf16.msra.mxu0 %v739
  %896 = vmatprep.mubr.bf16.mxu0 %v500
  %897 = vmatmul.mubr.bf16.gmra.mxu0 %v499
  %v898 = vpop.f32.mrf.mxu0
  %v899 = vadd.f32 0.0, %v898
  %v900 = vpop.f32.mrf.mxu0
  %v901 = vpop.f32.mrf.mxu0
  %v902 = vadd.f32 0.0, %v901
  %v903 = vpop.f32.mrf.mxu0
  %904 = vmatprep.mubr.bf16.mxu0 %v503
  %905 = vmatmul.mubr.bf16.gmra.mxu0 %v502
  %v906 = vpop.f32.mrf.mxu0
  %v907 = vadd.f32 0.0, %v906
  %v908 = vpop.f32.mrf.mxu0
  %v909 = vpop.f32.mrf.mxu0
  %v910 = vadd.f32 0.0, %v909
  %v911 = vpop.f32.mrf.mxu0
  %912 = vmatprep.mubr.bf16.mxu0 %v506
  %913 = vmatmul.mubr.bf16.gmra.mxu0 %v505
  %v914 = vpop.f32.mrf.mxu0
  %v915 = vadd.f32 0.0, %v914
  %v916 = vpop.f32.mrf.mxu0
  %v917 = vpop.f32.mrf.mxu0
  %v918 = vadd.f32 0.0, %v917
  %v919 = vpop.f32.mrf.mxu0
  %920 = vmatprep.mubr.bf16.mxu0 %v509
  %921 = vmatmul.mubr.bf16.gmra.mxu0 %v508
  %v922 = vpop.f32.mrf.mxu0
  %v923 = vadd.f32 0.0, %v922
  %v924 = vpop.f32.mrf.mxu0
  %v925 = vpop.f32.mrf.mxu0
  %v926 = vadd.f32 0.0, %v925
  %v927 = vpop.f32.mrf.mxu0
  %928 = vmatprep.mubr.bf16.mxu0 %v512
  %929 = vmatmul.mubr.bf16.gmra.mxu0 %v511
  %v930 = vpop.f32.mrf.mxu0
  %v931 = vadd.f32 0.0, %v930
  %v932 = vpop.f32.mrf.mxu0
  %v933 = vpop.f32.mrf.mxu0
  %v934 = vadd.f32 0.0, %v933
  %v935 = vpop.f32.mrf.mxu0
  %936 = vmatprep.mubr.bf16.mxu0 %v515
  %937 = vmatmul.mubr.bf16.gmra.mxu0 %v514
  %v938 = vpop.f32.mrf.mxu0
  %v939 = vadd.f32 0.0, %v938
  %v940 = vpop.f32.mrf.mxu0
  %v941 = vpop.f32.mrf.mxu0
  %v942 = vadd.f32 0.0, %v941
  %v943 = vpop.f32.mrf.mxu0
  %944 = vmatprep.mubr.bf16.mxu0 %v518
  %945 = vmatmul.mubr.bf16.gmra.mxu0 %v517
  %v946 = vpop.f32.mrf.mxu0
  %v947 = vadd.f32 0.0, %v946
  %v948 = vpop.f32.mrf.mxu0
  %v949 = vpop.f32.mrf.mxu0
  %v950 = vadd.f32 0.0, %v949
  %v951 = vpop.f32.mrf.mxu0
  %952 = vmatprep.mubr.bf16.mxu0 %v521
  %953 = vmatmul.mubr.bf16.gmra.mxu0 %v520
  %v954 = vpop.f32.mrf.mxu0
  %v955 = vadd.f32 0.0, %v954
  %v956 = vpop.f32.mrf.mxu0
  %v957 = vpop.f32.mrf.mxu0
  %v958 = vadd.f32 0.0, %v957
  %v959 = vpop.f32.mrf.mxu0
  %960 = vmatprep.mubr.bf16.mxu0 %v524
  %961 = vmatmul.mubr.bf16.gmra.mxu0 %v523
  %v962 = vpop.f32.mrf.mxu0
  %v963 = vadd.f32 0.0, %v962
  %v964 = vpop.f32.mrf.mxu0
  %v965 = vpop.f32.mrf.mxu0
  %v966 = vadd.f32 0.0, %v965
  %v967 = vpop.f32.mrf.mxu0
  %968 = vmatprep.mubr.bf16.mxu0 %v527
  %969 = vmatmul.mubr.bf16.gmra.mxu0 %v526
  %v970 = vpop.f32.mrf.mxu0
  %v971 = vadd.f32 0.0, %v970
  %v972 = vpop.f32.mrf.mxu0
  %v973 = vpop.f32.mrf.mxu0
  %v974 = vadd.f32 0.0, %v973
  %v975 = vpop.f32.mrf.mxu0
  %976 = vmatprep.mubr.bf16.mxu0 %v530
  %977 = vmatmul.mubr.bf16.gmra.mxu0 %v529
  %v978 = vpop.f32.mrf.mxu0
  %v979 = vadd.f32 0.0, %v978
  %v980 = vpop.f32.mrf.mxu0
  %v981 = vpop.f32.mrf.mxu0
  %v982 = vadd.f32 0.0, %v981
  %v983 = vpop.f32.mrf.mxu0
  %984 = vmatprep.mubr.bf16.mxu0 %v533
  %985 = vmatmul.mubr.bf16.gmra.mxu0 %v532
  %v986 = vpop.f32.mrf.mxu0
  %v987 = vadd.f32 0.0, %v986
  %v988 = vpop.f32.mrf.mxu0
  %v989 = vpop.f32.mrf.mxu0
  %v990 = vadd.f32 0.0, %v989
  %v991 = vpop.f32.mrf.mxu0
  %992 = vmatprep.mubr.bf16.mxu0 %v536
  %993 = vmatmul.mubr.bf16.gmra.mxu0 %v535
  %v994 = vpop.f32.mrf.mxu0
  %v995 = vadd.f32 0.0, %v994
  %v996 = vpop.f32.mrf.mxu0
  %v997 = vpop.f32.mrf.mxu0
  %v998 = vadd.f32 0.0, %v997
  %v999 = vpop.f32.mrf.mxu0
  %1000 = vmatprep.mubr.bf16.mxu0 %v539
  %1001 = vmatmul.mubr.bf16.gmra.mxu0 %v538
  %v1002 = vpop.f32.mrf.mxu0
  %v1003 = vadd.f32 0.0, %v1002
  %v1004 = vpop.f32.mrf.mxu0
  %v1005 = vpop.f32.mrf.mxu0
  %v1006 = vadd.f32 0.0, %v1005
  %v1007 = vpop.f32.mrf.mxu0
  %1008 = vmatprep.mubr.bf16.mxu0 %v542
  %1009 = vmatmul.mubr.bf16.gmra.mxu0 %v541
  %v1010 = vpop.f32.mrf.mxu0
  %v1011 = vadd.f32 0.0, %v1010
  %v1012 = vpop.f32.mrf.mxu0
  %v1013 = vpop.f32.mrf.mxu0
  %v1014 = vadd.f32 0.0, %v1013
  %v1015 = vpop.f32.mrf.mxu0
  %1016 = vmatprep.mubr.bf16.mxu0 %v545
  %1017 = vmatmul.mubr.bf16.gmra.mxu0 %v544
  %v1018 = vpop.f32.mrf.mxu0
  %v1019 = vadd.f32 0.0, %v1018
  %v1020 = vpop.f32.mrf.mxu0
  %v1021 = vpop.f32.mrf.mxu0
  %v1022 = vadd.f32 0.0, %v1021
  %v1023 = vpop.f32.mrf.mxu0
  %1024 = vmatprep.mubr.bf16.mxu0 %v548
  %1025 = vmatmul.mubr.bf16.gmra.mxu0 %v547
  %v1026 = vpop.f32.mrf.mxu0
  %v1027 = vadd.f32 0.0, %v1026
  %v1028 = vpop.f32.mrf.mxu0
  %v1029 = vpop.f32.mrf.mxu0
  %v1030 = vadd.f32 0.0, %v1029
  %v1031 = vpop.f32.mrf.mxu0
  %1032 = vmatprep.mubr.bf16.mxu0 %v551
  %1033 = vmatmul.mubr.bf16.gmra.mxu0 %v550
  %v1034 = vpop.f32.mrf.mxu0
  %v1035 = vadd.f32 0.0, %v1034
  %v1036 = vpop.f32.mrf.mxu0
  %v1037 = vpop.f32.mrf.mxu0
  %v1038 = vadd.f32 0.0, %v1037
  %v1039 = vpop.f32.mrf.mxu0
  %1040 = vmatprep.mubr.bf16.mxu0 %v554
  %1041 = vmatmul.mubr.bf16.gmra.mxu0 %v553
  %v1042 = vpop.f32.mrf.mxu0
  %v1043 = vadd.f32 0.0, %v1042
  %v1044 = vpop.f32.mrf.mxu0
  %v1045 = vpop.f32.mrf.mxu0
  %v1046 = vadd.f32 0.0, %v1045
  %v1047 = vpop.f32.mrf.mxu0
  %1048 = vmatprep.mubr.bf16.mxu0 %v557
  %1049 = vmatmul.mubr.bf16.gmra.mxu0 %v556
  %v1050 = vpop.f32.mrf.mxu0
  %v1051 = vadd.f32 0.0, %v1050
  %v1052 = vpop.f32.mrf.mxu0
  %v1053 = vpop.f32.mrf.mxu0
  %v1054 = vadd.f32 0.0, %v1053
  %v1055 = vpop.f32.mrf.mxu0
  %1056 = vmatprep.mubr.bf16.mxu0 %v560
  %1057 = vmatmul.mubr.bf16.gmra.mxu0 %v559
  %v1058 = vpop.f32.mrf.mxu0
  %v1059 = vadd.f32 0.0, %v1058
  %v1060 = vpop.f32.mrf.mxu0
  %v1061 = vpop.f32.mrf.mxu0
  %v1062 = vadd.f32 0.0, %v1061
  %v1063 = vpop.f32.mrf.mxu0
  %1064 = vmatprep.mubr.bf16.mxu0 %v563
  %1065 = vmatmul.mubr.bf16.gmra.mxu0 %v562
  %v1066 = vpop.f32.mrf.mxu0
  %v1067 = vadd.f32 0.0, %v1066
  %v1068 = vpop.f32.mrf.mxu0
  %v1069 = vpop.f32.mrf.mxu0
  %v1070 = vadd.f32 0.0, %v1069
  %v1071 = vpop.f32.mrf.mxu0
  %1072 = vmatprep.mubr.bf16.mxu0 %v566
  %1073 = vmatmul.mubr.bf16.gmra.mxu0 %v565
  %v1074 = vpop.f32.mrf.mxu0
  %v1075 = vadd.f32 0.0, %v1074
  %v1076 = vpop.f32.mrf.mxu0
  %v1077 = vpop.f32.mrf.mxu0
  %v1078 = vadd.f32 0.0, %v1077
  %v1079 = vpop.f32.mrf.mxu0
  %1080 = vmatprep.mubr.bf16.mxu0 %v569
  %1081 = vmatmul.mubr.bf16.gmra.mxu0 %v568
  %v1082 = vpop.f32.mrf.mxu0
  %v1083 = vadd.f32 0.0, %v1082
  %v1084 = vpop.f32.mrf.mxu0
  %v1085 = vpop.f32.mrf.mxu0
  %v1086 = vadd.f32 0.0, %v1085
  %v1087 = vpop.f32.mrf.mxu0
  %1088 = vmatprep.mubr.bf16.mxu0 %v572
  %1089 = vmatmul.mubr.bf16.gmra.mxu0 %v571
  %v1090 = vpop.f32.mrf.mxu0
  %v1091 = vadd.f32 0.0, %v1090
  %v1092 = vpop.f32.mrf.mxu0
  %v1093 = vpop.f32.mrf.mxu0
  %v1094 = vadd.f32 0.0, %v1093
  %v1095 = vpop.f32.mrf.mxu0
  %1096 = vmatprep.mubr.bf16.mxu0 %v575
  %1097 = vmatmul.mubr.bf16.gmra.mxu0 %v574
  %v1098 = vpop.f32.mrf.mxu0
  %v1099 = vadd.f32 0.0, %v1098
  %v1100 = vpop.f32.mrf.mxu0
  %v1101 = vpop.f32.mrf.mxu0
  %v1102 = vadd.f32 0.0, %v1101
  %v1103 = vpop.f32.mrf.mxu0
  %1104 = vmatprep.mubr.bf16.mxu0 %v578
  %1105 = vmatmul.mubr.bf16.gmra.mxu0 %v577
  %v1106 = vpop.f32.mrf.mxu0
  %v1107 = vadd.f32 0.0, %v1106
  %v1108 = vpop.f32.mrf.mxu0
  %v1109 = vpop.f32.mrf.mxu0
  %v1110 = vadd.f32 0.0, %v1109
  %v1111 = vpop.f32.mrf.mxu0
  %1112 = vmatprep.mubr.bf16.mxu0 %v581
  %1113 = vmatmul.mubr.bf16.gmra.mxu0 %v580
  %v1114 = vpop.f32.mrf.mxu0
  %v1115 = vadd.f32 0.0, %v1114
  %v1116 = vpop.f32.mrf.mxu0
  %v1117 = vpop.f32.mrf.mxu0
  %v1118 = vadd.f32 0.0, %v1117
  %v1119 = vpop.f32.mrf.mxu0
  %1120 = vmatprep.mubr.bf16.mxu0 %v584
  %1121 = vmatmul.mubr.bf16.gmra.mxu0 %v583
  %v1122 = vpop.f32.mrf.mxu0
  %v1123 = vadd.f32 0.0, %v1122
  %v1124 = vpop.f32.mrf.mxu0
  %v1125 = vpop.f32.mrf.mxu0
  %v1126 = vadd.f32 0.0, %v1125
  %v1127 = vpop.f32.mrf.mxu0
  %1128 = vmatprep.mubr.bf16.mxu0 %v587
  %1129 = vmatmul.mubr.bf16.gmra.mxu0 %v586
  %v1130 = vpop.f32.mrf.mxu0
  %v1131 = vadd.f32 0.0, %v1130
  %v1132 = vpop.f32.mrf.mxu0
  %v1133 = vpop.f32.mrf.mxu0
  %v1134 = vadd.f32 0.0, %v1133
  %v1135 = vpop.f32.mrf.mxu0
  %1136 = vmatprep.mubr.bf16.mxu0 %v590
  %1137 = vmatmul.mubr.bf16.gmra.mxu0 %v589
  %v1138 = vpop.f32.mrf.mxu0
  %v1139 = vadd.f32 0.0, %v1138
  %v1140 = vpop.f32.mrf.mxu0
  %v1141 = vpop.f32.mrf.mxu0
  %v1142 = vadd.f32 0.0, %v1141
  %v1143 = vpop.f32.mrf.mxu0
  %1144 = vmatprep.mubr.bf16.mxu0 %v593
  %1145 = vmatmul.mubr.bf16.gmra.mxu0 %v592
  %v1146 = vpop.f32.mrf.mxu0
  %v1147 = vadd.f32 0.0, %v1146
  %v1148 = vpop.f32.mrf.mxu0
  %v1149 = vpop.f32.mrf.mxu0
  %v1150 = vadd.f32 0.0, %v1149
  %v1151 = vpop.f32.mrf.mxu0
  %1152 = vdwg.mxu0
  %1153 = vmatprep.subr.bf16.mxu0 0
  %1154 = vmatpush1.bf16.msra.mxu0 0
  %1155 = vmatprep.subr.bf16.mxu0 0
  %1156 = vmatpush1.bf16.msra.mxu0 0
  %1157 = vmatprep.subr.bf16.mxu0 0
  %1158 = vmatpush1.bf16.msra.mxu0 0
  %1159 = vmatprep.subr.bf16.mxu0 0
  %1160 = vmatpush1.bf16.msra.mxu0 0
  %1161 = vmatprep.subr.bf16.mxu0 0
  %1162 = vmatpush1.bf16.msra.mxu0 0
  %1163 = vmatprep.subr.bf16.mxu0 0
  %1164 = vmatpush1.bf16.msra.mxu0 0
  %1165 = vmatprep.subr.bf16.mxu0 0
  %1166 = vmatpush1.bf16.msra.mxu0 %v748
  %1167 = vmatprep.subr.bf16.mxu0 0
  %1168 = vmatpush1.bf16.msra.mxu0 %v747
  %1169 = vmatprep.subr.bf16.mxu0 0
  %1170 = vmatpush2.bf16.msra.mxu0 0
  %1171 = vmatprep.subr.bf16.mxu0 0
  %1172 = vmatpush2.bf16.msra.mxu0 0
  %1173 = vmatprep.subr.bf16.mxu0 0
  %1174 = vmatpush2.bf16.msra.mxu0 0
  %1175 = vmatprep.subr.bf16.mxu0 0
  %1176 = vmatpush2.bf16.msra.mxu0 0
  %1177 = vmatprep.subr.bf16.mxu0 0
  %1178 = vmatpush2.bf16.msra.mxu0 0
  %1179 = vmatprep.subr.bf16.mxu0 0
  %1180 = vmatpush2.bf16.msra.mxu0 0
  %1181 = vmatprep.subr.bf16.mxu0 0
  %1182 = vmatpush2.bf16.msra.mxu0 0
  %1183 = vmatprep.subr.bf16.mxu0 0
  %1184 = vmatpush2.bf16.msra.mxu0 0
  %1185 = vmatprep.mubr.bf16.mxu0 0
  %1186 = vmatmul.mubr.bf16.gmra.mxu0 %v769
  %v1187 = vpop.f32.mrf.mxu0
  %v1188 = vadd.f32 %v899, %v1187
  %v1189 = vpop.f32.mrf.mxu0
  %v1190 = vpop.f32.mrf.mxu0
  %v1191 = vadd.f32 %v902, %v1190
  %v1192 = vpop.f32.mrf.mxu0
  %1193 = vmatprep.mubr.bf16.mxu0 0
  %1194 = vmatmul.mubr.bf16.gmra.mxu0 %v772
  %v1195 = vpop.f32.mrf.mxu0
  %v1196 = vadd.f32 %v907, %v1195
  %v1197 = vpop.f32.mrf.mxu0
  %v1198 = vpop.f32.mrf.mxu0
  %v1199 = vadd.f32 %v910, %v1198
  %v1200 = vpop.f32.mrf.mxu0
  %1201 = vmatprep.mubr.bf16.mxu0 0
  %1202 = vmatmul.mubr.bf16.gmra.mxu0 %v775
  %v1203 = vpop.f32.mrf.mxu0
  %v1204 = vadd.f32 %v915, %v1203
  %v1205 = vpop.f32.mrf.mxu0
  %v1206 = vpop.f32.mrf.mxu0
  %v1207 = vadd.f32 %v918, %v1206
  %v1208 = vpop.f32.mrf.mxu0
  %1209 = vmatprep.mubr.bf16.mxu0 0
  %1210 = vmatmul.mubr.bf16.gmra.mxu0 %v778
  %v1211 = vpop.f32.mrf.mxu0
  %v1212 = vadd.f32 %v923, %v1211
  %v1213 = vpop.f32.mrf.mxu0
  %v1214 = vpop.f32.mrf.mxu0
  %v1215 = vadd.f32 %v926, %v1214
  %v1216 = vpop.f32.mrf.mxu0
  %1217 = vmatprep.mubr.bf16.mxu0 0
  %1218 = vmatmul.mubr.bf16.gmra.mxu0 %v781
  %v1219 = vpop.f32.mrf.mxu0
  %v1220 = vadd.f32 %v931, %v1219
  %v1221 = vpop.f32.mrf.mxu0
  %v1222 = vpop.f32.mrf.mxu0
  %v1223 = vadd.f32 %v934, %v1222
  %v1224 = vpop.f32.mrf.mxu0
  %1225 = vmatprep.mubr.bf16.mxu0 0
  %1226 = vmatmul.mubr.bf16.gmra.mxu0 %v784
  %v1227 = vpop.f32.mrf.mxu0
  %v1228 = vadd.f32 %v939, %v1227
  %v1229 = vpop.f32.mrf.mxu0
  %v1230 = vpop.f32.mrf.mxu0
  %v1231 = vadd.f32 %v942, %v1230
  %v1232 = vpop.f32.mrf.mxu0
  %1233 = vmatprep.mubr.bf16.mxu0 0
  %1234 = vmatmul.mubr.bf16.gmra.mxu0 %v787
  %v1235 = vpop.f32.mrf.mxu0
  %v1236 = vadd.f32 %v947, %v1235
  %v1237 = vpop.f32.mrf.mxu0
  %v1238 = vpop.f32.mrf.mxu0
  %v1239 = vadd.f32 %v950, %v1238
  %v1240 = vpop.f32.mrf.mxu0
  %1241 = vmatprep.mubr.bf16.mxu0 0
  %1242 = vmatmul.mubr.bf16.gmra.mxu0 %v790
  %v1243 = vpop.f32.mrf.mxu0
  %v1244 = vadd.f32 %v955, %v1243
  %v1245 = vpop.f32.mrf.mxu0
  %v1246 = vpop.f32.mrf.mxu0
  %v1247 = vadd.f32 %v958, %v1246
  %v1248 = vpop.f32.mrf.mxu0
  %1249 = vmatprep.mubr.bf16.mxu0 0
  %1250 = vmatmul.mubr.bf16.gmra.mxu0 %v793
  %v1251 = vpop.f32.mrf.mxu0
  %v1252 = vadd.f32 %v963, %v1251
  %v1253 = vpop.f32.mrf.mxu0
  %v1254 = vpop.f32.mrf.mxu0
  %v1255 = vadd.f32 %v966, %v1254
  %v1256 = vpop.f32.mrf.mxu0
  %1257 = vmatprep.mubr.bf16.mxu0 0
  %1258 = vmatmul.mubr.bf16.gmra.mxu0 %v796
  %v1259 = vpop.f32.mrf.mxu0
  %v1260 = vadd.f32 %v971, %v1259
  %v1261 = vpop.f32.mrf.mxu0
  %v1262 = vpop.f32.mrf.mxu0
  %v1263 = vadd.f32 %v974, %v1262
  %v1264 = vpop.f32.mrf.mxu0
  %1265 = vmatprep.mubr.bf16.mxu0 0
  %1266 = vmatmul.mubr.bf16.gmra.mxu0 %v799
  %v1267 = vpop.f32.mrf.mxu0
  %v1268 = vadd.f32 %v979, %v1267
  %v1269 = vpop.f32.mrf.mxu0
  %v1270 = vpop.f32.mrf.mxu0
  %v1271 = vadd.f32 %v982, %v1270
  %v1272 = vpop.f32.mrf.mxu0
  %1273 = vmatprep.mubr.bf16.mxu0 0
  %1274 = vmatmul.mubr.bf16.gmra.mxu0 %v802
  %v1275 = vpop.f32.mrf.mxu0
  %v1276 = vadd.f32 %v987, %v1275
  %v1277 = vpop.f32.mrf.mxu0
  %v1278 = vpop.f32.mrf.mxu0
  %v1279 = vadd.f32 %v990, %v1278
  %v1280 = vpop.f32.mrf.mxu0
  %1281 = vmatprep.mubr.bf16.mxu0 0
  %1282 = vmatmul.mubr.bf16.gmra.mxu0 %v805
  %v1283 = vpop.f32.mrf.mxu0
  %v1284 = vadd.f32 %v995, %v1283
  %v1285 = vpop.f32.mrf.mxu0
  %v1286 = vpop.f32.mrf.mxu0
  %v1287 = vadd.f32 %v998, %v1286
  %v1288 = vpop.f32.mrf.mxu0
  %1289 = vmatprep.mubr.bf16.mxu0 0
  %1290 = vmatmul.mubr.bf16.gmra.mxu0 %v808
  %v1291 = vpop.f32.mrf.mxu0
  %v1292 = vadd.f32 %v1003, %v1291
  %v1293 = vpop.f32.mrf.mxu0
  %v1294 = vpop.f32.mrf.mxu0
  %v1295 = vadd.f32 %v1006, %v1294
  %v1296 = vpop.f32.mrf.mxu0
  %1297 = vmatprep.mubr.bf16.mxu0 0
  %1298 = vmatmul.mubr.bf16.gmra.mxu0 %v811
  %v1299 = vpop.f32.mrf.mxu0
  %v1300 = vadd.f32 %v1011, %v1299
  %v1301 = vpop.f32.mrf.mxu0
  %v1302 = vpop.f32.mrf.mxu0
  %v1303 = vadd.f32 %v1014, %v1302
  %v1304 = vpop.f32.mrf.mxu0
  %1305 = vmatprep.mubr.bf16.mxu0 0
  %1306 = vmatmul.mubr.bf16.gmra.mxu0 %v814
  %v1307 = vpop.f32.mrf.mxu0
  %v1308 = vadd.f32 %v1019, %v1307
  %v1309 = vpop.f32.mrf.mxu0
  %v1310 = vpop.f32.mrf.mxu0
  %v1311 = vadd.f32 %v1022, %v1310
  %v1312 = vpop.f32.mrf.mxu0
  %1313 = vmatprep.mubr.bf16.mxu0 0
  %1314 = vmatmul.mubr.bf16.gmra.mxu0 %v817
  %v1315 = vpop.f32.mrf.mxu0
  %v1316 = vadd.f32 %v1027, %v1315
  %v1317 = vpop.f32.mrf.mxu0
  %v1318 = vpop.f32.mrf.mxu0
  %v1319 = vadd.f32 %v1030, %v1318
  %v1320 = vpop.f32.mrf.mxu0
  %1321 = vmatprep.mubr.bf16.mxu0 0
  %1322 = vmatmul.mubr.bf16.gmra.mxu0 %v820
  %v1323 = vpop.f32.mrf.mxu0
  %v1324 = vadd.f32 %v1035, %v1323
  %v1325 = vpop.f32.mrf.mxu0
  %v1326 = vpop.f32.mrf.mxu0
  %v1327 = vadd.f32 %v1038, %v1326
  %v1328 = vpop.f32.mrf.mxu0
  %1329 = vmatprep.mubr.bf16.mxu0 0
  %1330 = vmatmul.mubr.bf16.gmra.mxu0 %v823
  %v1331 = vpop.f32.mrf.mxu0
  %v1332 = vadd.f32 %v1043, %v1331
  %v1333 = vpop.f32.mrf.mxu0
  %v1334 = vpop.f32.mrf.mxu0
  %v1335 = vadd.f32 %v1046, %v1334
  %v1336 = vpop.f32.mrf.mxu0
  %1337 = vmatprep.mubr.bf16.mxu0 0
  %1338 = vmatmul.mubr.bf16.gmra.mxu0 %v826
  %v1339 = vpop.f32.mrf.mxu0
  %v1340 = vadd.f32 %v1051, %v1339
  %v1341 = vpop.f32.mrf.mxu0
  %v1342 = vpop.f32.mrf.mxu0
  %v1343 = vadd.f32 %v1054, %v1342
  %v1344 = vpop.f32.mrf.mxu0
  %1345 = vmatprep.mubr.bf16.mxu0 0
  %1346 = vmatmul.mubr.bf16.gmra.mxu0 %v829
  %v1347 = vpop.f32.mrf.mxu0
  %v1348 = vadd.f32 %v1059, %v1347
  %v1349 = vpop.f32.mrf.mxu0
  %v1350 = vpop.f32.mrf.mxu0
  %v1351 = vadd.f32 %v1062, %v1350
  %v1352 = vpop.f32.mrf.mxu0
  %1353 = vmatprep.mubr.bf16.mxu0 0
  %1354 = vmatmul.mubr.bf16.gmra.mxu0 %v832
  %v1355 = vpop.f32.mrf.mxu0
  %v1356 = vadd.f32 %v1067, %v1355
  %v1357 = vpop.f32.mrf.mxu0
  %v1358 = vpop.f32.mrf.mxu0
  %v1359 = vadd.f32 %v1070, %v1358
  %v1360 = vpop.f32.mrf.mxu0
  %1361 = vmatprep.mubr.bf16.mxu0 0
  %1362 = vmatmul.mubr.bf16.gmra.mxu0 %v835
  %v1363 = vpop.f32.mrf.mxu0
  %v1364 = vadd.f32 %v1075, %v1363
  %v1365 = vpop.f32.mrf.mxu0
  %v1366 = vpop.f32.mrf.mxu0
  %v1367 = vadd.f32 %v1078, %v1366
  %v1368 = vpop.f32.mrf.mxu0
  %1369 = vmatprep.mubr.bf16.mxu0 0
  %1370 = vmatmul.mubr.bf16.gmra.mxu0 %v838
  %v1371 = vpop.f32.mrf.mxu0
  %v1372 = vadd.f32 %v1083, %v1371
  %v1373 = vpop.f32.mrf.mxu0
  %v1374 = vpop.f32.mrf.mxu0
  %v1375 = vadd.f32 %v1086, %v1374
  %v1376 = vpop.f32.mrf.mxu0
  %1377 = vmatprep.mubr.bf16.mxu0 0
  %1378 = vmatmul.mubr.bf16.gmra.mxu0 %v841
  %v1379 = vpop.f32.mrf.mxu0
  %v1380 = vadd.f32 %v1091, %v1379
  %v1381 = vpop.f32.mrf.mxu0
  %v1382 = vpop.f32.mrf.mxu0
  %v1383 = vadd.f32 %v1094, %v1382
  %v1384 = vpop.f32.mrf.mxu0
  %1385 = vmatprep.mubr.bf16.mxu0 0
  %1386 = vmatmul.mubr.bf16.gmra.mxu0 %v844
  %v1387 = vpop.f32.mrf.mxu0
  %v1388 = vadd.f32 %v1099, %v1387
  %v1389 = vpop.f32.mrf.mxu0
  %v1390 = vpop.f32.mrf.mxu0
  %v1391 = vadd.f32 %v1102, %v1390
  %v1392 = vpop.f32.mrf.mxu0
  %1393 = vmatprep.mubr.bf16.mxu0 0
  %1394 = vmatmul.mubr.bf16.gmra.mxu0 %v847
  %v1395 = vpop.f32.mrf.mxu0
  %v1396 = vadd.f32 %v1107, %v1395
  %v1397 = vpop.f32.mrf.mxu0
  %v1398 = vpop.f32.mrf.mxu0
  %v1399 = vadd.f32 %v1110, %v1398
  %v1400 = vpop.f32.mrf.mxu0
  %1401 = vmatprep.mubr.bf16.mxu0 0
  %1402 = vmatmul.mubr.bf16.gmra.mxu0 %v850
  %v1403 = vpop.f32.mrf.mxu0
  %v1404 = vadd.f32 %v1115, %v1403
  %v1405 = vpop.f32.mrf.mxu0
  %v1406 = vpop.f32.mrf.mxu0
  %v1407 = vadd.f32 %v1118, %v1406
  %v1408 = vpop.f32.mrf.mxu0
  %1409 = vmatprep.mubr.bf16.mxu0 0
  %1410 = vmatmul.mubr.bf16.gmra.mxu0 %v853
  %v1411 = vpop.f32.mrf.mxu0
  %v1412 = vadd.f32 %v1123, %v1411
  %v1413 = vpop.f32.mrf.mxu0
  %v1414 = vpop.f32.mrf.mxu0
  %v1415 = vadd.f32 %v1126, %v1414
  %v1416 = vpop.f32.mrf.mxu0
  %1417 = vmatprep.mubr.bf16.mxu0 0
  %1418 = vmatmul.mubr.bf16.gmra.mxu0 %v856
  %v1419 = vpop.f32.mrf.mxu0
  %v1420 = vadd.f32 %v1131, %v1419
  %v1421 = vpop.f32.mrf.mxu0
  %v1422 = vpop.f32.mrf.mxu0
  %v1423 = vadd.f32 %v1134, %v1422
  %v1424 = vpop.f32.mrf.mxu0
  %1425 = vmatprep.mubr.bf16.mxu0 0
  %1426 = vmatmul.mubr.bf16.gmra.mxu0 %v859
  %v1427 = vpop.f32.mrf.mxu0
  %v1428 = vadd.f32 %v1139, %v1427
  %v1429 = vpop.f32.mrf.mxu0
  %v1430 = vpop.f32.mrf.mxu0
  %v1431 = vadd.f32 %v1142, %v1430
  %v1432 = vpop.f32.mrf.mxu0
  %1433 = vmatprep.mubr.bf16.mxu0 0
  %1434 = vmatmul.mubr.bf16.gmra.mxu0 %v862
  %v1435 = vpop.f32.mrf.mxu0
  %v1436 = vadd.f32 %v1147, %v1435
  %v1437 = vpop.f32.mrf.mxu0
  %v1438 = vpop.f32.mrf.mxu0
  %v1439 = vadd.f32 %v1150, %v1438
  %v1440 = vpop.f32.mrf.mxu0
  %1441 = vdwg.mxu0
  %1442 = vst.msk [vmem:[%s2] sm:$0xff] %vm767, %v1188
  %1443 = vst.msk [vmem:[%s2 + $0x8] sm:$0xff] %vm767, %v1191
  %1444 = vst.msk [vmem:[%s2 + $0x10] sm:$0xff] %vm767, %v1196
  %1445 = vst.msk [vmem:[%s2 + $0x18] sm:$0xff] %vm767, %v1199
  %1446 = vst.msk [vmem:[%s2 + $0x20] sm:$0xff] %vm767, %v1204
  %1447 = vst.msk [vmem:[%s2 + $0x28] sm:$0xff] %vm767, %v1207
  %1448 = vst.msk [vmem:[%s2 + $0x30] sm:$0xff] %vm767, %v1212
  %1449 = vst.msk [vmem:[%s2 + $0x38] sm:$0xff] %vm767, %v1215
  %1450 = vst.msk [vmem:[%s2 + $0x40] sm:$0xff] %vm767, %v1220
  %1451 = vst.msk [vmem:[%s2 + $0x48] sm:$0xff] %vm767, %v1223
  %1452 = vst.msk [vmem:[%s2 + $0x50] sm:$0xff] %vm767, %v1228
  %1453 = vst.msk [vmem:[%s2 + $0x58] sm:$0xff] %vm767, %v1231
  %1454 = vst.msk [vmem:[%s2 + $0x60] sm:$0xff] %vm767, %v1236
  %1455 = vst.msk [vmem:[%s2 + $0x68] sm:$0xff] %vm767, %v1239
  %1456 = vst.msk [vmem:[%s2 + $0x70] sm:$0xff] %vm767, %v1244
  %1457 = vst.msk [vmem:[%s2 + $0x78] sm:$0xff] %vm767, %v1247
  %1458 = vst.msk [vmem:[%s2 + $0x80] sm:$0xff] %vm767, %v1252
  %1459 = vst.msk [vmem:[%s2 + $0x88] sm:$0xff] %vm767, %v1255
  %1460 = vst.msk [vmem:[%s2 + $0x90] sm:$0xff] %vm767, %v1260
  %1461 = vst.msk [vmem:[%s2 + $0x98] sm:$0xff] %vm767, %v1263
  %1462 = vst.msk [vmem:[%s2 + $0xa0] sm:$0xff] %vm767, %v1268
  %1463 = vst.msk [vmem:[%s2 + $0xa8] sm:$0xff] %vm767, %v1271
  %1464 = vst.msk [vmem:[%s2 + $0xb0] sm:$0xff] %vm767, %v1276
  %1465 = vst.msk [vmem:[%s2 + $0xb8] sm:$0xff] %vm767, %v1279
  %1466 = vst.msk [vmem:[%s2 + $0xc0] sm:$0xff] %vm767, %v1284
  %1467 = vst.msk [vmem:[%s2 + $0xc8] sm:$0xff] %vm767, %v1287
  %1468 = vst.msk [vmem:[%s2 + $0xd0] sm:$0xff] %vm767, %v1292
  %1469 = vst.msk [vmem:[%s2 + $0xd8] sm:$0xff] %vm767, %v1295
  %1470 = vst.msk [vmem:[%s2 + $0xe0] sm:$0xff] %vm767, %v1300
  %1471 = vst.msk [vmem:[%s2 + $0xe8] sm:$0xff] %vm767, %v1303
  %1472 = vst.msk [vmem:[%s2 + $0xf0] sm:$0xff] %vm767, %v1308
  %1473 = vst.msk [vmem:[%s2 + $0xf8] sm:$0xff] %vm767, %v1311
  %1474 = vst.msk [vmem:[%s2 + $0x100] sm:$0xff] %vm767, %v1316
  %1475 = vst.msk [vmem:[%s2 + $0x108] sm:$0xff] %vm767, %v1319
  %1476 = vst.msk [vmem:[%s2 + $0x110] sm:$0xff] %vm767, %v1324
  %1477 = vst.msk [vmem:[%s2 + $0x118] sm:$0xff] %vm767, %v1327
  %1478 = vst.msk [vmem:[%s2 + $0x120] sm:$0xff] %vm767, %v1332
  %1479 = vst.msk [vmem:[%s2 + $0x128] sm:$0xff] %vm767, %v1335
  %1480 = vst.msk [vmem:[%s2 + $0x130] sm:$0xff] %vm767, %v1340
  %1481 = vst.msk [vmem:[%s2 + $0x138] sm:$0xff] %vm767, %v1343
  %1482 = vst.msk [vmem:[%s2 + $0x140] sm:$0xff] %vm767, %v1348
  %1483 = vst.msk [vmem:[%s2 + $0x148] sm:$0xff] %vm767, %v1351
  %1484 = vst.msk [vmem:[%s2 + $0x150] sm:$0xff] %vm767, %v1356
  %1485 = vst.msk [vmem:[%s2 + $0x158] sm:$0xff] %vm767, %v1359
  %1486 = vst.msk [vmem:[%s2 + $0x160] sm:$0xff] %vm767, %v1364
  %1487 = vst.msk [vmem:[%s2 + $0x168] sm:$0xff] %vm767, %v1367
  %1488 = vst.msk [vmem:[%s2 + $0x170] sm:$0xff] %vm767, %v1372
  %1489 = vst.msk [vmem:[%s2 + $0x178] sm:$0xff] %vm767, %v1375
  %1490 = vst.msk [vmem:[%s2 + $0x180] sm:$0xff] %vm767, %v1380
  %1491 = vst.msk [vmem:[%s2 + $0x188] sm:$0xff] %vm767, %v1383
  %1492 = vst.msk [vmem:[%s2 + $0x190] sm:$0xff] %vm767, %v1388
  %1493 = vst.msk [vmem:[%s2 + $0x198] sm:$0xff] %vm767, %v1391
  %1494 = vst.msk [vmem:[%s2 + $0x1a0] sm:$0xff] %vm767, %v1396
  %1495 = vst.msk [vmem:[%s2 + $0x1a8] sm:$0xff] %vm767, %v1399
  %1496 = vst.msk [vmem:[%s2 + $0x1b0] sm:$0xff] %vm767, %v1404
  %1497 = vst.msk [vmem:[%s2 + $0x1b8] sm:$0xff] %vm767, %v1407
  %1498 = vst.msk [vmem:[%s2 + $0x1c0] sm:$0xff] %vm767, %v1412
  %1499 = vst.msk [vmem:[%s2 + $0x1c8] sm:$0xff] %vm767, %v1415
  %1500 = vst.msk [vmem:[%s2 + $0x1d0] sm:$0xff] %vm767, %v1420
  %1501 = vst.msk [vmem:[%s2 + $0x1d8] sm:$0xff] %vm767, %v1423
  %1502 = vst.msk [vmem:[%s2 + $0x1e0] sm:$0xff] %vm767, %v1428
  %1503 = vst.msk [vmem:[%s2 + $0x1e8] sm:$0xff] %vm767, %v1431
  %1504 = vst.msk [vmem:[%s2 + $0x1f0] sm:$0xff] %vm767, %v1436
  %1505 = vst.msk [vmem:[%s2 + $0x1f8] sm:$0xff] %vm767, %v1439
  %p1506 = scmp.eq.s32.totalorder 0, 0
  // Predicated region
  $region10: #{usrm3_forward.22} parent=0 // pred_check
    %p1507 = pneg %p1506
  $region11: #{usrm3_forward.22} parent=0 // pred_check_branch
    %1509 = sbr.rel (%p1507) target = $region13
  $region12: #{usrm3_forward.22} parent=0 // pred_region
    %vm1510 = vcmask 253952
    %1511 = vst.msk [vmem:[%s3] sm:$0x1] %vm1510, 0.0
    %1512 = vst.msk [vmem:[%s4] sm:$0x1] %vm1510, 0.0
  $region13: #{usrm3_forward.22} parent=0 // pred_fallthru
    _
  %v1513 = vld [vmem:[%s3] sm:$0x1]
  %v1514 = vsel %vm767, %v1188, 0.0
  %v1515 = vsel %vm767, %v1191, 0.0
  %v1516 = vadd.f32 %v1514, %v1515
  %v1517 = vsel %vm767, %v1196, 0.0
  %v1518 = vadd.f32 %v1516, %v1517
  %v1519 = vsel %vm767, %v1199, 0.0
  %v1520 = vadd.f32 %v1518, %v1519
  %v1521 = vsel %vm767, %v1204, 0.0
  %v1522 = vadd.f32 %v1520, %v1521
  %v1523 = vsel %vm767, %v1207, 0.0
  %v1524 = vadd.f32 %v1522, %v1523
  %v1525 = vsel %vm767, %v1212, 0.0
  %v1526 = vadd.f32 %v1524, %v1525
  %v1527 = vsel %vm767, %v1215, 0.0
  %v1528 = vadd.f32 %v1526, %v1527
  %v1529 = vsel %vm767, %v1220, 0.0
  %v1530 = vadd.f32 %v1528, %v1529
  %v1531 = vsel %vm767, %v1223, 0.0
  %v1532 = vadd.f32 %v1530, %v1531
  %v1533 = vsel %vm767, %v1228, 0.0
  %v1534 = vadd.f32 %v1532, %v1533
  %v1535 = vsel %vm767, %v1231, 0.0
  %v1536 = vadd.f32 %v1534, %v1535
  %v1537 = vsel %vm767, %v1236, 0.0
  %v1538 = vadd.f32 %v1536, %v1537
  %v1539 = vsel %vm767, %v1239, 0.0
  %v1540 = vadd.f32 %v1538, %v1539
  %v1541 = vsel %vm767, %v1244, 0.0
  %v1542 = vadd.f32 %v1540, %v1541
  %v1543 = vsel %vm767, %v1247, 0.0
  %v1544 = vadd.f32 %v1542, %v1543
  %v1545 = vsel %vm767, %v1252, 0.0
  %v1546 = vadd.f32 %v1544, %v1545
  %v1547 = vsel %vm767, %v1255, 0.0
  %v1548 = vadd.f32 %v1546, %v1547
  %v1549 = vsel %vm767, %v1260, 0.0
  %v1550 = vadd.f32 %v1548, %v1549
  %v1551 = vsel %vm767, %v1263, 0.0
  %v1552 = vadd.f32 %v1550, %v1551
  %v1553 = vsel %vm767, %v1268, 0.0
  %v1554 = vadd.f32 %v1552, %v1553
  %v1555 = vsel %vm767, %v1271, 0.0
  %v1556 = vadd.f32 %v1554, %v1555
  %v1557 = vsel %vm767, %v1276, 0.0
  %v1558 = vadd.f32 %v1556, %v1557
  %v1559 = vsel %vm767, %v1279, 0.0
  %v1560 = vadd.f32 %v1558, %v1559
  %v1561 = vsel %vm767, %v1284, 0.0
  %v1562 = vadd.f32 %v1560, %v1561
  %v1563 = vsel %vm767, %v1287, 0.0
  %v1564 = vadd.f32 %v1562, %v1563
  %v1565 = vsel %vm767, %v1292, 0.0
  %v1566 = vadd.f32 %v1564, %v1565
  %v1567 = vsel %vm767, %v1295, 0.0
  %v1568 = vadd.f32 %v1566, %v1567
  %v1569 = vsel %vm767, %v1300, 0.0
  %v1570 = vadd.f32 %v1568, %v1569
  %v1571 = vsel %vm767, %v1303, 0.0
  %v1572 = vadd.f32 %v1570, %v1571
  %v1573 = vsel %vm767, %v1308, 0.0
  %v1574 = vadd.f32 %v1572, %v1573
  %v1575 = vsel %vm767, %v1311, 0.0
  %v1576 = vadd.f32 %v1574, %v1575
  %v1577 = vsel %vm767, %v1316, 0.0
  %v1578 = vadd.f32 %v1576, %v1577
  %v1579 = vsel %vm767, %v1319, 0.0
  %v1580 = vadd.f32 %v1578, %v1579
  %v1581 = vsel %vm767, %v1324, 0.0
  %v1582 = vadd.f32 %v1580, %v1581
  %v1583 = vsel %vm767, %v1327, 0.0
  %v1584 = vadd.f32 %v1582, %v1583
  %v1585 = vsel %vm767, %v1332, 0.0
  %v1586 = vadd.f32 %v1584, %v1585
  %v1587 = vsel %vm767, %v1335, 0.0
  %v1588 = vadd.f32 %v1586, %v1587
  %v1589 = vsel %vm767, %v1340, 0.0
  %v1590 = vadd.f32 %v1588, %v1589
  %v1591 = vsel %vm767, %v1343, 0.0
  %v1592 = vadd.f32 %v1590, %v1591
  %v1593 = vsel %vm767, %v1348, 0.0
  %v1594 = vadd.f32 %v1592, %v1593
  %v1595 = vsel %vm767, %v1351, 0.0
  %v1596 = vadd.f32 %v1594, %v1595
  %v1597 = vsel %vm767, %v1356, 0.0
  %v1598 = vadd.f32 %v1596, %v1597
  %v1599 = vsel %vm767, %v1359, 0.0
  %v1600 = vadd.f32 %v1598, %v1599
  %v1601 = vsel %vm767, %v1364, 0.0
  %v1602 = vadd.f32 %v1600, %v1601
  %v1603 = vsel %vm767, %v1367, 0.0
  %v1604 = vadd.f32 %v1602, %v1603
  %v1605 = vsel %vm767, %v1372, 0.0
  %v1606 = vadd.f32 %v1604, %v1605
  %v1607 = vsel %vm767, %v1375, 0.0
  %v1608 = vadd.f32 %v1606, %v1607
  %v1609 = vsel %vm767, %v1380, 0.0
  %v1610 = vadd.f32 %v1608, %v1609
  %v1611 = vsel %vm767, %v1383, 0.0
  %v1612 = vadd.f32 %v1610, %v1611
  %v1613 = vsel %vm767, %v1388, 0.0
  %v1614 = vadd.f32 %v1612, %v1613
  %v1615 = vsel %vm767, %v1391, 0.0
  %v1616 = vadd.f32 %v1614, %v1615
  %v1617 = vsel %vm767, %v1396, 0.0
  %v1618 = vadd.f32 %v1616, %v1617
  %v1619 = vsel %vm767, %v1399, 0.0
  %v1620 = vadd.f32 %v1618, %v1619
  %v1621 = vsel %vm767, %v1404, 0.0
  %v1622 = vadd.f32 %v1620, %v1621
  %v1623 = vsel %vm767, %v1407, 0.0
  %v1624 = vadd.f32 %v1622, %v1623
  %v1625 = vsel %vm767, %v1412, 0.0
  %v1626 = vadd.f32 %v1624, %v1625
  %v1627 = vsel %vm767, %v1415, 0.0
  %v1628 = vadd.f32 %v1626, %v1627
  %v1629 = vsel %vm767, %v1420, 0.0
  %v1630 = vadd.f32 %v1628, %v1629
  %v1631 = vsel %vm767, %v1423, 0.0
  %v1632 = vadd.f32 %v1630, %v1631
  %v1633 = vsel %vm767, %v1428, 0.0
  %v1634 = vadd.f32 %v1632, %v1633
  %v1635 = vsel %vm767, %v1431, 0.0
  %v1636 = vadd.f32 %v1634, %v1635
  %v1637 = vsel %vm767, %v1436, 0.0
  %v1638 = vadd.f32 %v1636, %v1637
  %v1639 = vsel %vm767, %v1439, 0.0
  %v1640 = vadd.f32 %v1638, %v1639
  %v1641 = vrot.slane %v1640, 4
  %v1642 = vadd.f32 %v1640, %v1641
  %v1643 = vrot.slane %v1642, 2
  %v1644 = vadd.f32 %v1642, %v1643
  %v1645 = vrot.slane %v1644, 1
  %v1646 = vadd.f32 %v1644, %v1645
  %v1647 = vadd.f32 %v1513, %v1646
  %vm1648 = vcmask 253952
  %1649 = vst.msk [vmem:[%s3] sm:$0x1] %vm1648, %v1647
  %v1650 = vld [vmem:[%s4] sm:$0x1]
  %v1651 = vmul.f32 %v1188, %v1188
  %v1652 = vmul.f32 %v1191, %v1191
  %v1653 = vmul.f32 %v1196, %v1196
  %v1654 = vmul.f32 %v1199, %v1199
  %v1655 = vmul.f32 %v1204, %v1204
  %v1656 = vmul.f32 %v1207, %v1207
  %v1657 = vmul.f32 %v1212, %v1212
  %v1658 = vmul.f32 %v1215, %v1215
  %v1659 = vmul.f32 %v1220, %v1220
  %v1660 = vmul.f32 %v1223, %v1223
  %v1661 = vmul.f32 %v1228, %v1228
  %v1662 = vmul.f32 %v1231, %v1231
  %v1663 = vmul.f32 %v1236, %v1236
  %v1664 = vmul.f32 %v1239, %v1239
  %v1665 = vmul.f32 %v1244, %v1244
  %v1666 = vmul.f32 %v1247, %v1247
  %v1667 = vmul.f32 %v1252, %v1252
  %v1668 = vmul.f32 %v1255, %v1255
  %v1669 = vmul.f32 %v1260, %v1260
  %v1670 = vmul.f32 %v1263, %v1263
  %v1671 = vmul.f32 %v1268, %v1268
  %v1672 = vmul.f32 %v1271, %v1271
  %v1673 = vmul.f32 %v1276, %v1276
  %v1674 = vmul.f32 %v1279, %v1279
  %v1675 = vmul.f32 %v1284, %v1284
  %v1676 = vmul.f32 %v1287, %v1287
  %v1677 = vmul.f32 %v1292, %v1292
  %v1678 = vmul.f32 %v1295, %v1295
  %v1679 = vmul.f32 %v1300, %v1300
  %v1680 = vmul.f32 %v1303, %v1303
  %v1681 = vmul.f32 %v1308, %v1308
  %v1682 = vmul.f32 %v1311, %v1311
  %v1683 = vmul.f32 %v1316, %v1316
  %v1684 = vmul.f32 %v1319, %v1319
  %v1685 = vmul.f32 %v1324, %v1324
  %v1686 = vmul.f32 %v1327, %v1327
  %v1687 = vmul.f32 %v1332, %v1332
  %v1688 = vmul.f32 %v1335, %v1335
  %v1689 = vmul.f32 %v1340, %v1340
  %v1690 = vmul.f32 %v1343, %v1343
  %v1691 = vmul.f32 %v1348, %v1348
  %v1692 = vmul.f32 %v1351, %v1351
  %v1693 = vmul.f32 %v1356, %v1356
  %v1694 = vmul.f32 %v1359, %v1359
  %v1695 = vmul.f32 %v1364, %v1364
  %v1696 = vmul.f32 %v1367, %v1367
  %v1697 = vmul.f32 %v1372, %v1372
  %v1698 = vmul.f32 %v1375, %v1375
  %v1699 = vmul.f32 %v1380, %v1380
  %v1700 = vmul.f32 %v1383, %v1383
  %v1701 = vmul.f32 %v1388, %v1388
  %v1702 = vmul.f32 %v1391, %v1391
  %v1703 = vmul.f32 %v1396, %v1396
  %v1704 = vmul.f32 %v1399, %v1399
  %v1705 = vmul.f32 %v1404, %v1404
  %v1706 = vmul.f32 %v1407, %v1407
  %v1707 = vmul.f32 %v1412, %v1412
  %v1708 = vmul.f32 %v1415, %v1415
  %v1709 = vmul.f32 %v1420, %v1420
  %v1710 = vmul.f32 %v1423, %v1423
  %v1711 = vmul.f32 %v1428, %v1428
  %v1712 = vmul.f32 %v1431, %v1431
  %v1713 = vmul.f32 %v1436, %v1436
  %v1714 = vmul.f32 %v1439, %v1439
  %v1715 = vsel %vm767, %v1651, 0.0
  %v1716 = vsel %vm767, %v1652, 0.0
  %v1717 = vadd.f32 %v1715, %v1716
  %v1718 = vsel %vm767, %v1653, 0.0
  %v1719 = vadd.f32 %v1717, %v1718
  %v1720 = vsel %vm767, %v1654, 0.0
  %v1721 = vadd.f32 %v1719, %v1720
  %v1722 = vsel %vm767, %v1655, 0.0
  %v1723 = vadd.f32 %v1721, %v1722
  %v1724 = vsel %vm767, %v1656, 0.0
  %v1725 = vadd.f32 %v1723, %v1724
  %v1726 = vsel %vm767, %v1657, 0.0
  %v1727 = vadd.f32 %v1725, %v1726
  %v1728 = vsel %vm767, %v1658, 0.0
  %v1729 = vadd.f32 %v1727, %v1728
  %v1730 = vsel %vm767, %v1659, 0.0
  %v1731 = vadd.f32 %v1729, %v1730
  %v1732 = vsel %vm767, %v1660, 0.0
  %v1733 = vadd.f32 %v1731, %v1732
  %v1734 = vsel %vm767, %v1661, 0.0
  %v1735 = vadd.f32 %v1733, %v1734
  %v1736 = vsel %vm767, %v1662, 0.0
  %v1737 = vadd.f32 %v1735, %v1736
  %v1738 = vsel %vm767, %v1663, 0.0
  %v1739 = vadd.f32 %v1737, %v1738
  %v1740 = vsel %vm767, %v1664, 0.0
  %v1741 = vadd.f32 %v1739, %v1740
  %v1742 = vsel %vm767, %v1665, 0.0
  %v1743 = vadd.f32 %v1741, %v1742
  %v1744 = vsel %vm767, %v1666, 0.0
  %v1745 = vadd.f32 %v1743, %v1744
  %v1746 = vsel %vm767, %v1667, 0.0
  %v1747 = vadd.f32 %v1745, %v1746
  %v1748 = vsel %vm767, %v1668, 0.0
  %v1749 = vadd.f32 %v1747, %v1748
  %v1750 = vsel %vm767, %v1669, 0.0
  %v1751 = vadd.f32 %v1749, %v1750
  %v1752 = vsel %vm767, %v1670, 0.0
  %v1753 = vadd.f32 %v1751, %v1752
  %v1754 = vsel %vm767, %v1671, 0.0
  %v1755 = vadd.f32 %v1753, %v1754
  %v1756 = vsel %vm767, %v1672, 0.0
  %v1757 = vadd.f32 %v1755, %v1756
  %v1758 = vsel %vm767, %v1673, 0.0
  %v1759 = vadd.f32 %v1757, %v1758
  %v1760 = vsel %vm767, %v1674, 0.0
  %v1761 = vadd.f32 %v1759, %v1760
  %v1762 = vsel %vm767, %v1675, 0.0
  %v1763 = vadd.f32 %v1761, %v1762
  %v1764 = vsel %vm767, %v1676, 0.0
  %v1765 = vadd.f32 %v1763, %v1764
  %v1766 = vsel %vm767, %v1677, 0.0
  %v1767 = vadd.f32 %v1765, %v1766
  %v1768 = vsel %vm767, %v1678, 0.0
  %v1769 = vadd.f32 %v1767, %v1768
  %v1770 = vsel %vm767, %v1679, 0.0
  %v1771 = vadd.f32 %v1769, %v1770
  %v1772 = vsel %vm767, %v1680, 0.0
  %v1773 = vadd.f32 %v1771, %v1772
  %v1774 = vsel %vm767, %v1681, 0.0
  %v1775 = vadd.f32 %v1773, %v1774
  %v1776 = vsel %vm767, %v1682, 0.0
  %v1777 = vadd.f32 %v1775, %v1776
  %v1778 = vsel %vm767, %v1683, 0.0
  %v1779 = vadd.f32 %v1777, %v1778
  %v1780 = vsel %vm767, %v1684, 0.0
  %v1781 = vadd.f32 %v1779, %v1780
  %v1782 = vsel %vm767, %v1685, 0.0
  %v1783 = vadd.f32 %v1781, %v1782
  %v1784 = vsel %vm767, %v1686, 0.0
  %v1785 = vadd.f32 %v1783, %v1784
  %v1786 = vsel %vm767, %v1687, 0.0
  %v1787 = vadd.f32 %v1785, %v1786
  %v1788 = vsel %vm767, %v1688, 0.0
  %v1789 = vadd.f32 %v1787, %v1788
  %v1790 = vsel %vm767, %v1689, 0.0
  %v1791 = vadd.f32 %v1789, %v1790
  %v1792 = vsel %vm767, %v1690, 0.0
  %v1793 = vadd.f32 %v1791, %v1792
  %v1794 = vsel %vm767, %v1691, 0.0
  %v1795 = vadd.f32 %v1793, %v1794
  %v1796 = vsel %vm767, %v1692, 0.0
  %v1797 = vadd.f32 %v1795, %v1796
  %v1798 = vsel %vm767, %v1693, 0.0
  %v1799 = vadd.f32 %v1797, %v1798
  %v1800 = vsel %vm767, %v1694, 0.0
  %v1801 = vadd.f32 %v1799, %v1800
  %v1802 = vsel %vm767, %v1695, 0.0
  %v1803 = vadd.f32 %v1801, %v1802
  %v1804 = vsel %vm767, %v1696, 0.0
  %v1805 = vadd.f32 %v1803, %v1804
  %v1806 = vsel %vm767, %v1697, 0.0
  %v1807 = vadd.f32 %v1805, %v1806
  %v1808 = vsel %vm767, %v1698, 0.0
  %v1809 = vadd.f32 %v1807, %v1808
  %v1810 = vsel %vm767, %v1699, 0.0
  %v1811 = vadd.f32 %v1809, %v1810
  %v1812 = vsel %vm767, %v1700, 0.0
  %v1813 = vadd.f32 %v1811, %v1812
  %v1814 = vsel %vm767, %v1701, 0.0
  %v1815 = vadd.f32 %v1813, %v1814
  %v1816 = vsel %vm767, %v1702, 0.0
  %v1817 = vadd.f32 %v1815, %v1816
  %v1818 = vsel %vm767, %v1703, 0.0
  %v1819 = vadd.f32 %v1817, %v1818
  %v1820 = vsel %vm767, %v1704, 0.0
  %v1821 = vadd.f32 %v1819, %v1820
  %v1822 = vsel %vm767, %v1705, 0.0
  %v1823 = vadd.f32 %v1821, %v1822
  %v1824 = vsel %vm767, %v1706, 0.0
  %v1825 = vadd.f32 %v1823, %v1824
  %v1826 = vsel %vm767, %v1707, 0.0
  %v1827 = vadd.f32 %v1825, %v1826
  %v1828 = vsel %vm767, %v1708, 0.0
  %v1829 = vadd.f32 %v1827, %v1828
  %v1830 = vsel %vm767, %v1709, 0.0
  %v1831 = vadd.f32 %v1829, %v1830
  %v1832 = vsel %vm767, %v1710, 0.0
  %v1833 = vadd.f32 %v1831, %v1832
  %v1834 = vsel %vm767, %v1711, 0.0
  %v1835 = vadd.f32 %v1833, %v1834
  %v1836 = vsel %vm767, %v1712, 0.0
  %v1837 = vadd.f32 %v1835, %v1836
  %v1838 = vsel %vm767, %v1713, 0.0
  %v1839 = vadd.f32 %v1837, %v1838
  %v1840 = vsel %vm767, %v1714, 0.0
  %v1841 = vadd.f32 %v1839, %v1840
  %v1842 = vrot.slane %v1841, 4
  %v1843 = vadd.f32 %v1841, %v1842
  %v1844 = vrot.slane %v1843, 2
  %v1845 = vadd.f32 %v1843, %v1844
  %v1846 = vrot.slane %v1845, 1
  %v1847 = vadd.f32 %v1845, %v1846
  %v1848 = vadd.f32 %v1650, %v1847
  %1849 = vst.msk [vmem:[%s4] sm:$0x1] %vm1648, %v1848
  // Predicated region
  $region14: #{usrm3_forward.22} parent=0 // pred_check
    _
  $region15: #{usrm3_forward.22} parent=0 // pred_check_branch
    %1851 = sbr.rel (0) target = $region17
  $region16: #{usrm3_forward.22} parent=0 // pred_region
    _
  $region17: #{usrm3_forward.22} parent=0 // pred_fallthru
    _
  // Predicated region
  $region18: #{usrm3_forward.22} parent=0 // pred_check
    _
  $region19: #{usrm3_forward.22} parent=0 // pred_check_branch
    %1853 = sbr.rel (0) target = $region21
  $region20: #{usrm3_forward.22} parent=0 // pred_region
    _
  $region21: #{usrm3_forward.22} parent=0 // pred_fallthru
    _
  // Predicated region
  $region22: #{usrm3_forward.22} parent=0 // pred_check
    _
  $region23: #{usrm3_forward.22} parent=0 // pred_check_branch
    %1855 = sbr.rel (0) target = $region25
  $region24: #{usrm3_forward.22} parent=0 // pred_region
    _
  $region25: #{usrm3_forward.22} parent=0 // pred_fallthru
    _
  // Predicated region
  $region26: #{usrm3_forward.22} parent=0 // pred_check
    _
  $region27: #{usrm3_forward.22} parent=0 // pred_check_branch
    %1857 = sbr.rel (0) target = $region29
  $region28: #{usrm3_forward.22} parent=0 // pred_region
    _
  $region29: #{usrm3_forward.22} parent=0 // pred_fallthru
    _
  // Predicated region
  $region30: #{usrm3_forward.22} parent=0 // pred_check
    _
  $region31: #{usrm3_forward.22} parent=0 // pred_check_branch
    %1859 = sbr.rel (0) target = $region33
  $region32: #{usrm3_forward.22} parent=0 // pred_region
    _
  $region33: #{usrm3_forward.22} parent=0 // pred_fallthru
    _
  // Predicated region
  $region34: #{usrm3_forward.22} parent=0 // pred_check
    _
  $region35: #{usrm3_forward.22} parent=0 // pred_check_branch
    %1861 = sbr.rel (0) target = $region37
  $region36: #{usrm3_forward.22} parent=0 // pred_region
    _
  $region37: #{usrm3_forward.22} parent=0 // pred_fallthru
    _

</llo_original>
